<compile_context>
chip_gen: v5e
topology: v5e:2x2
jax: 0.10.0
libtpu: 0.0.40
codegen_flags: <defaults>
</compile_context>

<pallas_src>
import functools

import jax
import jax.numpy as jnp
from jax import lax
from jax.experimental import pallas as pl
from jax.experimental.pallas import tpu as pltpu


def _round_up(x, m):
    return (x + m - 1) // m * m


def _make_fused_resblock_kernel(TH, W, Wp, C):
    """Fused ResnetBlock kernel for one (TH rows x W cols) output tile.

    Refs:
      xpe_ref : (TH+4, Wp, C) bf16   input window (reflect-padded x, 2-row halo)
      w1_ref  : (3, 3, C, C) bf16    conv1 weights (HWIO)
      b1_ref  : (1, C) f32
      w2_ref  : (3, 3, C, C) bf16    conv2 weights (HWIO)
      b2_ref  : (1, C) f32
      out_ref : (TH, W, C) f32       output tile (batch dim squeezed)
      h_ref   : (TH+2, Wp, C) bf16   VMEM scratch: reflect-padded conv1 output
    """

    def conv_taps(slab2d, n_rows, w_ref, out_rows):
        # slab2d: (n_rows * Wp, C) bf16. Each tap is one MXU matmul over the
        # whole slab; the window shift is taken on the f32 result.
        acc = jnp.zeros((out_rows, W, C), jnp.float32)
        for dy in range(3):
            for dx in range(3):
                r = jnp.dot(slab2d, w_ref[dy, dx],
                            preferred_element_type=jnp.float32)
                r3 = r.reshape(n_rows, Wp, C)
                acc = acc + r3[dy:dy + out_rows, dx:dx + W, :]
        return acc

    def kernel(xpe_ref, w1_ref, b1_ref, w2_ref, b2_ref, out_ref, h_ref):
        t = pl.program_id(1)
        n_t = pl.num_programs(1)

        x_slab = xpe_ref[...]                        # (TH+4, Wp, C) bf16
        x2d = x_slab.reshape((TH + 4) * Wp, C)       # free: Wp sublane-aligned

        # ---- conv1 + bias + ReLU (f32), then store bf16 activation tile ----
        acc1 = conv_taps(x2d, TH + 4, w1_ref, TH + 2)
        h = jnp.maximum(acc1 + b1_ref[...].reshape(1, 1, C), 0.0)
        h = h.astype(jnp.bfloat16)                   # (TH+2, W, C)

        # Build the reflect-padded activation tile in VMEM scratch.
        h_ref[:, 1:W + 1, :] = h
        h_ref[:, 0:1, :] = h[:, 1:2, :]                      # reflect left col
        h_ref[:, W + 1:W + 2, :] = h[:, W - 2:W - 1, :]      # reflect right col
        if Wp > W + 2:                                       # alignment pad cols
            h_ref[:, W + 2:, :] = jnp.zeros(
                (TH + 2, Wp - (W + 2), C), jnp.bfloat16)

        # Reflect the activation across the image boundary in H.
        @pl.when(t == 0)
        def _():
            h_ref[0, :, :] = h_ref[2, :, :]

        @pl.when(t == n_t - 1)
        def _():
            h_ref[TH + 1, :, :] = h_ref[TH - 1, :, :]

        # ---- conv2 + bias + residual (residual taken from the input tile) ----
        h2d = h_ref[...].reshape((TH + 2) * Wp, C)
        acc2 = conv_taps(h2d, TH + 2, w2_ref, TH)
        residual = x_slab[2:TH + 2, 1:W + 1, :].astype(jnp.float32)
        out = acc2 + b2_ref[...].reshape(1, 1, C) + residual
        out_ref[...] = out.astype(out_ref.dtype)

    return kernel


def resnet_block_forward(x_nchw, params, *, tile_h=None):
    """ResnetBlock forward. Input/output are NCHW f32 (PyTorch convention)."""
    w1, b1, w2, b2 = params          # w*: (C, C, 3, 3) OIHW, b*: (C,)
    B, C, H, W = x_nchw.shape
    if H < 2 or W < 2:
        raise ValueError("reflection padding requires H, W >= 2")

    if tile_h is None:               # largest divisor of H up to 64 rows
        tile_h = H                   # (tune down on v7x: 64 MiB VMEM)
        for cand in range(min(H, 64), 0, -1):
            if H % cand == 0:
                tile_h = cand
                break
    if H % tile_h != 0:
        raise ValueError(f"tile_h={tile_h} must divide H={H}")
    TH = tile_h
    n_t = H // TH

    # Sublane-aligned padded width so (rows, Wp, C) <-> (rows*Wp, C) reshapes
    # inside the kernel are layout no-ops (bf16 tile = 16 sublanes).
    Wp = _round_up(W + 2, 16)

    # Layout / padding glue (plain JAX, fused by XLA):
    #   NCHW -> NHWC, reflect-pad by 1, add one throwaway row top+bottom so
    #   every row tile reads a fixed (TH+4)-row window, zero-pad W to Wp,
    #   cast to bf16 (halves HBM traffic into the kernel).
    # TODO(synk): fold the NCHW->NHWC transpose + reflection padding into the
    # kernel (halo reads / in-kernel shifts) to remove this HBM round trip.
    x_nhwc = jnp.transpose(x_nchw, (0, 2, 3, 1))
    xp = jnp.pad(x_nhwc, ((0, 0), (1, 1), (1, 1), (0, 0)), mode="reflect")
    xpe = jnp.pad(xp, ((0, 0), (1, 1), (0, Wp - (W + 2)), (0, 0)))
    xpe = xpe.astype(jnp.bfloat16)   # (B, H+4, Wp, C)

    # Overlapping row windows (2-row halo each side) so every grid step reads a
    # fixed-size, block-aligned tile with plain Blocked BlockSpecs.
    # TODO(synk): with element-offset indexing (pl.Element) on the H axis the
    # windows could be fetched straight from `xpe`, avoiding this small
    # (TH+4)/TH duplication of the bf16 input in HBM.
    xpe_win = jnp.stack(
        [xpe[:, t * TH:t * TH + TH + 4] for t in range(n_t)], axis=1
    )                                # (B, n_t, TH+4, Wp, C)

    w1_hwio = jnp.transpose(w1, (2, 3, 1, 0)).astype(jnp.bfloat16)
    w2_hwio = jnp.transpose(w2, (2, 3, 1, 0)).astype(jnp.bfloat16)
    b1_2d = b1.reshape(1, C).astype(jnp.float32)
    b2_2d = b2.reshape(1, C).astype(jnp.float32)

    kernel = _make_fused_resblock_kernel(TH, W, Wp, C)

    y_nhwc = pl.pallas_call(
        kernel,
        out_shape=jax.ShapeDtypeStruct((B, H, W, C), jnp.float32),
        grid=(B, n_t),
        in_specs=[
            pl.BlockSpec((None, None, TH + 4, Wp, C),
                         lambda b, t: (b, t, 0, 0, 0)),
            pl.BlockSpec((3, 3, C, C), lambda b, t: (0, 0, 0, 0)),
            pl.BlockSpec((1, C), lambda b, t: (0, 0)),
            pl.BlockSpec((3, 3, C, C), lambda b, t: (0, 0, 0, 0)),
            pl.BlockSpec((1, C), lambda b, t: (0, 0)),
        ],
        out_specs=pl.BlockSpec((None, TH, W, C), lambda b, t: (b, t, 0, 0)),
        scratch_shapes=[pltpu.VMEM((TH + 2, Wp, C), jnp.bfloat16)],
        compiler_params=pltpu.CompilerParams(
            dimension_semantics=("parallel", "parallel")),
    )(xpe_win, w1_hwio, b1_2d, w2_hwio, b2_2d)

    return jnp.transpose(y_nhwc, (0, 3, 1, 2))


def _reference_forward(x_nchw, params, *, match_kernel_precision=False):
    """Pure-JAX reference matching the PyTorch module.

    With match_kernel_precision=True the same bf16 quantization points as the
    Pallas kernel are applied (x, weights, intermediate activation), so the
    comparison isolates structural correctness from bf16 rounding.
    """
    w1, b1, w2, b2 = params
    if match_kernel_precision:
        q = lambda a: a.astype(jnp.bfloat16).astype(jnp.float32)
        x_nchw, w1, w2 = q(x_nchw), q(w1), q(w2)
    xp = jnp.pad(x_nchw, ((0, 0), (0, 0), (1, 1), (1, 1)), mode="reflect")
    h = lax.conv_general_dilated(
        xp, w1, (1, 1), "VALID", dimension_numbers=("NCHW", "OIHW", "NCHW")
    ) + b1[None, :, None, None]
    h = jnp.maximum(h, 0.0)
    if match_kernel_precision:
        h = h.astype(jnp.bfloat16).astype(jnp.float32)
    hp = jnp.pad(h, ((0, 0), (0, 0), (1, 1), (1, 1)), mode="reflect")
    y = lax.conv_general_dilated(
        hp, w2, (1, 1), "VALID", dimension_numbers=("NCHW", "OIHW", "NCHW")
    ) + b2[None, :, None, None]
    return x_nchw + y


def _init_params(key, channels):
    """Deterministic Conv2d-style init: U(-k, k) with k = 1/sqrt(fan_in)."""
    k = 1.0 / jnp.sqrt(jnp.float32(channels * 3 * 3))
    k1, k2, k3, k4 = jax.random.split(key, 4)
    w1 = jax.random.uniform(k1, (channels, channels, 3, 3), jnp.float32, -k, k)
    b1 = jax.random.uniform(k2, (channels,), jnp.float32, -k, k)
    w2 = jax.random.uniform(k3, (channels, channels, 3, 3), jnp.float32, -k, k)
    b2 = jax.random.uniform(k4, (channels,), jnp.float32, -k, k)
    return (w1, b1, w2, b2)


if __name__ == "__main__":
    key = jax.random.PRNGKey(0)
    kx, kp = jax.random.split(key)

    B, C, H, W = 2, 4, 16, 16
    x = jax.random.normal(kx, (B, C, H, W), jnp.float32)
    params = _init_params(kp, C)

    # tile_h=8 -> 2 row tiles per image, exercising the halo / boundary logic.
    fwd = jax.jit(functools.partial(resnet_block_forward, tile_h=8))
    out = jax.block_until_ready(fwd(x, params))
    assert out.shape == (B, C, H, W)

    # Tight check against a reference with the same bf16 quantization points.
    ref_q = _reference_forward(x, params, match_kernel_precision=True)
    err_q = float(jnp.max(jnp.abs(out - ref_q)))
    # Loose check against the exact f32 module reference (bf16 MXU inputs).
    ref_f32 = _reference_forward(x, params)
    err_f32 = float(jnp.max(jnp.abs(out - ref_f32)))

    assert err_q < 3e-2, f"mismatch vs bf16-matched reference: {err_q}"
    assert err_f32 < 2e-1, f"mismatch vs f32 reference: {err_f32}"

    print("KERNEL_OK")
</pallas_src>

<mosaic_0001>
module attributes {stable_mosaic.version = 11 : i64} {
  func.func @kernel(%arg0: i32, %arg1: i32, %arg2: memref<1x1x12x32x4xbf16, #tpu.memory_space<vmem>>, %arg3: memref<3x3x4x4xbf16, #tpu.memory_space<vmem>>, %arg4: memref<1x4xf32, #tpu.memory_space<vmem>>, %arg5: memref<3x3x4x4xbf16, #tpu.memory_space<vmem>>, %arg6: memref<1x4xf32, #tpu.memory_space<vmem>>, %arg7: memref<1x8x16x4xf32, #tpu.memory_space<vmem>>, %arg8: memref<10x32x4xbf16, #tpu.memory_space<vmem>>) attributes {dimension_semantics = [#tpu.dimension_semantics<parallel>, #tpu.dimension_semantics<parallel>], iteration_bounds = array<i64: 2, 2>, scalar_prefetch = 0 : i64, scratch_operands = 1 : i64, tpu.core_type = #tpu.core_type<tc>, window_params = [{transform_indices = @transform_0, window_bounds = array<i64: 1, 1, 12, 32, 4>}, {pipeline_mode = #tpu.pipeline_mode<synchronous>, transform_indices = @transform_1, window_bounds = array<i64: 3, 3, 4, 4>}, {pipeline_mode = #tpu.pipeline_mode<synchronous>, transform_indices = @transform_2, window_bounds = array<i64: 1, 4>}, {pipeline_mode = #tpu.pipeline_mode<synchronous>, transform_indices = @transform_3, window_bounds = array<i64: 3, 3, 4, 4>}, {pipeline_mode = #tpu.pipeline_mode<synchronous>, transform_indices = @transform_4, window_bounds = array<i64: 1, 4>}, {transform_indices = @transform_5, window_bounds = array<i64: 1, 8, 16, 4>}]} {
    %c0 = arith.constant 0 : index
    %c0_0 = arith.constant 0 : index
    %c0_1 = arith.constant 0 : index
    %c0_2 = arith.constant 0 : index
    %c0_3 = arith.constant 0 : index
    %0 = vector.load %arg2[%c0, %c0_0, %c0_1, %c0_2, %c0_3] : memref<1x1x12x32x4xbf16, #tpu.memory_space<vmem>>, vector<1x1x12x32x4xbf16>
    %1 = vector.shape_cast %0 : vector<1x1x12x32x4xbf16> to vector<12x32x4xbf16>
    %2 = vector.shape_cast %1 : vector<12x32x4xbf16> to vector<384x4xbf16>
    %cst = arith.constant 0.000000e+00 : f32
    %3 = vector.broadcast %cst : f32 to vector<10x16x4xf32>
    %c0_4 = arith.constant 0 : index
    %c0_5 = arith.constant 0 : index
    %c0_6 = arith.constant 0 : index
    %c0_7 = arith.constant 0 : index
    %4 = vector.load %arg3[%c0_4, %c0_5, %c0_6, %c0_7] : memref<3x3x4x4xbf16, #tpu.memory_space<vmem>>, vector<1x1x4x4xbf16>
    %5 = vector.shape_cast %4 : vector<1x1x4x4xbf16> to vector<4x4xbf16>
    %cst_8 = arith.constant dense<0.000000e+00> : vector<384x4xf32>
    %6 = tpu.matmul %2, %5, %cst_8 {dimension_numbers = #tpu.dot_dimension_numbers<[1], [0], [0], [1], [0, 0, 1, 1], [], []>} : vector<384x4xbf16>, vector<4x4xbf16>, vector<384x4xf32> -> vector<384x4xf32>
    %7 = vector.shape_cast %6 : vector<384x4xf32> to vector<12x32x4xf32>
    %8 = vector.extract_strided_slice %7 {offsets = [0, 0, 0], sizes = [10, 16, 4], strides = [1, 1, 1]} : vector<12x32x4xf32> to vector<10x16x4xf32>
    %9 = arith.addf %3, %8 : vector<10x16x4xf32>
    %c0_9 = arith.constant 0 : index
    %c1 = arith.constant 1 : index
    %c0_10 = arith.constant 0 : index
    %c0_11 = arith.constant 0 : index
    %10 = vector.load %arg3[%c0_9, %c1, %c0_10, %c0_11] : memref<3x3x4x4xbf16, #tpu.memory_space<vmem>>, vector<1x1x4x4xbf16>
    %11 = vector.shape_cast %10 : vector<1x1x4x4xbf16> to vector<4x4xbf16>
    %cst_12 = arith.constant dense<0.000000e+00> : vector<384x4xf32>
    %12 = tpu.matmul %2, %11, %cst_12 {dimension_numbers = #tpu.dot_dimension_numbers<[1], [0], [0], [1], [0, 0, 1, 1], [], []>} : vector<384x4xbf16>, vector<4x4xbf16>, vector<384x4xf32> -> vector<384x4xf32>
    %13 = vector.shape_cast %12 : vector<384x4xf32> to vector<12x32x4xf32>
    %14 = vector.extract_strided_slice %13 {offsets = [0, 1, 0], sizes = [10, 16, 4], strides = [1, 1, 1]} : vector<12x32x4xf32> to vector<10x16x4xf32>
    %15 = arith.addf %9, %14 : vector<10x16x4xf32>
    %c0_13 = arith.constant 0 : index
    %c2 = arith.constant 2 : index
    %c0_14 = arith.constant 0 : index
    %c0_15 = arith.constant 0 : index
    %16 = vector.load %arg3[%c0_13, %c2, %c0_14, %c0_15] : memref<3x3x4x4xbf16, #tpu.memory_space<vmem>>, vector<1x1x4x4xbf16>
    %17 = vector.shape_cast %16 : vector<1x1x4x4xbf16> to vector<4x4xbf16>
    %cst_16 = arith.constant dense<0.000000e+00> : vector<384x4xf32>
    %18 = tpu.matmul %2, %17, %cst_16 {dimension_numbers = #tpu.dot_dimension_numbers<[1], [0], [0], [1], [0, 0, 1, 1], [], []>} : vector<384x4xbf16>, vector<4x4xbf16>, vector<384x4xf32> -> vector<384x4xf32>
    %19 = vector.shape_cast %18 : vector<384x4xf32> to vector<12x32x4xf32>
    %20 = vector.extract_strided_slice %19 {offsets = [0, 2, 0], sizes = [10, 16, 4], strides = [1, 1, 1]} : vector<12x32x4xf32> to vector<10x16x4xf32>
    %21 = arith.addf %15, %20 : vector<10x16x4xf32>
    %c1_17 = arith.constant 1 : index
    %c0_18 = arith.constant 0 : index
    %c0_19 = arith.constant 0 : index
    %c0_20 = arith.constant 0 : index
    %22 = vector.load %arg3[%c1_17, %c0_18, %c0_19, %c0_20] : memref<3x3x4x4xbf16, #tpu.memory_space<vmem>>, vector<1x1x4x4xbf16>
    %23 = vector.shape_cast %22 : vector<1x1x4x4xbf16> to vector<4x4xbf16>
    %cst_21 = arith.constant dense<0.000000e+00> : vector<384x4xf32>
    %24 = tpu.matmul %2, %23, %cst_21 {dimension_numbers = #tpu.dot_dimension_numbers<[1], [0], [0], [1], [0, 0, 1, 1], [], []>} : vector<384x4xbf16>, vector<4x4xbf16>, vector<384x4xf32> -> vector<384x4xf32>
    %25 = vector.shape_cast %24 : vector<384x4xf32> to vector<12x32x4xf32>
    %26 = vector.extract_strided_slice %25 {offsets = [1, 0, 0], sizes = [10, 16, 4], strides = [1, 1, 1]} : vector<12x32x4xf32> to vector<10x16x4xf32>
    %27 = arith.addf %21, %26 : vector<10x16x4xf32>
    %c1_22 = arith.constant 1 : index
    %c1_23 = arith.constant 1 : index
    %c0_24 = arith.constant 0 : index
    %c0_25 = arith.constant 0 : index
    %28 = vector.load %arg3[%c1_22, %c1_23, %c0_24, %c0_25] : memref<3x3x4x4xbf16, #tpu.memory_space<vmem>>, vector<1x1x4x4xbf16>
    %29 = vector.shape_cast %28 : vector<1x1x4x4xbf16> to vector<4x4xbf16>
    %cst_26 = arith.constant dense<0.000000e+00> : vector<384x4xf32>
    %30 = tpu.matmul %2, %29, %cst_26 {dimension_numbers = #tpu.dot_dimension_numbers<[1], [0], [0], [1], [0, 0, 1, 1], [], []>} : vector<384x4xbf16>, vector<4x4xbf16>, vector<384x4xf32> -> vector<384x4xf32>
    %31 = vector.shape_cast %30 : vector<384x4xf32> to vector<12x32x4xf32>
    %32 = vector.extract_strided_slice %31 {offsets = [1, 1, 0], sizes = [10, 16, 4], strides = [1, 1, 1]} : vector<12x32x4xf32> to vector<10x16x4xf32>
    %33 = arith.addf %27, %32 : vector<10x16x4xf32>
    %c1_27 = arith.constant 1 : index
    %c2_28 = arith.constant 2 : index
    %c0_29 = arith.constant 0 : index
    %c0_30 = arith.constant 0 : index
    %34 = vector.load %arg3[%c1_27, %c2_28, %c0_29, %c0_30] : memref<3x3x4x4xbf16, #tpu.memory_space<vmem>>, vector<1x1x4x4xbf16>
    %35 = vector.shape_cast %34 : vector<1x1x4x4xbf16> to vector<4x4xbf16>
    %cst_31 = arith.constant dense<0.000000e+00> : vector<384x4xf32>
    %36 = tpu.matmul %2, %35, %cst_31 {dimension_numbers = #tpu.dot_dimension_numbers<[1], [0], [0], [1], [0, 0, 1, 1], [], []>} : vector<384x4xbf16>, vector<4x4xbf16>, vector<384x4xf32> -> vector<384x4xf32>
    %37 = vector.shape_cast %36 : vector<384x4xf32> to vector<12x32x4xf32>
    %38 = vector.extract_strided_slice %37 {offsets = [1, 2, 0], sizes = [10, 16, 4], strides = [1, 1, 1]} : vector<12x32x4xf32> to vector<10x16x4xf32>
    %39 = arith.addf %33, %38 : vector<10x16x4xf32>
    %c2_32 = arith.constant 2 : index
    %c0_33 = arith.constant 0 : index
    %c0_34 = arith.constant 0 : index
    %c0_35 = arith.constant 0 : index
    %40 = vector.load %arg3[%c2_32, %c0_33, %c0_34, %c0_35] : memref<3x3x4x4xbf16, #tpu.memory_space<vmem>>, vector<1x1x4x4xbf16>
    %41 = vector.shape_cast %40 : vector<1x1x4x4xbf16> to vector<4x4xbf16>
    %cst_36 = arith.constant dense<0.000000e+00> : vector<384x4xf32>
    %42 = tpu.matmul %2, %41, %cst_36 {dimension_numbers = #tpu.dot_dimension_numbers<[1], [0], [0], [1], [0, 0, 1, 1], [], []>} : vector<384x4xbf16>, vector<4x4xbf16>, vector<384x4xf32> -> vector<384x4xf32>
    %43 = vector.shape_cast %42 : vector<384x4xf32> to vector<12x32x4xf32>
    %44 = vector.extract_strided_slice %43 {offsets = [2, 0, 0], sizes = [10, 16, 4], strides = [1, 1, 1]} : vector<12x32x4xf32> to vector<10x16x4xf32>
    %45 = arith.addf %39, %44 : vector<10x16x4xf32>
    %c2_37 = arith.constant 2 : index
    %c1_38 = arith.constant 1 : index
    %c0_39 = arith.constant 0 : index
    %c0_40 = arith.constant 0 : index
    %46 = vector.load %arg3[%c2_37, %c1_38, %c0_39, %c0_40] : memref<3x3x4x4xbf16, #tpu.memory_space<vmem>>, vector<1x1x4x4xbf16>
    %47 = vector.shape_cast %46 : vector<1x1x4x4xbf16> to vector<4x4xbf16>
    %cst_41 = arith.constant dense<0.000000e+00> : vector<384x4xf32>
    %48 = tpu.matmul %2, %47, %cst_41 {dimension_numbers = #tpu.dot_dimension_numbers<[1], [0], [0], [1], [0, 0, 1, 1], [], []>} : vector<384x4xbf16>, vector<4x4xbf16>, vector<384x4xf32> -> vector<384x4xf32>
    %49 = vector.shape_cast %48 : vector<384x4xf32> to vector<12x32x4xf32>
    %50 = vector.extract_strided_slice %49 {offsets = [2, 1, 0], sizes = [10, 16, 4], strides = [1, 1, 1]} : vector<12x32x4xf32> to vector<10x16x4xf32>
    %51 = arith.addf %45, %50 : vector<10x16x4xf32>
    %c2_42 = arith.constant 2 : index
    %c2_43 = arith.constant 2 : index
    %c0_44 = arith.constant 0 : index
    %c0_45 = arith.constant 0 : index
    %52 = vector.load %arg3[%c2_42, %c2_43, %c0_44, %c0_45] : memref<3x3x4x4xbf16, #tpu.memory_space<vmem>>, vector<1x1x4x4xbf16>
    %53 = vector.shape_cast %52 : vector<1x1x4x4xbf16> to vector<4x4xbf16>
    %cst_46 = arith.constant dense<0.000000e+00> : vector<384x4xf32>
    %54 = tpu.matmul %2, %53, %cst_46 {dimension_numbers = #tpu.dot_dimension_numbers<[1], [0], [0], [1], [0, 0, 1, 1], [], []>} : vector<384x4xbf16>, vector<4x4xbf16>, vector<384x4xf32> -> vector<384x4xf32>
    %55 = vector.shape_cast %54 : vector<384x4xf32> to vector<12x32x4xf32>
    %56 = vector.extract_strided_slice %55 {offsets = [2, 2, 0], sizes = [10, 16, 4], strides = [1, 1, 1]} : vector<12x32x4xf32> to vector<10x16x4xf32>
    %57 = arith.addf %51, %56 : vector<10x16x4xf32>
    %c0_47 = arith.constant 0 : index
    %c0_48 = arith.constant 0 : index
    %58 = vector.load %arg4[%c0_47, %c0_48] : memref<1x4xf32, #tpu.memory_space<vmem>>, vector<1x4xf32>
    %59 = vector.shape_cast %58 : vector<1x4xf32> to vector<1x1x4xf32>
    %60 = vector.broadcast %59 : vector<1x1x4xf32> to vector<10x16x4xf32>
    %61 = arith.addf %57, %60 : vector<10x16x4xf32>
    %cst_49 = arith.constant 0.000000e+00 : f32
    %62 = vector.broadcast %cst_49 : f32 to vector<10x16x4xf32>
    %63 = arith.maximumf %61, %62 : vector<10x16x4xf32>
    %64 = arith.truncf %63 : vector<10x16x4xf32> to vector<10x16x4xbf16>
    %c0_50 = arith.constant 0 : index
    %c1_51 = arith.constant 1 : index
    %c0_52 = arith.constant 0 : index
    %65 = vector.load %arg8[%c0_50, %c1_51, %c0_52] : memref<10x32x4xbf16, #tpu.memory_space<vmem>>, vector<10x16x4xbf16>
    tpu.vector_store %arg8[%c0_50, %c1_51, %c0_52], %64 {strides = array<i32>} : memref<10x32x4xbf16, #tpu.memory_space<vmem>>, vector<10x16x4xbf16>,
    %66 = vector.extract_strided_slice %64 {offsets = [0, 1, 0], sizes = [10, 1, 4], strides = [1, 1, 1]} : vector<10x16x4xbf16> to vector<10x1x4xbf16>
    %c0_53 = arith.constant 0 : index
    %c0_54 = arith.constant 0 : index
    %c0_55 = arith.constant 0 : index
    %67 = vector.load %arg8[%c0_53, %c0_54, %c0_55] : memref<10x32x4xbf16, #tpu.memory_space<vmem>>, vector<10x1x4xbf16>
    tpu.vector_store %arg8[%c0_53, %c0_54, %c0_55], %66 {strides = array<i32>} : memref<10x32x4xbf16, #tpu.memory_space<vmem>>, vector<10x1x4xbf16>,
    %68 = vector.extract_strided_slice %64 {offsets = [0, 14, 0], sizes = [10, 1, 4], strides = [1, 1, 1]} : vector<10x16x4xbf16> to vector<10x1x4xbf16>
    %c0_56 = arith.constant 0 : index
    %c17 = arith.constant 17 : index
    %c0_57 = arith.constant 0 : index
    %69 = vector.load %arg8[%c0_56, %c17, %c0_57] : memref<10x32x4xbf16, #tpu.memory_space<vmem>>, vector<10x1x4xbf16>
    tpu.vector_store %arg8[%c0_56, %c17, %c0_57], %68 {strides = array<i32>} : memref<10x32x4xbf16, #tpu.memory_space<vmem>>, vector<10x1x4xbf16>,
    %cst_58 = arith.constant 0.000000e+00 : bf16
    %70 = vector.broadcast %cst_58 : bf16 to vector<10x14x4xbf16>
    %c0_59 = arith.constant 0 : index
    %c18 = arith.constant 18 : index
    %c0_60 = arith.constant 0 : index
    %71 = vector.load %arg8[%c0_59, %c18, %c0_60] : memref<10x32x4xbf16, #tpu.memory_space<vmem>>, vector<10x14x4xbf16>
    tpu.vector_store %arg8[%c0_59, %c18, %c0_60], %70 {strides = array<i32>} : memref<10x32x4xbf16, #tpu.memory_space<vmem>>, vector<10x14x4xbf16>,
    %c0_i32 = arith.constant 0 : i32
    %72 = arith.cmpi eq, %arg1, %c0_i32 : i32
    %73 = arith.extui %72 : i1 to i32
    %c0_i32_61 = arith.constant 0 : i32
    %74 = arith.cmpi ne, %73, %c0_i32_61 : i32
    scf.if %74 {
      %c2_118 = arith.constant 2 : index
      %c0_119 = arith.constant 0 : index
      %c0_120 = arith.constant 0 : index
      %145 = vector.load %arg8[%c2_118, %c0_119, %c0_120] : memref<10x32x4xbf16, #tpu.memory_space<vmem>>, vector<1x32x4xbf16>
      %146 = vector.shape_cast %145 : vector<1x32x4xbf16> to vector<32x4xbf16>
      %c0_121 = arith.constant 0 : index
      %c0_122 = arith.constant 0 : index
      %c0_123 = arith.constant 0 : index
      %147 = vector.load %arg8[%c0_121, %c0_122, %c0_123] : memref<10x32x4xbf16, #tpu.memory_space<vmem>>, vector<1x32x4xbf16>
      %148 = vector.shape_cast %147 : vector<1x32x4xbf16> to vector<32x4xbf16>
      %149 = vector.shape_cast %146 : vector<32x4xbf16> to vector<1x32x4xbf16>
      tpu.vector_store %arg8[%c0_121, %c0_122, %c0_123], %149 {strides = array<i32>} : memref<10x32x4xbf16, #tpu.memory_space<vmem>>, vector<1x32x4xbf16>,
    } else {
    }
    %c1_i32 = arith.constant 1 : i32
    %75 = arith.cmpi eq, %arg1, %c1_i32 : i32
    %76 = arith.extui %75 : i1 to i32
    %c0_i32_62 = arith.constant 0 : i32
    %77 = arith.cmpi ne, %76, %c0_i32_62 : i32
    scf.if %77 {
      %c7 = arith.constant 7 : index
      %c0_118 = arith.constant 0 : index
      %c0_119 = arith.constant 0 : index
      %145 = vector.load %arg8[%c7, %c0_118, %c0_119] : memref<10x32x4xbf16, #tpu.memory_space<vmem>>, vector<1x32x4xbf16>
      %146 = vector.shape_cast %145 : vector<1x32x4xbf16> to vector<32x4xbf16>
      %c9 = arith.constant 9 : index
      %c0_120 = arith.constant 0 : index
      %c0_121 = arith.constant 0 : index
      %147 = vector.load %arg8[%c9, %c0_120, %c0_121] : memref<10x32x4xbf16, #tpu.memory_space<vmem>>, vector<1x32x4xbf16>
      %148 = vector.shape_cast %147 : vector<1x32x4xbf16> to vector<32x4xbf16>
      %149 = vector.shape_cast %146 : vector<32x4xbf16> to vector<1x32x4xbf16>
      tpu.vector_store %arg8[%c9, %c0_120, %c0_121], %149 {strides = array<i32>} : memref<10x32x4xbf16, #tpu.memory_space<vmem>>, vector<1x32x4xbf16>,
    } else {
    }
    %c0_63 = arith.constant 0 : index
    %c0_64 = arith.constant 0 : index
    %c0_65 = arith.constant 0 : index
    %78 = vector.load %arg8[%c0_63, %c0_64, %c0_65] : memref<10x32x4xbf16, #tpu.memory_space<vmem>>, vector<10x32x4xbf16>
    %79 = vector.shape_cast %78 : vector<10x32x4xbf16> to vector<320x4xbf16>
    %cst_66 = arith.constant 0.000000e+00 : f32
    %80 = vector.broadcast %cst_66 : f32 to vector<8x16x4xf32>
    %c0_67 = arith.constant 0 : index
    %c0_68 = arith.constant 0 : index
    %c0_69 = arith.constant 0 : index
    %c0_70 = arith.constant 0 : index
    %81 = vector.load %arg5[%c0_67, %c0_68, %c0_69, %c0_70] : memref<3x3x4x4xbf16, #tpu.memory_space<vmem>>, vector<1x1x4x4xbf16>
    %82 = vector.shape_cast %81 : vector<1x1x4x4xbf16> to vector<4x4xbf16>
    %cst_71 = arith.constant dense<0.000000e+00> : vector<320x4xf32>
    %83 = tpu.matmul %79, %82, %cst_71 {dimension_numbers = #tpu.dot_dimension_numbers<[1], [0], [0], [1], [0, 0, 1, 1], [], []>} : vector<320x4xbf16>, vector<4x4xbf16>, vector<320x4xf32> -> vector<320x4xf32>
    %84 = vector.shape_cast %83 : vector<320x4xf32> to vector<10x32x4xf32>
    %85 = vector.extract_strided_slice %84 {offsets = [0, 0, 0], sizes = [8, 16, 4], strides = [1, 1, 1]} : vector<10x32x4xf32> to vector<8x16x4xf32>
    %86 = arith.addf %80, %85 : vector<8x16x4xf32>
    %c0_72 = arith.constant 0 : index
    %c1_73 = arith.constant 1 : index
    %c0_74 = arith.constant 0 : index
    %c0_75 = arith.constant 0 : index
    %87 = vector.load %arg5[%c0_72, %c1_73, %c0_74, %c0_75] : memref<3x3x4x4xbf16, #tpu.memory_space<vmem>>, vector<1x1x4x4xbf16>
    %88 = vector.shape_cast %87 : vector<1x1x4x4xbf16> to vector<4x4xbf16>
    %cst_76 = arith.constant dense<0.000000e+00> : vector<320x4xf32>
    %89 = tpu.matmul %79, %88, %cst_76 {dimension_numbers = #tpu.dot_dimension_numbers<[1], [0], [0], [1], [0, 0, 1, 1], [], []>} : vector<320x4xbf16>, vector<4x4xbf16>, vector<320x4xf32> -> vector<320x4xf32>
    %90 = vector.shape_cast %89 : vector<320x4xf32> to vector<10x32x4xf32>
    %91 = vector.extract_strided_slice %90 {offsets = [0, 1, 0], sizes = [8, 16, 4], strides = [1, 1, 1]} : vector<10x32x4xf32> to vector<8x16x4xf32>
    %92 = arith.addf %86, %91 : vector<8x16x4xf32>
    %c0_77 = arith.constant 0 : index
    %c2_78 = arith.constant 2 : index
    %c0_79 = arith.constant 0 : index
    %c0_80 = arith.constant 0 : index
    %93 = vector.load %arg5[%c0_77, %c2_78, %c0_79, %c0_80] : memref<3x3x4x4xbf16, #tpu.memory_space<vmem>>, vector<1x1x4x4xbf16>
    %94 = vector.shape_cast %93 : vector<1x1x4x4xbf16> to vector<4x4xbf16>
    %cst_81 = arith.constant dense<0.000000e+00> : vector<320x4xf32>
    %95 = tpu.matmul %79, %94, %cst_81 {dimension_numbers = #tpu.dot_dimension_numbers<[1], [0], [0], [1], [0, 0, 1, 1], [], []>} : vector<320x4xbf16>, vector<4x4xbf16>, vector<320x4xf32> -> vector<320x4xf32>
    %96 = vector.shape_cast %95 : vector<320x4xf32> to vector<10x32x4xf32>
    %97 = vector.extract_strided_slice %96 {offsets = [0, 2, 0], sizes = [8, 16, 4], strides = [1, 1, 1]} : vector<10x32x4xf32> to vector<8x16x4xf32>
    %98 = arith.addf %92, %97 : vector<8x16x4xf32>
    %c1_82 = arith.constant 1 : index
    %c0_83 = arith.constant 0 : index
    %c0_84 = arith.constant 0 : index
    %c0_85 = arith.constant 0 : index
    %99 = vector.load %arg5[%c1_82, %c0_83, %c0_84, %c0_85] : memref<3x3x4x4xbf16, #tpu.memory_space<vmem>>, vector<1x1x4x4xbf16>
    %100 = vector.shape_cast %99 : vector<1x1x4x4xbf16> to vector<4x4xbf16>
    %cst_86 = arith.constant dense<0.000000e+00> : vector<320x4xf32>
    %101 = tpu.matmul %79, %100, %cst_86 {dimension_numbers = #tpu.dot_dimension_numbers<[1], [0], [0], [1], [0, 0, 1, 1], [], []>} : vector<320x4xbf16>, vector<4x4xbf16>, vector<320x4xf32> -> vector<320x4xf32>
    %102 = vector.shape_cast %101 : vector<320x4xf32> to vector<10x32x4xf32>
    %103 = vector.extract_strided_slice %102 {offsets = [1, 0, 0], sizes = [8, 16, 4], strides = [1, 1, 1]} : vector<10x32x4xf32> to vector<8x16x4xf32>
    %104 = arith.addf %98, %103 : vector<8x16x4xf32>
    %c1_87 = arith.constant 1 : index
    %c1_88 = arith.constant 1 : index
    %c0_89 = arith.constant 0 : index
    %c0_90 = arith.constant 0 : index
    %105 = vector.load %arg5[%c1_87, %c1_88, %c0_89, %c0_90] : memref<3x3x4x4xbf16, #tpu.memory_space<vmem>>, vector<1x1x4x4xbf16>
    %106 = vector.shape_cast %105 : vector<1x1x4x4xbf16> to vector<4x4xbf16>
    %cst_91 = arith.constant dense<0.000000e+00> : vector<320x4xf32>
    %107 = tpu.matmul %79, %106, %cst_91 {dimension_numbers = #tpu.dot_dimension_numbers<[1], [0], [0], [1], [0, 0, 1, 1], [], []>} : vector<320x4xbf16>, vector<4x4xbf16>, vector<320x4xf32> -> vector<320x4xf32>
    %108 = vector.shape_cast %107 : vector<320x4xf32> to vector<10x32x4xf32>
    %109 = vector.extract_strided_slice %108 {offsets = [1, 1, 0], sizes = [8, 16, 4], strides = [1, 1, 1]} : vector<10x32x4xf32> to vector<8x16x4xf32>
    %110 = arith.addf %104, %109 : vector<8x16x4xf32>
    %c1_92 = arith.constant 1 : index
    %c2_93 = arith.constant 2 : index
    %c0_94 = arith.constant 0 : index
    %c0_95 = arith.constant 0 : index
    %111 = vector.load %arg5[%c1_92, %c2_93, %c0_94, %c0_95] : memref<3x3x4x4xbf16, #tpu.memory_space<vmem>>, vector<1x1x4x4xbf16>
    %112 = vector.shape_cast %111 : vector<1x1x4x4xbf16> to vector<4x4xbf16>
    %cst_96 = arith.constant dense<0.000000e+00> : vector<320x4xf32>
    %113 = tpu.matmul %79, %112, %cst_96 {dimension_numbers = #tpu.dot_dimension_numbers<[1], [0], [0], [1], [0, 0, 1, 1], [], []>} : vector<320x4xbf16>, vector<4x4xbf16>, vector<320x4xf32> -> vector<320x4xf32>
    %114 = vector.shape_cast %113 : vector<320x4xf32> to vector<10x32x4xf32>
    %115 = vector.extract_strided_slice %114 {offsets = [1, 2, 0], sizes = [8, 16, 4], strides = [1, 1, 1]} : vector<10x32x4xf32> to vector<8x16x4xf32>
    %116 = arith.addf %110, %115 : vector<8x16x4xf32>
    %c2_97 = arith.constant 2 : index
    %c0_98 = arith.constant 0 : index
    %c0_99 = arith.constant 0 : index
    %c0_100 = arith.constant 0 : index
    %117 = vector.load %arg5[%c2_97, %c0_98, %c0_99, %c0_100] : memref<3x3x4x4xbf16, #tpu.memory_space<vmem>>, vector<1x1x4x4xbf16>
    %118 = vector.shape_cast %117 : vector<1x1x4x4xbf16> to vector<4x4xbf16>
    %cst_101 = arith.constant dense<0.000000e+00> : vector<320x4xf32>
    %119 = tpu.matmul %79, %118, %cst_101 {dimension_numbers = #tpu.dot_dimension_numbers<[1], [0], [0], [1], [0, 0, 1, 1], [], []>} : vector<320x4xbf16>, vector<4x4xbf16>, vector<320x4xf32> -> vector<320x4xf32>
    %120 = vector.shape_cast %119 : vector<320x4xf32> to vector<10x32x4xf32>
    %121 = vector.extract_strided_slice %120 {offsets = [2, 0, 0], sizes = [8, 16, 4], strides = [1, 1, 1]} : vector<10x32x4xf32> to vector<8x16x4xf32>
    %122 = arith.addf %116, %121 : vector<8x16x4xf32>
    %c2_102 = arith.constant 2 : index
    %c1_103 = arith.constant 1 : index
    %c0_104 = arith.constant 0 : index
    %c0_105 = arith.constant 0 : index
    %123 = vector.load %arg5[%c2_102, %c1_103, %c0_104, %c0_105] : memref<3x3x4x4xbf16, #tpu.memory_space<vmem>>, vector<1x1x4x4xbf16>
    %124 = vector.shape_cast %123 : vector<1x1x4x4xbf16> to vector<4x4xbf16>
    %cst_106 = arith.constant dense<0.000000e+00> : vector<320x4xf32>
    %125 = tpu.matmul %79, %124, %cst_106 {dimension_numbers = #tpu.dot_dimension_numbers<[1], [0], [0], [1], [0, 0, 1, 1], [], []>} : vector<320x4xbf16>, vector<4x4xbf16>, vector<320x4xf32> -> vector<320x4xf32>
    %126 = vector.shape_cast %125 : vector<320x4xf32> to vector<10x32x4xf32>
    %127 = vector.extract_strided_slice %126 {offsets = [2, 1, 0], sizes = [8, 16, 4], strides = [1, 1, 1]} : vector<10x32x4xf32> to vector<8x16x4xf32>
    %128 = arith.addf %122, %127 : vector<8x16x4xf32>
    %c2_107 = arith.constant 2 : index
    %c2_108 = arith.constant 2 : index
    %c0_109 = arith.constant 0 : index
    %c0_110 = arith.constant 0 : index
    %129 = vector.load %arg5[%c2_107, %c2_108, %c0_109, %c0_110] : memref<3x3x4x4xbf16, #tpu.memory_space<vmem>>, vector<1x1x4x4xbf16>
    %130 = vector.shape_cast %129 : vector<1x1x4x4xbf16> to vector<4x4xbf16>
    %cst_111 = arith.constant dense<0.000000e+00> : vector<320x4xf32>
    %131 = tpu.matmul %79, %130, %cst_111 {dimension_numbers = #tpu.dot_dimension_numbers<[1], [0], [0], [1], [0, 0, 1, 1], [], []>} : vector<320x4xbf16>, vector<4x4xbf16>, vector<320x4xf32> -> vector<320x4xf32>
    %132 = vector.shape_cast %131 : vector<320x4xf32> to vector<10x32x4xf32>
    %133 = vector.extract_strided_slice %132 {offsets = [2, 2, 0], sizes = [8, 16, 4], strides = [1, 1, 1]} : vector<10x32x4xf32> to vector<8x16x4xf32>
    %134 = arith.addf %128, %133 : vector<8x16x4xf32>
    %135 = vector.extract_strided_slice %1 {offsets = [2, 1, 0], sizes = [8, 16, 4], strides = [1, 1, 1]} : vector<12x32x4xbf16> to vector<8x16x4xbf16>
    %136 = arith.extf %135 : vector<8x16x4xbf16> to vector<8x16x4xf32>
    %c0_112 = arith.constant 0 : index
    %c0_113 = arith.constant 0 : index
    %137 = vector.load %arg6[%c0_112, %c0_113] : memref<1x4xf32, #tpu.memory_space<vmem>>, vector<1x4xf32>
    %138 = vector.shape_cast %137 : vector<1x4xf32> to vector<1x1x4xf32>
    %139 = vector.broadcast %138 : vector<1x1x4xf32> to vector<8x16x4xf32>
    %140 = arith.addf %134, %139 : vector<8x16x4xf32>
    %141 = arith.addf %140, %136 : vector<8x16x4xf32>
    %c0_114 = arith.constant 0 : index
    %c0_115 = arith.constant 0 : index
    %c0_116 = arith.constant 0 : index
    %c0_117 = arith.constant 0 : index
    %142 = vector.load %arg7[%c0_114, %c0_115, %c0_116, %c0_117] : memref<1x8x16x4xf32, #tpu.memory_space<vmem>>, vector<1x8x16x4xf32>
    %143 = vector.shape_cast %142 : vector<1x8x16x4xf32> to vector<8x16x4xf32>
    %144 = vector.shape_cast %141 : vector<8x16x4xf32> to vector<1x8x16x4xf32>
    tpu.vector_store %arg7[%c0_114, %c0_115, %c0_116, %c0_117], %144 {strides = array<i32>} : memref<1x8x16x4xf32, #tpu.memory_space<vmem>>, vector<1x8x16x4xf32>,
    return
  }
  func.func @transform_0(%arg0: i32, %arg1: i32) -> (i32, i32, i32, i32, i32) {
    %c0_i32 = arith.constant 0 : i32
    %c0_i32_0 = arith.constant 0 : i32
    %c0_i32_1 = arith.constant 0 : i32
    %c0_i32_2 = arith.constant 0 : i32
    return %arg0, %arg1, %c0_i32, %c0_i32_0, %c0_i32_1 : i32, i32, i32, i32, i32
  }
  func.func @transform_1(%arg0: i32, %arg1: i32) -> (i32, i32, i32, i32) {
    %c0_i32 = arith.constant 0 : i32
    %c0_i32_0 = arith.constant 0 : i32
    %c0_i32_1 = arith.constant 0 : i32
    %c0_i32_2 = arith.constant 0 : i32
    %c0_i32_3 = arith.constant 0 : i32
    return %c0_i32, %c0_i32_0, %c0_i32_1, %c0_i32_2 : i32, i32, i32, i32
  }
  func.func @transform_2(%arg0: i32, %arg1: i32) -> (i32, i32) {
    %c0_i32 = arith.constant 0 : i32
    %c0_i32_0 = arith.constant 0 : i32
    %c0_i32_1 = arith.constant 0 : i32
    return %c0_i32, %c0_i32_0 : i32, i32
  }
  func.func @transform_3(%arg0: i32, %arg1: i32) -> (i32, i32, i32, i32) {
    %c0_i32 = arith.constant 0 : i32
    %c0_i32_0 = arith.constant 0 : i32
    %c0_i32_1 = arith.constant 0 : i32
    %c0_i32_2 = arith.constant 0 : i32
    %c0_i32_3 = arith.constant 0 : i32
    return %c0_i32, %c0_i32_0, %c0_i32_1, %c0_i32_2 : i32, i32, i32, i32
  }
  func.func @transform_4(%arg0: i32, %arg1: i32) -> (i32, i32) {
    %c0_i32 = arith.constant 0 : i32
    %c0_i32_0 = arith.constant 0 : i32
    %c0_i32_1 = arith.constant 0 : i32
    return %c0_i32, %c0_i32_0 : i32, i32
  }
  func.func @transform_5(%arg0: i32, %arg1: i32) -> (i32, i32, i32, i32) {
    %c0_i32 = arith.constant 0 : i32
    %c0_i32_0 = arith.constant 0 : i32
    %c0_i32_1 = arith.constant 0 : i32
    return %arg0, %arg1, %c0_i32, %c0_i32_0 : i32, i32, i32, i32
  }
}

</mosaic_0001>

<llo_original>
// kernel: resnet_block_forward.1
$region0: #{resnet_block_forward.1}
  #allocation0 [shape = 'u32[]', space=smem, size = 0x4, offset = 0x4, fixed_abs, tag = 'smem constant byte address 0x4 - core index']
  #allocation1 [shape = 'u32[72,128]{1,0:T(1,128)}', space=vmem, size = 0x9000, scoped, tag = 'internal scratch']
  #allocation2 [shape = 'bf16[10,32,4]{2,1,0:T(8,128)(2,1)}', space=vmem, size = 0x14000, scoped, tag = 'scratch operand']
  %s0 = inlined_call_operand.vmem [shape: bf16[2,2,12,32,4], index: 0, kind: input, shape index: {}]
  %s1 = inlined_call_operand.vmem [shape: bf16[3,3,4,4], index: 1, kind: input, shape index: {}]
  %s2 = inlined_call_operand.vmem [shape: f32[1,4], index: 2, kind: input, shape index: {}]
  %s3 = inlined_call_operand.vmem [shape: bf16[3,3,4,4], index: 3, kind: input, shape index: {}]
  %s4 = inlined_call_operand.vmem [shape: f32[1,4], index: 4, kind: input, shape index: {}]
  %s5 = inlined_call_operand.vmem [shape: f32[2,16,16,4], index: 5, kind: output, shape index: {}]
  %s6 = sld [smem:[#allocation0]]
  $region61: #{resnet_block_forward.1} parent=0
    _
  %s8 = ssub.s32 1, %s6
  %s9 = scalar_select 0, %s8, %s6
  loop: start=0, step=1, limit=6
  $region2: #{resnet_block_forward.1} parent=0 // loop_pre_header
    _
  $region3: #{resnet_block_forward.1} parent=0 // loop_header
    %s11 = sphi 0, %s15
    %p12 = scmp.ge.s32.totalorder %s11, 6
    %s18 = sphi 0, %s30
    %s19 = sphi 0, %s26
    %s20 = sphi 0, %s18
    %s21 = sphi 0, %s19
    %s22 = sphi 0, %s20
    %s23 = sphi 0, %s21
    %s35 = sphi 0, %s37
    %s38 = sphi 0, %s35
    %s39 = sphi 0, %s38
    %s55 = sphi 0, %s39
    %s59 = sphi 0, %s59
    %s61 = sphi 0, %s59
    %s62 = sphi 0, %s61
    %s76 = sphi 0, %s62
    %s80 = sphi 0, %s80
    %s82 = sphi 0, %s80
    %s83 = sphi 0, %s82
    %s97 = sphi 0, %s83
    %s101 = sphi 0, %s101
    %s103 = sphi 0, %s101
    %s104 = sphi 0, %s103
    %s118 = sphi 0, %s104
    %s122 = sphi 0, %s122
    %s124 = sphi 0, %s122
    %s125 = sphi 0, %s124
    %s139 = sphi 0, %s125
    %s147 = sphi 0, %s149
    %s150 = sphi 0, %s147
    %s151 = sphi 0, %s150
    %s167 = sphi 0, %s151
  $region4: #{resnet_block_forward.1} parent=0 // loop_header_branch
    %14 = sbr.rel (%p12) target = $region8
  $region5: #{resnet_block_forward.1} parent=0 // loop_body
    %s16 = ssub.s32 %s11, 1
    %s17 = ssub.s32 %s11, 2
    %s24 = sadd.s32 1, %s19
    %p25 = scmp.ge.s32.totalorder %s24, 2
    %s26 = scalar_select %p25, 0, %s24
    %s27 = sadd.s32 1, %s18
    %s28 = scalar_select %p25, %s27, %s18
    %p29 = scmp.ge.s32.totalorder %s28, 2
    %s30 = scalar_select %p29, 0, %s28
    %s31 = ssub.s32 %s18, %s30
    %s32 = ssub.s32 %s19, %s26
    %s33 = sor.u32 %s31, %s32
    %p34 = scmp.eq.s32.totalorder %s33, 0
    %s36 = sadd.s32 %s35, 1
    %s37 = scalar_select %p34, %s35, %s36
    %p40 = pneg %p34
    %p41 = scmp.eq.s32.totalorder %s11, 3
    %p42 = por %p40, %p41
    %p43 = scmp.ne.s32.totalorder %s35, %s38
    %p44 = scmp.eq.s32.totalorder %s11, 0
    %p45 = por %p43, %p44
    %p46 = scmp.ne.s32.totalorder %s35, %s38
    %p47 = scmp.eq.s32.totalorder %s16, 3
    %p48 = por %p46, %p47
    %p49 = scmp.ne.s32.totalorder %s38, %s39
    %p50 = scmp.eq.s32.totalorder %s16, 0
    %p51 = por %p49, %p50
    %p52 = scmp.ne.s32.totalorder %s38, %s39
    %p53 = scmp.eq.s32.totalorder %s17, 3
    %p54 = por %p52, %p53
    %p56 = scmp.ne.s32.totalorder %s39, %s55
    %p57 = scmp.eq.s32.totalorder %s17, 0
    %p58 = por %p56, %p57
    %s60 = sadd.s32 %s59, 1
    %p63 = scmp.eq.s32.totalorder %s11, 3
    %p64 = scmp.ne.s32.totalorder %s59, %s61
    %p65 = scmp.eq.s32.totalorder %s11, 0
    %p66 = por %p64, %p65
    %p67 = scmp.ne.s32.totalorder %s59, %s61
    %p68 = scmp.eq.s32.totalorder %s16, 3
    %p69 = por %p67, %p68
    %p70 = scmp.ne.s32.totalorder %s61, %s62
    %p71 = scmp.eq.s32.totalorder %s16, 0
    %p72 = por %p70, %p71
    %p73 = scmp.ne.s32.totalorder %s61, %s62
    %p74 = scmp.eq.s32.totalorder %s17, 3
    %p75 = por %p73, %p74
    %p77 = scmp.ne.s32.totalorder %s62, %s76
    %p78 = scmp.eq.s32.totalorder %s17, 0
    %p79 = por %p77, %p78
    %s81 = sadd.s32 %s80, 1
    %p84 = scmp.eq.s32.totalorder %s11, 3
    %p85 = scmp.ne.s32.totalorder %s80, %s82
    %p86 = scmp.eq.s32.totalorder %s11, 0
    %p87 = por %p85, %p86
    %p88 = scmp.ne.s32.totalorder %s80, %s82
    %p89 = scmp.eq.s32.totalorder %s16, 3
    %p90 = por %p88, %p89
    %p91 = scmp.ne.s32.totalorder %s82, %s83
    %p92 = scmp.eq.s32.totalorder %s16, 0
    %p93 = por %p91, %p92
    %p94 = scmp.ne.s32.totalorder %s82, %s83
    %p95 = scmp.eq.s32.totalorder %s17, 3
    %p96 = por %p94, %p95
    %p98 = scmp.ne.s32.totalorder %s83, %s97
    %p99 = scmp.eq.s32.totalorder %s17, 0
    %p100 = por %p98, %p99
    %s102 = sadd.s32 %s101, 1
    %p105 = scmp.eq.s32.totalorder %s11, 3
    %p106 = scmp.ne.s32.totalorder %s101, %s103
    %p107 = scmp.eq.s32.totalorder %s11, 0
    %p108 = por %p106, %p107
    %p109 = scmp.ne.s32.totalorder %s101, %s103
    %p110 = scmp.eq.s32.totalorder %s16, 3
    %p111 = por %p109, %p110
    %p112 = scmp.ne.s32.totalorder %s103, %s104
    %p113 = scmp.eq.s32.totalorder %s16, 0
    %p114 = por %p112, %p113
    %p115 = scmp.ne.s32.totalorder %s103, %s104
    %p116 = scmp.eq.s32.totalorder %s17, 3
    %p117 = por %p115, %p116
    %p119 = scmp.ne.s32.totalorder %s104, %s118
    %p120 = scmp.eq.s32.totalorder %s17, 0
    %p121 = por %p119, %p120
    %s123 = sadd.s32 %s122, 1
    %p126 = scmp.eq.s32.totalorder %s11, 3
    %p127 = scmp.ne.s32.totalorder %s122, %s124
    %p128 = scmp.eq.s32.totalorder %s11, 0
    %p129 = por %p127, %p128
    %p130 = scmp.ne.s32.totalorder %s122, %s124
    %p131 = scmp.eq.s32.totalorder %s16, 3
    %p132 = por %p130, %p131
    %p133 = scmp.ne.s32.totalorder %s124, %s125
    %p134 = scmp.eq.s32.totalorder %s16, 0
    %p135 = por %p133, %p134
    %p136 = scmp.ne.s32.totalorder %s124, %s125
    %p137 = scmp.eq.s32.totalorder %s17, 3
    %p138 = por %p136, %p137
    %p140 = scmp.ne.s32.totalorder %s125, %s139
    %p141 = scmp.eq.s32.totalorder %s17, 0
    %p142 = por %p140, %p141
    %s143 = ssub.s32 %s18, %s30
    %s144 = ssub.s32 %s19, %s26
    %s145 = sor.u32 %s143, %s144
    %p146 = scmp.eq.s32.totalorder %s145, 0
    %s148 = sadd.s32 %s147, 1
    %s149 = scalar_select %p146, %s147, %s148
    %p152 = pneg %p146
    %p153 = scmp.eq.s32.totalorder %s11, 3
    %p154 = por %p152, %p153
    %p155 = scmp.ne.s32.totalorder %s147, %s150
    %p156 = scmp.eq.s32.totalorder %s11, 0
    %p157 = por %p155, %p156
    %p158 = scmp.ne.s32.totalorder %s147, %s150
    %p159 = scmp.eq.s32.totalorder %s16, 3
    %p160 = por %p158, %p159
    %p161 = scmp.ne.s32.totalorder %s150, %s151
    %p162 = scmp.eq.s32.totalorder %s16, 0
    %p163 = por %p161, %p162
    %p164 = scmp.ne.s32.totalorder %s150, %s151
    %p165 = scmp.eq.s32.totalorder %s17, 3
    %p166 = por %p164, %p165
    %p168 = scmp.ne.s32.totalorder %s151, %s167
    %p169 = scmp.eq.s32.totalorder %s17, 0
    %p170 = por %p168, %p169
    %p171 = scmp.le.s32.totalorder 1, %s11
    %p172 = scmp.lt.s32.totalorder %s11, 5
    %p173 = pnand %p171, %p172
    %p174 = pneg %p173
    // Predicated region
    $region9: #{resnet_block_forward.1} parent=5 // pred_check
      _
    $region10: #{resnet_block_forward.1} parent=5 // pred_check_branch
      %176 = sbr.rel (%p173) target = $region12
    $region11: #{resnet_block_forward.1} parent=5 // pred_region
      %s177 = ssub.s32 %s11, 1
      // Predicated region
      $region13: #{resnet_block_forward.1} parent=11 // pred_check
        %p178 = pneg %p72
      $region14: #{resnet_block_forward.1} parent=11 // pred_check_branch
        %180 = sbr.rel (%p178) target = $region16
      $region15: #{resnet_block_forward.1} parent=11 // pred_region
        _
      $region16: #{resnet_block_forward.1} parent=11 // pred_fallthru
        _
      // Predicated region
      $region17: #{resnet_block_forward.1} parent=11 // pred_check
        %p181 = pneg %p93
      $region18: #{resnet_block_forward.1} parent=11 // pred_check_branch
        %183 = sbr.rel (%p181) target = $region20
      $region19: #{resnet_block_forward.1} parent=11 // pred_region
        _
      $region20: #{resnet_block_forward.1} parent=11 // pred_fallthru
        _
      // Predicated region
      $region21: #{resnet_block_forward.1} parent=11 // pred_check
        %p184 = pneg %p114
      $region22: #{resnet_block_forward.1} parent=11 // pred_check_branch
        %186 = sbr.rel (%p184) target = $region24
      $region23: #{resnet_block_forward.1} parent=11 // pred_region
        _
      $region24: #{resnet_block_forward.1} parent=11 // pred_fallthru
        _
      // Predicated region
      $region25: #{resnet_block_forward.1} parent=11 // pred_check
        %p187 = pneg %p135
      $region26: #{resnet_block_forward.1} parent=11 // pred_check_branch
        %189 = sbr.rel (%p187) target = $region28
      $region27: #{resnet_block_forward.1} parent=11 // pred_region
        _
      $region28: #{resnet_block_forward.1} parent=11 // pred_fallthru
        _
    $region12: #{resnet_block_forward.1} parent=5 // pred_fallthru
      _
    %p190 = scmp.lt.s32.totalorder %s11, 4
    // Predicated region
    $region29: #{resnet_block_forward.1} parent=5 // pred_check
      %p191 = pneg %p190
    $region30: #{resnet_block_forward.1} parent=5 // pred_check_branch
      %193 = sbr.rel (%p191) target = $region32
    $region31: #{resnet_block_forward.1} parent=5 // pred_region
      // Predicated region
      $region33: #{resnet_block_forward.1} parent=31 // pred_check
        %p194 = pneg %p45
      $region34: #{resnet_block_forward.1} parent=31 // pred_check_branch
        %196 = sbr.rel (%p194) target = $region36
      $region35: #{resnet_block_forward.1} parent=31 // pred_region
        %p197 = scmp.lt.s32.totalorder %s18, 1
        %s198 = scalar_select %p197, %s18, 1
        %p199 = scmp.lt.s32.totalorder %s19, 1
        %s200 = scalar_select %p199, %s19, 1
        %s201 = smul.addr %s200, 48
        %s202 = smul.addr %s198, 96
        %s203 = sadd.s32 %s201, %s202
        %s204 = smul.addr %s203, 4
        %s205 = scalar_lea.vmem %s0, %s204
      $region36: #{resnet_block_forward.1} parent=31 // pred_fallthru
        _
    $region32: #{resnet_block_forward.1} parent=5 // pred_fallthru
      _
    %p206 = scmp.le.s32.totalorder 1, %s11
    %p207 = scmp.lt.s32.totalorder %s11, 5
    %p208 = pnand %p206, %p207
    %p209 = pneg %p208
    // Predicated region
    $region37: #{resnet_block_forward.1} parent=5 // pred_check
      _
    $region38: #{resnet_block_forward.1} parent=5 // pred_check_branch
      %211 = sbr.rel (%p208) target = $region40
    $region39: #{resnet_block_forward.1} parent=5 // pred_region
      %s212 = ssub.s32 %s11, 1
      %p213 = scmp.lt.s32.totalorder %s20, 1
      %s214 = scalar_select %p213, %s20, 1
      %p215 = scmp.lt.s32.totalorder %s21, 1
      %s216 = scalar_select %p215, %s21, 1
      %s217 = smul.addr %s216, 48
      %s218 = smul.addr %s214, 96
      %s219 = sadd.s32 %s217, %s218
      %s220 = smul.addr %s219, 4
      %s221 = scalar_lea.vmem %s0, %s220
      %p222 = pneg %p51
      %p223 = pneg %p48
      %p224 = pneg %p72
      %p225 = pneg %p69
      %p226 = pneg %p93
      %p227 = pneg %p90
      %p228 = pneg %p114
      %p229 = pneg %p111
      %p230 = pneg %p135
      %p231 = pneg %p132
      %p232 = pneg %p163
      %p233 = pneg %p160
      %s234 = smul.u32 8, %s21
      %p235 = scmp.lt.s32.totalorder %s20, 1
      %s236 = scalar_select %p235, %s20, 1
      %p237 = scmp.lt.s32.totalorder %s234, 15
      %s238 = scalar_select %p237, %s234, 15
      %s239 = smul.addr %s238, 2
      %s240 = smul.addr %s236, 32
      %s241 = sadd.s32 %s239, %s240
      %s242 = smul.addr %s241, 8
      %s243 = scalar_lea.vmem %s5, %s242
      %p244 = scmp.lt.s32.totalorder %s20, 1
      %s245 = scalar_select %p244, %s20, 1
      %p246 = scmp.lt.s32.totalorder %s21, 1
      %s247 = scalar_select %p246, %s21, 1
      %s248 = smul.addr %s247, 48
      %s249 = smul.addr %s245, 96
      %s250 = sadd.s32 %s248, %s249
      %s251 = smul.addr %s250, 4
      %s252 = scalar_lea.vmem %s0, %s251
      %s253 = smul.u32 8, %s21
      %p254 = scmp.lt.s32.totalorder %s20, 1
      %s255 = scalar_select %p254, %s20, 1
      %p256 = scmp.lt.s32.totalorder %s253, 15
      %s257 = scalar_select %p256, %s253, 15
      %s258 = smul.addr %s257, 2
      %s259 = smul.addr %s255, 32
      %s260 = sadd.s32 %s258, %s259
      %s261 = smul.addr %s260, 8
      %s262 = scalar_lea.vmem %s5, %s261
      %s263 = smul.u32 8, %s21
      %v265 = vld [vmem:[%s252] sm:$0xf]
      %v266 = vld [vmem:[%s252 + $0x4] sm:$0xf]
      %v267 = vld [vmem:[%s252 + $0x8] sm:$0xf]
      %v268 = vld [vmem:[%s252 + $0xc] sm:$0xf]
      %v269 = vld [vmem:[%s252 + $0x10] sm:$0xf]
      %v270 = vld [vmem:[%s252 + $0x14] sm:$0xf]
      %v271 = vld [vmem:[%s252 + $0x18] sm:$0xf]
      %v272 = vld [vmem:[%s252 + $0x1c] sm:$0xf]
      %v273 = vld [vmem:[%s252 + $0x20] sm:$0xf]
      %v274 = vld [vmem:[%s252 + $0x24] sm:$0xf]
      %v275 = vld [vmem:[%s252 + $0x28] sm:$0xf]
      %v276 = vld [vmem:[%s252 + $0x2c] sm:$0xf]
      %v277 = vld [vmem:[%s252 + $0x30] sm:$0xf]
      %v278 = vld [vmem:[%s252 + $0x34] sm:$0xf]
      %v279 = vld [vmem:[%s252 + $0x38] sm:$0xf]
      %v280 = vld [vmem:[%s252 + $0x3c] sm:$0xf]
      %v281 = vld [vmem:[%s252 + $0x40] sm:$0xf]
      %v282 = vld [vmem:[%s252 + $0x44] sm:$0xf]
      %v283 = vld [vmem:[%s252 + $0x48] sm:$0xf]
      %v284 = vld [vmem:[%s252 + $0x4c] sm:$0xf]
      %v285 = vld [vmem:[%s252 + $0x50] sm:$0xf]
      %v286 = vld [vmem:[%s252 + $0x54] sm:$0xf]
      %v287 = vld [vmem:[%s252 + $0x58] sm:$0xf]
      %v288 = vld [vmem:[%s252 + $0x5c] sm:$0xf]
      %v289 = vld [vmem:[%s252 + $0x60] sm:$0xf]
      %v290 = vld [vmem:[%s252 + $0x64] sm:$0xf]
      %v291 = vld [vmem:[%s252 + $0x68] sm:$0xf]
      %v292 = vld [vmem:[%s252 + $0x6c] sm:$0xf]
      %v293 = vld [vmem:[%s252 + $0x70] sm:$0xf]
      %v294 = vld [vmem:[%s252 + $0x74] sm:$0xf]
      %v295 = vld [vmem:[%s252 + $0x78] sm:$0xf]
      %v296 = vld [vmem:[%s252 + $0x7c] sm:$0xf]
      %v297 = vld [vmem:[%s252 + $0x80] sm:$0xf]
      %v298 = vld [vmem:[%s252 + $0x84] sm:$0xf]
      %v299 = vld [vmem:[%s252 + $0x88] sm:$0xf]
      %v300 = vld [vmem:[%s252 + $0x8c] sm:$0xf]
      %v301 = vld [vmem:[%s252 + $0x90] sm:$0xf]
      %v302 = vld [vmem:[%s252 + $0x94] sm:$0xf]
      %v303 = vld [vmem:[%s252 + $0x98] sm:$0xf]
      %v304 = vld [vmem:[%s252 + $0x9c] sm:$0xf]
      %v305 = vld [vmem:[%s252 + $0xa0] sm:$0xf]
      %v306 = vld [vmem:[%s252 + $0xa4] sm:$0xf]
      %v307 = vld [vmem:[%s252 + $0xa8] sm:$0xf]
      %v308 = vld [vmem:[%s252 + $0xac] sm:$0xf]
      %v309 = vld [vmem:[%s252 + $0xb0] sm:$0xf]
      %v310 = vld [vmem:[%s252 + $0xb4] sm:$0xf]
      %v311 = vld [vmem:[%s252 + $0xb8] sm:$0xf]
      %v312 = vld [vmem:[%s252 + $0xbc] sm:$0xf]
      %v313 = vld [vmem:[%s1] sm:$0x3]
      %v362 = vunpack.c.l.b16 %v265
      %v363 = vunpack.c.l.b16 %v266
      %v364 = vunpack.c.l.b16 %v267
      %v365 = vunpack.c.l.b16 %v268
      %v366 = vunpack.c.l.b16 %v269
      %v367 = vunpack.c.l.b16 %v270
      %v368 = vunpack.c.l.b16 %v271
      %v369 = vunpack.c.l.b16 %v272
      %v370 = vunpack.c.l.b16 %v273
      %v371 = vunpack.c.l.b16 %v274
      %v372 = vunpack.c.l.b16 %v275
      %v373 = vunpack.c.l.b16 %v276
      %v374 = vunpack.c.l.b16 %v277
      %v375 = vunpack.c.l.b16 %v278
      %v376 = vunpack.c.l.b16 %v279
      %v377 = vunpack.c.l.b16 %v280
      %v378 = vunpack.c.l.b16 %v281
      %v379 = vunpack.c.l.b16 %v282
      %v380 = vunpack.c.l.b16 %v283
      %v381 = vunpack.c.l.b16 %v284
      %v382 = vunpack.c.l.b16 %v285
      %v383 = vunpack.c.l.b16 %v286
      %v384 = vunpack.c.l.b16 %v287
      %v385 = vunpack.c.l.b16 %v288
      %v386 = vunpack.c.l.b16 %v289
      %v387 = vunpack.c.l.b16 %v290
      %v388 = vunpack.c.l.b16 %v291
      %v389 = vunpack.c.l.b16 %v292
      %v390 = vunpack.c.l.b16 %v293
      %v391 = vunpack.c.l.b16 %v294
      %v392 = vunpack.c.l.b16 %v295
      %v393 = vunpack.c.l.b16 %v296
      %v394 = vunpack.c.l.b16 %v297
      %v395 = vunpack.c.l.b16 %v298
      %v396 = vunpack.c.l.b16 %v299
      %v397 = vunpack.c.l.b16 %v300
      %v398 = vunpack.c.l.b16 %v301
      %v399 = vunpack.c.l.b16 %v302
      %v400 = vunpack.c.l.b16 %v303
      %v401 = vunpack.c.l.b16 %v304
      %v402 = vunpack.c.l.b16 %v305
      %v403 = vunpack.c.l.b16 %v306
      %v404 = vunpack.c.l.b16 %v307
      %v405 = vunpack.c.l.b16 %v308
      %v406 = vunpack.c.l.b16 %v309
      %v407 = vunpack.c.l.b16 %v310
      %v408 = vunpack.c.l.b16 %v311
      %v409 = vunpack.c.l.b16 %v312
      %v410 = vpack.c.b16 %v363, %v362
      %v411 = vpack.c.b16 %v365, %v364
      %v412 = vpack.c.b16 %v367, %v366
      %v413 = vpack.c.b16 %v369, %v368
      %v414 = vpack.c.b16 %v371, %v370
      %v415 = vpack.c.b16 %v373, %v372
      %v416 = vpack.c.b16 %v375, %v374
      %v417 = vpack.c.b16 %v377, %v376
      %v418 = vpack.c.b16 %v379, %v378
      %v419 = vpack.c.b16 %v381, %v380
      %v420 = vpack.c.b16 %v383, %v382
      %v421 = vpack.c.b16 %v385, %v384
      %v422 = vpack.c.b16 %v387, %v386
      %v423 = vpack.c.b16 %v389, %v388
      %v424 = vpack.c.b16 %v391, %v390
      %v425 = vpack.c.b16 %v393, %v392
      %v426 = vpack.c.b16 %v395, %v394
      %v427 = vpack.c.b16 %v397, %v396
      %v428 = vpack.c.b16 %v399, %v398
      %v429 = vpack.c.b16 %v401, %v400
      %v430 = vpack.c.b16 %v403, %v402
      %v431 = vpack.c.b16 %v405, %v404
      %v432 = vpack.c.b16 %v407, %v406
      %v433 = vpack.c.b16 %v409, %v408
      %vm434 = vcmask 31744
      %v436 = vsel %vm434, %v410, 0
      %v439 = vsel %vm434, %v411, 0
      %v442 = vsel %vm434, %v412, 0
      %v445 = vsel %vm434, %v413, 0
      %v448 = vsel %vm434, %v414, 0
      %v451 = vsel %vm434, %v415, 0
      %v454 = vsel %vm434, %v416, 0
      %v457 = vsel %vm434, %v417, 0
      %v460 = vsel %vm434, %v418, 0
      %v463 = vsel %vm434, %v419, 0
      %v466 = vsel %vm434, %v420, 0
      %v469 = vsel %vm434, %v421, 0
      %v472 = vsel %vm434, %v422, 0
      %v475 = vsel %vm434, %v423, 0
      %v478 = vsel %vm434, %v424, 0
      %v481 = vsel %vm434, %v425, 0
      %v484 = vsel %vm434, %v426, 0
      %v487 = vsel %vm434, %v427, 0
      %v490 = vsel %vm434, %v428, 0
      %v493 = vsel %vm434, %v429, 0
      %v496 = vsel %vm434, %v430, 0
      %v499 = vsel %vm434, %v431, 0
      %v502 = vsel %vm434, %v432, 0
      %v505 = vsel %vm434, %v433, 0
      %vm507 = vcmask 1041408
      %v509 = vsel %vm507, %v313, 0
      %511 = vmatpush.bf16.msra.mxu0 0
      %512 = vmatpush.bf16.msra.mxu0 0
      %513 = vmatpush.bf16.msra.mxu0 0
      %514 = vmatpush.bf16.msra.mxu0 0
      %515 = vmatpush.bf16.msra.mxu0 0
      %516 = vmatpush.bf16.msra.mxu0 0
      %517 = vmatpush.bf16.msra.mxu0 0
      %518 = vmatpush.bf16.msra.mxu0 %v509
      %519 = vmatmul.bf16.gmra.mxu0 %v436
      %v520 = vpop.f32.mrf.mxu0
      %v521 = vadd.f32 0.0, %v520
      %v522 = vpop.f32.mrf.mxu0
      %v523 = vadd.f32 0.0, %v522
      %524 = vmatmul.bf16.gmra.mxu0 %v439
      %v525 = vpop.f32.mrf.mxu0
      %v526 = vpop.f32.mrf.mxu0
      %527 = vmatmul.bf16.gmra.mxu0 %v442
      %v528 = vpop.f32.mrf.mxu0
      %v529 = vadd.f32 0.0, %v528
      %v530 = vpop.f32.mrf.mxu0
      %v531 = vadd.f32 0.0, %v530
      %532 = vmatmul.bf16.gmra.mxu0 %v445
      %v533 = vpop.f32.mrf.mxu0
      %v534 = vpop.f32.mrf.mxu0
      %535 = vmatmul.bf16.gmra.mxu0 %v448
      %v536 = vpop.f32.mrf.mxu0
      %v537 = vadd.f32 0.0, %v536
      %v538 = vpop.f32.mrf.mxu0
      %v539 = vadd.f32 0.0, %v538
      %540 = vmatmul.bf16.gmra.mxu0 %v451
      %v541 = vpop.f32.mrf.mxu0
      %v542 = vpop.f32.mrf.mxu0
      %543 = vmatmul.bf16.gmra.mxu0 %v454
      %v544 = vpop.f32.mrf.mxu0
      %v545 = vadd.f32 0.0, %v544
      %v546 = vpop.f32.mrf.mxu0
      %v547 = vadd.f32 0.0, %v546
      %548 = vmatmul.bf16.gmra.mxu0 %v457
      %v549 = vpop.f32.mrf.mxu0
      %v550 = vpop.f32.mrf.mxu0
      %551 = vmatmul.bf16.gmra.mxu0 %v460
      %v552 = vpop.f32.mrf.mxu0
      %v553 = vadd.f32 0.0, %v552
      %v554 = vpop.f32.mrf.mxu0
      %v555 = vadd.f32 0.0, %v554
      %556 = vmatmul.bf16.gmra.mxu0 %v463
      %v557 = vpop.f32.mrf.mxu0
      %v558 = vpop.f32.mrf.mxu0
      %559 = vmatmul.bf16.gmra.mxu0 %v466
      %v560 = vpop.f32.mrf.mxu0
      %v561 = vadd.f32 0.0, %v560
      %v562 = vpop.f32.mrf.mxu0
      %v563 = vadd.f32 0.0, %v562
      %564 = vmatmul.bf16.gmra.mxu0 %v469
      %v565 = vpop.f32.mrf.mxu0
      %v566 = vpop.f32.mrf.mxu0
      %567 = vmatmul.bf16.gmra.mxu0 %v472
      %v568 = vpop.f32.mrf.mxu0
      %v569 = vadd.f32 0.0, %v568
      %v570 = vpop.f32.mrf.mxu0
      %v571 = vadd.f32 0.0, %v570
      %572 = vmatmul.bf16.gmra.mxu0 %v475
      %v573 = vpop.f32.mrf.mxu0
      %v574 = vpop.f32.mrf.mxu0
      %575 = vmatmul.bf16.gmra.mxu0 %v478
      %v576 = vpop.f32.mrf.mxu0
      %v577 = vadd.f32 0.0, %v576
      %v578 = vpop.f32.mrf.mxu0
      %v579 = vadd.f32 0.0, %v578
      %580 = vmatmul.bf16.gmra.mxu0 %v481
      %v581 = vpop.f32.mrf.mxu0
      %v582 = vpop.f32.mrf.mxu0
      %583 = vmatmul.bf16.gmra.mxu0 %v484
      %v584 = vpop.f32.mrf.mxu0
      %v585 = vadd.f32 0.0, %v584
      %v586 = vpop.f32.mrf.mxu0
      %v587 = vadd.f32 0.0, %v586
      %588 = vmatmul.bf16.gmra.mxu0 %v487
      %v589 = vpop.f32.mrf.mxu0
      %v590 = vpop.f32.mrf.mxu0
      %591 = vmatmul.bf16.gmra.mxu0 %v490
      %v592 = vpop.f32.mrf.mxu0
      %v593 = vadd.f32 0.0, %v592
      %v594 = vpop.f32.mrf.mxu0
      %v595 = vadd.f32 0.0, %v594
      %596 = vmatmul.bf16.gmra.mxu0 %v493
      %v597 = vpop.f32.mrf.mxu0
      %v598 = vpop.f32.mrf.mxu0
      %599 = vmatmul.bf16.gmra.mxu0 %v496
      %v600 = vpop.f32.mrf.mxu0
      %v601 = vpop.f32.mrf.mxu0
      %602 = vmatmul.bf16.gmra.mxu0 %v499
      %v603 = vpop.f32.mrf.mxu0
      %v604 = vpop.f32.mrf.mxu0
      %605 = vmatmul.bf16.gmra.mxu0 %v502
      %v606 = vpop.f32.mrf.mxu0
      %v607 = vpop.f32.mrf.mxu0
      %608 = vmatmul.bf16.gmra.mxu0 %v505
      %v609 = vpop.f32.mrf.mxu0
      %v610 = vpop.f32.mrf.mxu0
      %611 = vdwg.mxu0
      %v612 = vadd.f32 %v521, 0.0
      %v613 = vadd.f32 %v523, 0.0
      %v614 = vadd.f32 %v529, 0.0
      %v615 = vadd.f32 %v531, 0.0
      %v616 = vadd.f32 %v537, 0.0
      %v617 = vadd.f32 %v539, 0.0
      %v618 = vadd.f32 %v545, 0.0
      %v619 = vadd.f32 %v547, 0.0
      %v620 = vadd.f32 %v553, 0.0
      %v621 = vadd.f32 %v555, 0.0
      %v622 = vadd.f32 %v561, 0.0
      %v623 = vadd.f32 %v563, 0.0
      %v624 = vadd.f32 %v569, 0.0
      %v625 = vadd.f32 %v571, 0.0
      %v626 = vadd.f32 %v577, 0.0
      %v627 = vadd.f32 %v579, 0.0
      %v628 = vadd.f32 %v585, 0.0
      %v629 = vadd.f32 %v587, 0.0
      %v630 = vadd.f32 %v593, 0.0
      %v631 = vadd.f32 %v595, 0.0
      %s632 = scalar_lea.vmem %s1, 2
      %v633 = vld [vmem:[%s632] sm:$0x3]
      %v635 = vsel %vm507, %v633, 0
      %637 = vmatpush.bf16.msra.mxu0 0
      %638 = vmatpush.bf16.msra.mxu0 0
      %639 = vmatpush.bf16.msra.mxu0 0
      %640 = vmatpush.bf16.msra.mxu0 0
      %641 = vmatpush.bf16.msra.mxu0 0
      %642 = vmatpush.bf16.msra.mxu0 0
      %643 = vmatpush.bf16.msra.mxu0 0
      %644 = vmatpush.bf16.msra.mxu0 %v635
      %645 = vmatmul.bf16.gmra.mxu0 %v436
      %v646 = vpop.f32.mrf.mxu0
      %v647 = vadd.f32 0.0, %v646
      %v648 = vpop.f32.mrf.mxu0
      %v649 = vadd.f32 0.0, %v648
      %650 = vmatmul.bf16.gmra.mxu0 %v439
      %v651 = vpop.f32.mrf.mxu0
      %v652 = vadd.f32 0.0, %v651
      %v653 = vpop.f32.mrf.mxu0
      %654 = vmatmul.bf16.gmra.mxu0 %v442
      %v655 = vpop.f32.mrf.mxu0
      %v656 = vadd.f32 0.0, %v655
      %v657 = vpop.f32.mrf.mxu0
      %v658 = vadd.f32 0.0, %v657
      %659 = vmatmul.bf16.gmra.mxu0 %v445
      %v660 = vpop.f32.mrf.mxu0
      %v661 = vadd.f32 0.0, %v660
      %v662 = vpop.f32.mrf.mxu0
      %663 = vmatmul.bf16.gmra.mxu0 %v448
      %v664 = vpop.f32.mrf.mxu0
      %v665 = vadd.f32 0.0, %v664
      %v666 = vpop.f32.mrf.mxu0
      %v667 = vadd.f32 0.0, %v666
      %668 = vmatmul.bf16.gmra.mxu0 %v451
      %v669 = vpop.f32.mrf.mxu0
      %v670 = vadd.f32 0.0, %v669
      %v671 = vpop.f32.mrf.mxu0
      %672 = vmatmul.bf16.gmra.mxu0 %v454
      %v673 = vpop.f32.mrf.mxu0
      %v674 = vadd.f32 0.0, %v673
      %v675 = vpop.f32.mrf.mxu0
      %v676 = vadd.f32 0.0, %v675
      %677 = vmatmul.bf16.gmra.mxu0 %v457
      %v678 = vpop.f32.mrf.mxu0
      %v679 = vadd.f32 0.0, %v678
      %v680 = vpop.f32.mrf.mxu0
      %681 = vmatmul.bf16.gmra.mxu0 %v460
      %v682 = vpop.f32.mrf.mxu0
      %v683 = vadd.f32 0.0, %v682
      %v684 = vpop.f32.mrf.mxu0
      %v685 = vadd.f32 0.0, %v684
      %686 = vmatmul.bf16.gmra.mxu0 %v463
      %v687 = vpop.f32.mrf.mxu0
      %v688 = vadd.f32 0.0, %v687
      %v689 = vpop.f32.mrf.mxu0
      %690 = vmatmul.bf16.gmra.mxu0 %v466
      %v691 = vpop.f32.mrf.mxu0
      %v692 = vadd.f32 0.0, %v691
      %v693 = vpop.f32.mrf.mxu0
      %v694 = vadd.f32 0.0, %v693
      %695 = vmatmul.bf16.gmra.mxu0 %v469
      %v696 = vpop.f32.mrf.mxu0
      %v697 = vadd.f32 0.0, %v696
      %v698 = vpop.f32.mrf.mxu0
      %699 = vmatmul.bf16.gmra.mxu0 %v472
      %v700 = vpop.f32.mrf.mxu0
      %v701 = vadd.f32 0.0, %v700
      %v702 = vpop.f32.mrf.mxu0
      %v703 = vadd.f32 0.0, %v702
      %704 = vmatmul.bf16.gmra.mxu0 %v475
      %v705 = vpop.f32.mrf.mxu0
      %v706 = vadd.f32 0.0, %v705
      %v707 = vpop.f32.mrf.mxu0
      %708 = vmatmul.bf16.gmra.mxu0 %v478
      %v709 = vpop.f32.mrf.mxu0
      %v710 = vadd.f32 0.0, %v709
      %v711 = vpop.f32.mrf.mxu0
      %v712 = vadd.f32 0.0, %v711
      %713 = vmatmul.bf16.gmra.mxu0 %v481
      %v714 = vpop.f32.mrf.mxu0
      %v715 = vadd.f32 0.0, %v714
      %v716 = vpop.f32.mrf.mxu0
      %717 = vmatmul.bf16.gmra.mxu0 %v484
      %v718 = vpop.f32.mrf.mxu0
      %v719 = vadd.f32 0.0, %v718
      %v720 = vpop.f32.mrf.mxu0
      %v721 = vadd.f32 0.0, %v720
      %722 = vmatmul.bf16.gmra.mxu0 %v487
      %v723 = vpop.f32.mrf.mxu0
      %v724 = vadd.f32 0.0, %v723
      %v725 = vpop.f32.mrf.mxu0
      %726 = vmatmul.bf16.gmra.mxu0 %v490
      %v727 = vpop.f32.mrf.mxu0
      %v728 = vadd.f32 0.0, %v727
      %v729 = vpop.f32.mrf.mxu0
      %v730 = vadd.f32 0.0, %v729
      %731 = vmatmul.bf16.gmra.mxu0 %v493
      %v732 = vpop.f32.mrf.mxu0
      %v733 = vadd.f32 0.0, %v732
      %v734 = vpop.f32.mrf.mxu0
      %735 = vmatmul.bf16.gmra.mxu0 %v496
      %v736 = vpop.f32.mrf.mxu0
      %v737 = vpop.f32.mrf.mxu0
      %738 = vmatmul.bf16.gmra.mxu0 %v499
      %v739 = vpop.f32.mrf.mxu0
      %v740 = vpop.f32.mrf.mxu0
      %741 = vmatmul.bf16.gmra.mxu0 %v502
      %v742 = vpop.f32.mrf.mxu0
      %v743 = vpop.f32.mrf.mxu0
      %744 = vmatmul.bf16.gmra.mxu0 %v505
      %v745 = vpop.f32.mrf.mxu0
      %v746 = vpop.f32.mrf.mxu0
      %747 = vdwg.mxu0
      %vm778 = vcmask 1046528
      %v779 = vrot.slane %v647, 1
      %v780 = vrot.slane %v649, 1
      %v781 = vsel %vm778, %v779, %v780
      %v782 = vrot.slane %v652, 1
      %v783 = vsel %vm778, %v780, %v782
      %v784 = vrot.slane %v656, 1
      %v785 = vrot.slane %v658, 1
      %v786 = vsel %vm778, %v784, %v785
      %v787 = vrot.slane %v661, 1
      %v788 = vsel %vm778, %v785, %v787
      %v789 = vrot.slane %v665, 1
      %v790 = vrot.slane %v667, 1
      %v791 = vsel %vm778, %v789, %v790
      %v792 = vrot.slane %v670, 1
      %v793 = vsel %vm778, %v790, %v792
      %v794 = vrot.slane %v674, 1
      %v795 = vrot.slane %v676, 1
      %v796 = vsel %vm778, %v794, %v795
      %v797 = vrot.slane %v679, 1
      %v798 = vsel %vm778, %v795, %v797
      %v799 = vrot.slane %v683, 1
      %v800 = vrot.slane %v685, 1
      %v801 = vsel %vm778, %v799, %v800
      %v802 = vrot.slane %v688, 1
      %v803 = vsel %vm778, %v800, %v802
      %v804 = vrot.slane %v692, 1
      %v805 = vrot.slane %v694, 1
      %v806 = vsel %vm778, %v804, %v805
      %v807 = vrot.slane %v697, 1
      %v808 = vsel %vm778, %v805, %v807
      %v809 = vrot.slane %v701, 1
      %v810 = vrot.slane %v703, 1
      %v811 = vsel %vm778, %v809, %v810
      %v812 = vrot.slane %v706, 1
      %v813 = vsel %vm778, %v810, %v812
      %v814 = vrot.slane %v710, 1
      %v815 = vrot.slane %v712, 1
      %v816 = vsel %vm778, %v814, %v815
      %v817 = vrot.slane %v715, 1
      %v818 = vsel %vm778, %v815, %v817
      %v819 = vrot.slane %v719, 1
      %v820 = vrot.slane %v721, 1
      %v821 = vsel %vm778, %v819, %v820
      %v822 = vrot.slane %v724, 1
      %v823 = vsel %vm778, %v820, %v822
      %v824 = vrot.slane %v728, 1
      %v825 = vrot.slane %v730, 1
      %v826 = vsel %vm778, %v824, %v825
      %v827 = vrot.slane %v733, 1
      %v828 = vsel %vm778, %v825, %v827
      %v849 = vadd.f32 %v612, %v781
      %v850 = vadd.f32 %v613, %v783
      %v851 = vadd.f32 %v614, %v786
      %v852 = vadd.f32 %v615, %v788
      %v853 = vadd.f32 %v616, %v791
      %v854 = vadd.f32 %v617, %v793
      %v855 = vadd.f32 %v618, %v796
      %v856 = vadd.f32 %v619, %v798
      %v857 = vadd.f32 %v620, %v801
      %v858 = vadd.f32 %v621, %v803
      %v859 = vadd.f32 %v622, %v806
      %v860 = vadd.f32 %v623, %v808
      %v861 = vadd.f32 %v624, %v811
      %v862 = vadd.f32 %v625, %v813
      %v863 = vadd.f32 %v626, %v816
      %v864 = vadd.f32 %v627, %v818
      %v865 = vadd.f32 %v628, %v821
      %v866 = vadd.f32 %v629, %v823
      %v867 = vadd.f32 %v630, %v826
      %v868 = vadd.f32 %v631, %v828
      %s869 = scalar_lea.vmem %s1, 4
      %v870 = vld [vmem:[%s869] sm:$0x3]
      %v872 = vsel %vm507, %v870, 0
      %874 = vmatpush.bf16.msra.mxu0 0
      %875 = vmatpush.bf16.msra.mxu0 0
      %876 = vmatpush.bf16.msra.mxu0 0
      %877 = vmatpush.bf16.msra.mxu0 0
      %878 = vmatpush.bf16.msra.mxu0 0
      %879 = vmatpush.bf16.msra.mxu0 0
      %880 = vmatpush.bf16.msra.mxu0 0
      %881 = vmatpush.bf16.msra.mxu0 %v872
      %882 = vmatmul.bf16.gmra.mxu0 %v436
      %v883 = vpop.f32.mrf.mxu0
      %v884 = vadd.f32 0.0, %v883
      %v885 = vpop.f32.mrf.mxu0
      %v886 = vadd.f32 0.0, %v885
      %887 = vmatmul.bf16.gmra.mxu0 %v439
      %v888 = vpop.f32.mrf.mxu0
      %v889 = vadd.f32 0.0, %v888
      %v890 = vpop.f32.mrf.mxu0
      %891 = vmatmul.bf16.gmra.mxu0 %v442
      %v892 = vpop.f32.mrf.mxu0
      %v893 = vadd.f32 0.0, %v892
      %v894 = vpop.f32.mrf.mxu0
      %v895 = vadd.f32 0.0, %v894
      %896 = vmatmul.bf16.gmra.mxu0 %v445
      %v897 = vpop.f32.mrf.mxu0
      %v898 = vadd.f32 0.0, %v897
      %v899 = vpop.f32.mrf.mxu0
      %900 = vmatmul.bf16.gmra.mxu0 %v448
      %v901 = vpop.f32.mrf.mxu0
      %v902 = vadd.f32 0.0, %v901
      %v903 = vpop.f32.mrf.mxu0
      %v904 = vadd.f32 0.0, %v903
      %905 = vmatmul.bf16.gmra.mxu0 %v451
      %v906 = vpop.f32.mrf.mxu0
      %v907 = vadd.f32 0.0, %v906
      %v908 = vpop.f32.mrf.mxu0
      %909 = vmatmul.bf16.gmra.mxu0 %v454
      %v910 = vpop.f32.mrf.mxu0
      %v911 = vadd.f32 0.0, %v910
      %v912 = vpop.f32.mrf.mxu0
      %v913 = vadd.f32 0.0, %v912
      %914 = vmatmul.bf16.gmra.mxu0 %v457
      %v915 = vpop.f32.mrf.mxu0
      %v916 = vadd.f32 0.0, %v915
      %v917 = vpop.f32.mrf.mxu0
      %918 = vmatmul.bf16.gmra.mxu0 %v460
      %v919 = vpop.f32.mrf.mxu0
      %v920 = vadd.f32 0.0, %v919
      %v921 = vpop.f32.mrf.mxu0
      %v922 = vadd.f32 0.0, %v921
      %923 = vmatmul.bf16.gmra.mxu0 %v463
      %v924 = vpop.f32.mrf.mxu0
      %v925 = vadd.f32 0.0, %v924
      %v926 = vpop.f32.mrf.mxu0
      %927 = vmatmul.bf16.gmra.mxu0 %v466
      %v928 = vpop.f32.mrf.mxu0
      %v929 = vadd.f32 0.0, %v928
      %v930 = vpop.f32.mrf.mxu0
      %v931 = vadd.f32 0.0, %v930
      %932 = vmatmul.bf16.gmra.mxu0 %v469
      %v933 = vpop.f32.mrf.mxu0
      %v934 = vadd.f32 0.0, %v933
      %v935 = vpop.f32.mrf.mxu0
      %936 = vmatmul.bf16.gmra.mxu0 %v472
      %v937 = vpop.f32.mrf.mxu0
      %v938 = vadd.f32 0.0, %v937
      %v939 = vpop.f32.mrf.mxu0
      %v940 = vadd.f32 0.0, %v939
      %941 = vmatmul.bf16.gmra.mxu0 %v475
      %v942 = vpop.f32.mrf.mxu0
      %v943 = vadd.f32 0.0, %v942
      %v944 = vpop.f32.mrf.mxu0
      %945 = vmatmul.bf16.gmra.mxu0 %v478
      %v946 = vpop.f32.mrf.mxu0
      %v947 = vadd.f32 0.0, %v946
      %v948 = vpop.f32.mrf.mxu0
      %v949 = vadd.f32 0.0, %v948
      %950 = vmatmul.bf16.gmra.mxu0 %v481
      %v951 = vpop.f32.mrf.mxu0
      %v952 = vadd.f32 0.0, %v951
      %v953 = vpop.f32.mrf.mxu0
      %954 = vmatmul.bf16.gmra.mxu0 %v484
      %v955 = vpop.f32.mrf.mxu0
      %v956 = vadd.f32 0.0, %v955
      %v957 = vpop.f32.mrf.mxu0
      %v958 = vadd.f32 0.0, %v957
      %959 = vmatmul.bf16.gmra.mxu0 %v487
      %v960 = vpop.f32.mrf.mxu0
      %v961 = vadd.f32 0.0, %v960
      %v962 = vpop.f32.mrf.mxu0
      %963 = vmatmul.bf16.gmra.mxu0 %v490
      %v964 = vpop.f32.mrf.mxu0
      %v965 = vadd.f32 0.0, %v964
      %v966 = vpop.f32.mrf.mxu0
      %v967 = vadd.f32 0.0, %v966
      %968 = vmatmul.bf16.gmra.mxu0 %v493
      %v969 = vpop.f32.mrf.mxu0
      %v970 = vadd.f32 0.0, %v969
      %v971 = vpop.f32.mrf.mxu0
      %972 = vmatmul.bf16.gmra.mxu0 %v496
      %v973 = vpop.f32.mrf.mxu0
      %v974 = vpop.f32.mrf.mxu0
      %975 = vmatmul.bf16.gmra.mxu0 %v499
      %v976 = vpop.f32.mrf.mxu0
      %v977 = vpop.f32.mrf.mxu0
      %978 = vmatmul.bf16.gmra.mxu0 %v502
      %v979 = vpop.f32.mrf.mxu0
      %v980 = vpop.f32.mrf.mxu0
      %981 = vmatmul.bf16.gmra.mxu0 %v505
      %v982 = vpop.f32.mrf.mxu0
      %v983 = vpop.f32.mrf.mxu0
      %984 = vdwg.mxu0
      %vm1015 = vcmask 1045504
      %v1016 = vrot.slane %v884, 2
      %v1017 = vrot.slane %v886, 2
      %v1018 = vsel %vm1015, %v1016, %v1017
      %v1019 = vrot.slane %v889, 2
      %v1020 = vsel %vm1015, %v1017, %v1019
      %v1021 = vrot.slane %v893, 2
      %v1022 = vrot.slane %v895, 2
      %v1023 = vsel %vm1015, %v1021, %v1022
      %v1024 = vrot.slane %v898, 2
      %v1025 = vsel %vm1015, %v1022, %v1024
      %v1026 = vrot.slane %v902, 2
      %v1027 = vrot.slane %v904, 2
      %v1028 = vsel %vm1015, %v1026, %v1027
      %v1029 = vrot.slane %v907, 2
      %v1030 = vsel %vm1015, %v1027, %v1029
      %v1031 = vrot.slane %v911, 2
      %v1032 = vrot.slane %v913, 2
      %v1033 = vsel %vm1015, %v1031, %v1032
      %v1034 = vrot.slane %v916, 2
      %v1035 = vsel %vm1015, %v1032, %v1034
      %v1036 = vrot.slane %v920, 2
      %v1037 = vrot.slane %v922, 2
      %v1038 = vsel %vm1015, %v1036, %v1037
      %v1039 = vrot.slane %v925, 2
      %v1040 = vsel %vm1015, %v1037, %v1039
      %v1041 = vrot.slane %v929, 2
      %v1042 = vrot.slane %v931, 2
      %v1043 = vsel %vm1015, %v1041, %v1042
      %v1044 = vrot.slane %v934, 2
      %v1045 = vsel %vm1015, %v1042, %v1044
      %v1046 = vrot.slane %v938, 2
      %v1047 = vrot.slane %v940, 2
      %v1048 = vsel %vm1015, %v1046, %v1047
      %v1049 = vrot.slane %v943, 2
      %v1050 = vsel %vm1015, %v1047, %v1049
      %v1051 = vrot.slane %v947, 2
      %v1052 = vrot.slane %v949, 2
      %v1053 = vsel %vm1015, %v1051, %v1052
      %v1054 = vrot.slane %v952, 2
      %v1055 = vsel %vm1015, %v1052, %v1054
      %v1056 = vrot.slane %v956, 2
      %v1057 = vrot.slane %v958, 2
      %v1058 = vsel %vm1015, %v1056, %v1057
      %v1059 = vrot.slane %v961, 2
      %v1060 = vsel %vm1015, %v1057, %v1059
      %v1061 = vrot.slane %v965, 2
      %v1062 = vrot.slane %v967, 2
      %v1063 = vsel %vm1015, %v1061, %v1062
      %v1064 = vrot.slane %v970, 2
      %v1065 = vsel %vm1015, %v1062, %v1064
      %v1086 = vadd.f32 %v849, %v1018
      %v1087 = vadd.f32 %v850, %v1020
      %v1088 = vadd.f32 %v851, %v1023
      %v1089 = vadd.f32 %v852, %v1025
      %v1090 = vadd.f32 %v853, %v1028
      %v1091 = vadd.f32 %v854, %v1030
      %v1092 = vadd.f32 %v855, %v1033
      %v1093 = vadd.f32 %v856, %v1035
      %v1094 = vadd.f32 %v857, %v1038
      %v1095 = vadd.f32 %v858, %v1040
      %v1096 = vadd.f32 %v859, %v1043
      %v1097 = vadd.f32 %v860, %v1045
      %v1098 = vadd.f32 %v861, %v1048
      %v1099 = vadd.f32 %v862, %v1050
      %v1100 = vadd.f32 %v863, %v1053
      %v1101 = vadd.f32 %v864, %v1055
      %v1102 = vadd.f32 %v865, %v1058
      %v1103 = vadd.f32 %v866, %v1060
      %v1104 = vadd.f32 %v867, %v1063
      %v1105 = vadd.f32 %v868, %v1065
      %s1106 = scalar_lea.vmem %s1, 6
      %v1107 = vld [vmem:[%s1106] sm:$0x3]
      %v1109 = vsel %vm507, %v1107, 0
      %1111 = vmatpush.bf16.msra.mxu0 0
      %1112 = vmatpush.bf16.msra.mxu0 0
      %1113 = vmatpush.bf16.msra.mxu0 0
      %1114 = vmatpush.bf16.msra.mxu0 0
      %1115 = vmatpush.bf16.msra.mxu0 0
      %1116 = vmatpush.bf16.msra.mxu0 0
      %1117 = vmatpush.bf16.msra.mxu0 0
      %1118 = vmatpush.bf16.msra.mxu0 %v1109
      %1119 = vmatmul.bf16.gmra.mxu0 %v436
      %v1120 = vpop.f32.mrf.mxu0
      %v1121 = vpop.f32.mrf.mxu0
      %1122 = vmatmul.bf16.gmra.mxu0 %v439
      %v1123 = vpop.f32.mrf.mxu0
      %v1124 = vpop.f32.mrf.mxu0
      %1125 = vmatmul.bf16.gmra.mxu0 %v442
      %v1126 = vpop.f32.mrf.mxu0
      %v1127 = vadd.f32 0.0, %v1126
      %v1128 = vpop.f32.mrf.mxu0
      %v1129 = vadd.f32 0.0, %v1128
      %1130 = vmatmul.bf16.gmra.mxu0 %v445
      %v1131 = vpop.f32.mrf.mxu0
      %v1132 = vpop.f32.mrf.mxu0
      %1133 = vmatmul.bf16.gmra.mxu0 %v448
      %v1134 = vpop.f32.mrf.mxu0
      %v1135 = vadd.f32 0.0, %v1134
      %v1136 = vpop.f32.mrf.mxu0
      %v1137 = vadd.f32 0.0, %v1136
      %1138 = vmatmul.bf16.gmra.mxu0 %v451
      %v1139 = vpop.f32.mrf.mxu0
      %v1140 = vpop.f32.mrf.mxu0
      %1141 = vmatmul.bf16.gmra.mxu0 %v454
      %v1142 = vpop.f32.mrf.mxu0
      %v1143 = vadd.f32 0.0, %v1142
      %v1144 = vpop.f32.mrf.mxu0
      %v1145 = vadd.f32 0.0, %v1144
      %1146 = vmatmul.bf16.gmra.mxu0 %v457
      %v1147 = vpop.f32.mrf.mxu0
      %v1148 = vpop.f32.mrf.mxu0
      %1149 = vmatmul.bf16.gmra.mxu0 %v460
      %v1150 = vpop.f32.mrf.mxu0
      %v1151 = vadd.f32 0.0, %v1150
      %v1152 = vpop.f32.mrf.mxu0
      %v1153 = vadd.f32 0.0, %v1152
      %1154 = vmatmul.bf16.gmra.mxu0 %v463
      %v1155 = vpop.f32.mrf.mxu0
      %v1156 = vpop.f32.mrf.mxu0
      %1157 = vmatmul.bf16.gmra.mxu0 %v466
      %v1158 = vpop.f32.mrf.mxu0
      %v1159 = vadd.f32 0.0, %v1158
      %v1160 = vpop.f32.mrf.mxu0
      %v1161 = vadd.f32 0.0, %v1160
      %1162 = vmatmul.bf16.gmra.mxu0 %v469
      %v1163 = vpop.f32.mrf.mxu0
      %v1164 = vpop.f32.mrf.mxu0
      %1165 = vmatmul.bf16.gmra.mxu0 %v472
      %v1166 = vpop.f32.mrf.mxu0
      %v1167 = vadd.f32 0.0, %v1166
      %v1168 = vpop.f32.mrf.mxu0
      %v1169 = vadd.f32 0.0, %v1168
      %1170 = vmatmul.bf16.gmra.mxu0 %v475
      %v1171 = vpop.f32.mrf.mxu0
      %v1172 = vpop.f32.mrf.mxu0
      %1173 = vmatmul.bf16.gmra.mxu0 %v478
      %v1174 = vpop.f32.mrf.mxu0
      %v1175 = vadd.f32 0.0, %v1174
      %v1176 = vpop.f32.mrf.mxu0
      %v1177 = vadd.f32 0.0, %v1176
      %1178 = vmatmul.bf16.gmra.mxu0 %v481
      %v1179 = vpop.f32.mrf.mxu0
      %v1180 = vpop.f32.mrf.mxu0
      %1181 = vmatmul.bf16.gmra.mxu0 %v484
      %v1182 = vpop.f32.mrf.mxu0
      %v1183 = vadd.f32 0.0, %v1182
      %v1184 = vpop.f32.mrf.mxu0
      %v1185 = vadd.f32 0.0, %v1184
      %1186 = vmatmul.bf16.gmra.mxu0 %v487
      %v1187 = vpop.f32.mrf.mxu0
      %v1188 = vpop.f32.mrf.mxu0
      %1189 = vmatmul.bf16.gmra.mxu0 %v490
      %v1190 = vpop.f32.mrf.mxu0
      %v1191 = vadd.f32 0.0, %v1190
      %v1192 = vpop.f32.mrf.mxu0
      %v1193 = vadd.f32 0.0, %v1192
      %1194 = vmatmul.bf16.gmra.mxu0 %v493
      %v1195 = vpop.f32.mrf.mxu0
      %v1196 = vpop.f32.mrf.mxu0
      %1197 = vmatmul.bf16.gmra.mxu0 %v496
      %v1198 = vpop.f32.mrf.mxu0
      %v1199 = vadd.f32 0.0, %v1198
      %v1200 = vpop.f32.mrf.mxu0
      %v1201 = vadd.f32 0.0, %v1200
      %1202 = vmatmul.bf16.gmra.mxu0 %v499
      %v1203 = vpop.f32.mrf.mxu0
      %v1204 = vpop.f32.mrf.mxu0
      %1205 = vmatmul.bf16.gmra.mxu0 %v502
      %v1206 = vpop.f32.mrf.mxu0
      %v1207 = vpop.f32.mrf.mxu0
      %1208 = vmatmul.bf16.gmra.mxu0 %v505
      %v1209 = vpop.f32.mrf.mxu0
      %v1210 = vpop.f32.mrf.mxu0
      %1211 = vdwg.mxu0
      %v1212 = vadd.f32 %v1086, %v1127
      %v1213 = vadd.f32 %v1087, %v1129
      %v1214 = vadd.f32 %v1088, %v1135
      %v1215 = vadd.f32 %v1089, %v1137
      %v1216 = vadd.f32 %v1090, %v1143
      %v1217 = vadd.f32 %v1091, %v1145
      %v1218 = vadd.f32 %v1092, %v1151
      %v1219 = vadd.f32 %v1093, %v1153
      %v1220 = vadd.f32 %v1094, %v1159
      %v1221 = vadd.f32 %v1095, %v1161
      %v1222 = vadd.f32 %v1096, %v1167
      %v1223 = vadd.f32 %v1097, %v1169
      %v1224 = vadd.f32 %v1098, %v1175
      %v1225 = vadd.f32 %v1099, %v1177
      %v1226 = vadd.f32 %v1100, %v1183
      %v1227 = vadd.f32 %v1101, %v1185
      %v1228 = vadd.f32 %v1102, %v1191
      %v1229 = vadd.f32 %v1103, %v1193
      %v1230 = vadd.f32 %v1104, %v1199
      %v1231 = vadd.f32 %v1105, %v1201
      %s1232 = scalar_lea.vmem %s1, 8
      %v1233 = vld [vmem:[%s1232] sm:$0x3]
      %v1235 = vsel %vm507, %v1233, 0
      %1237 = vmatpush.bf16.msra.mxu0 0
      %1238 = vmatpush.bf16.msra.mxu0 0
      %1239 = vmatpush.bf16.msra.mxu0 0
      %1240 = vmatpush.bf16.msra.mxu0 0
      %1241 = vmatpush.bf16.msra.mxu0 0
      %1242 = vmatpush.bf16.msra.mxu0 0
      %1243 = vmatpush.bf16.msra.mxu0 0
      %1244 = vmatpush.bf16.msra.mxu0 %v1235
      %1245 = vmatmul.bf16.gmra.mxu0 %v436
      %v1246 = vpop.f32.mrf.mxu0
      %v1247 = vpop.f32.mrf.mxu0
      %1248 = vmatmul.bf16.gmra.mxu0 %v439
      %v1249 = vpop.f32.mrf.mxu0
      %v1250 = vpop.f32.mrf.mxu0
      %1251 = vmatmul.bf16.gmra.mxu0 %v442
      %v1252 = vpop.f32.mrf.mxu0
      %v1253 = vadd.f32 0.0, %v1252
      %v1254 = vpop.f32.mrf.mxu0
      %v1255 = vadd.f32 0.0, %v1254
      %1256 = vmatmul.bf16.gmra.mxu0 %v445
      %v1257 = vpop.f32.mrf.mxu0
      %v1258 = vadd.f32 0.0, %v1257
      %v1259 = vpop.f32.mrf.mxu0
      %1260 = vmatmul.bf16.gmra.mxu0 %v448
      %v1261 = vpop.f32.mrf.mxu0
      %v1262 = vadd.f32 0.0, %v1261
      %v1263 = vpop.f32.mrf.mxu0
      %v1264 = vadd.f32 0.0, %v1263
      %1265 = vmatmul.bf16.gmra.mxu0 %v451
      %v1266 = vpop.f32.mrf.mxu0
      %v1267 = vadd.f32 0.0, %v1266
      %v1268 = vpop.f32.mrf.mxu0
      %1269 = vmatmul.bf16.gmra.mxu0 %v454
      %v1270 = vpop.f32.mrf.mxu0
      %v1271 = vadd.f32 0.0, %v1270
      %v1272 = vpop.f32.mrf.mxu0
      %v1273 = vadd.f32 0.0, %v1272
      %1274 = vmatmul.bf16.gmra.mxu0 %v457
      %v1275 = vpop.f32.mrf.mxu0
      %v1276 = vadd.f32 0.0, %v1275
      %v1277 = vpop.f32.mrf.mxu0
      %1278 = vmatmul.bf16.gmra.mxu0 %v460
      %v1279 = vpop.f32.mrf.mxu0
      %v1280 = vadd.f32 0.0, %v1279
      %v1281 = vpop.f32.mrf.mxu0
      %v1282 = vadd.f32 0.0, %v1281
      %1283 = vmatmul.bf16.gmra.mxu0 %v463
      %v1284 = vpop.f32.mrf.mxu0
      %v1285 = vadd.f32 0.0, %v1284
      %v1286 = vpop.f32.mrf.mxu0
      %1287 = vmatmul.bf16.gmra.mxu0 %v466
      %v1288 = vpop.f32.mrf.mxu0
      %v1289 = vadd.f32 0.0, %v1288
      %v1290 = vpop.f32.mrf.mxu0
      %v1291 = vadd.f32 0.0, %v1290
      %1292 = vmatmul.bf16.gmra.mxu0 %v469
      %v1293 = vpop.f32.mrf.mxu0
      %v1294 = vadd.f32 0.0, %v1293
      %v1295 = vpop.f32.mrf.mxu0
      %1296 = vmatmul.bf16.gmra.mxu0 %v472
      %v1297 = vpop.f32.mrf.mxu0
      %v1298 = vadd.f32 0.0, %v1297
      %v1299 = vpop.f32.mrf.mxu0
      %v1300 = vadd.f32 0.0, %v1299
      %1301 = vmatmul.bf16.gmra.mxu0 %v475
      %v1302 = vpop.f32.mrf.mxu0
      %v1303 = vadd.f32 0.0, %v1302
      %v1304 = vpop.f32.mrf.mxu0
      %1305 = vmatmul.bf16.gmra.mxu0 %v478
      %v1306 = vpop.f32.mrf.mxu0
      %v1307 = vadd.f32 0.0, %v1306
      %v1308 = vpop.f32.mrf.mxu0
      %v1309 = vadd.f32 0.0, %v1308
      %1310 = vmatmul.bf16.gmra.mxu0 %v481
      %v1311 = vpop.f32.mrf.mxu0
      %v1312 = vadd.f32 0.0, %v1311
      %v1313 = vpop.f32.mrf.mxu0
      %1314 = vmatmul.bf16.gmra.mxu0 %v484
      %v1315 = vpop.f32.mrf.mxu0
      %v1316 = vadd.f32 0.0, %v1315
      %v1317 = vpop.f32.mrf.mxu0
      %v1318 = vadd.f32 0.0, %v1317
      %1319 = vmatmul.bf16.gmra.mxu0 %v487
      %v1320 = vpop.f32.mrf.mxu0
      %v1321 = vadd.f32 0.0, %v1320
      %v1322 = vpop.f32.mrf.mxu0
      %1323 = vmatmul.bf16.gmra.mxu0 %v490
      %v1324 = vpop.f32.mrf.mxu0
      %v1325 = vadd.f32 0.0, %v1324
      %v1326 = vpop.f32.mrf.mxu0
      %v1327 = vadd.f32 0.0, %v1326
      %1328 = vmatmul.bf16.gmra.mxu0 %v493
      %v1329 = vpop.f32.mrf.mxu0
      %v1330 = vadd.f32 0.0, %v1329
      %v1331 = vpop.f32.mrf.mxu0
      %1332 = vmatmul.bf16.gmra.mxu0 %v496
      %v1333 = vpop.f32.mrf.mxu0
      %v1334 = vadd.f32 0.0, %v1333
      %v1335 = vpop.f32.mrf.mxu0
      %v1336 = vadd.f32 0.0, %v1335
      %1337 = vmatmul.bf16.gmra.mxu0 %v499
      %v1338 = vpop.f32.mrf.mxu0
      %v1339 = vadd.f32 0.0, %v1338
      %v1340 = vpop.f32.mrf.mxu0
      %1341 = vmatmul.bf16.gmra.mxu0 %v502
      %v1342 = vpop.f32.mrf.mxu0
      %v1343 = vpop.f32.mrf.mxu0
      %1344 = vmatmul.bf16.gmra.mxu0 %v505
      %v1345 = vpop.f32.mrf.mxu0
      %v1346 = vpop.f32.mrf.mxu0
      %1347 = vdwg.mxu0
      %v1378 = vrot.slane %v1253, 1
      %v1379 = vrot.slane %v1255, 1
      %v1380 = vsel %vm778, %v1378, %v1379
      %v1381 = vrot.slane %v1258, 1
      %v1382 = vsel %vm778, %v1379, %v1381
      %v1383 = vrot.slane %v1262, 1
      %v1384 = vrot.slane %v1264, 1
      %v1385 = vsel %vm778, %v1383, %v1384
      %v1386 = vrot.slane %v1267, 1
      %v1387 = vsel %vm778, %v1384, %v1386
      %v1388 = vrot.slane %v1271, 1
      %v1389 = vrot.slane %v1273, 1
      %v1390 = vsel %vm778, %v1388, %v1389
      %v1391 = vrot.slane %v1276, 1
      %v1392 = vsel %vm778, %v1389, %v1391
      %v1393 = vrot.slane %v1280, 1
      %v1394 = vrot.slane %v1282, 1
      %v1395 = vsel %vm778, %v1393, %v1394
      %v1396 = vrot.slane %v1285, 1
      %v1397 = vsel %vm778, %v1394, %v1396
      %v1398 = vrot.slane %v1289, 1
      %v1399 = vrot.slane %v1291, 1
      %v1400 = vsel %vm778, %v1398, %v1399
      %v1401 = vrot.slane %v1294, 1
      %v1402 = vsel %vm778, %v1399, %v1401
      %v1403 = vrot.slane %v1298, 1
      %v1404 = vrot.slane %v1300, 1
      %v1405 = vsel %vm778, %v1403, %v1404
      %v1406 = vrot.slane %v1303, 1
      %v1407 = vsel %vm778, %v1404, %v1406
      %v1408 = vrot.slane %v1307, 1
      %v1409 = vrot.slane %v1309, 1
      %v1410 = vsel %vm778, %v1408, %v1409
      %v1411 = vrot.slane %v1312, 1
      %v1412 = vsel %vm778, %v1409, %v1411
      %v1413 = vrot.slane %v1316, 1
      %v1414 = vrot.slane %v1318, 1
      %v1415 = vsel %vm778, %v1413, %v1414
      %v1416 = vrot.slane %v1321, 1
      %v1417 = vsel %vm778, %v1414, %v1416
      %v1418 = vrot.slane %v1325, 1
      %v1419 = vrot.slane %v1327, 1
      %v1420 = vsel %vm778, %v1418, %v1419
      %v1421 = vrot.slane %v1330, 1
      %v1422 = vsel %vm778, %v1419, %v1421
      %v1423 = vrot.slane %v1334, 1
      %v1424 = vrot.slane %v1336, 1
      %v1425 = vsel %vm778, %v1423, %v1424
      %v1426 = vrot.slane %v1339, 1
      %v1427 = vsel %vm778, %v1424, %v1426
      %v1448 = vadd.f32 %v1212, %v1380
      %v1449 = vadd.f32 %v1213, %v1382
      %v1450 = vadd.f32 %v1214, %v1385
      %v1451 = vadd.f32 %v1215, %v1387
      %v1452 = vadd.f32 %v1216, %v1390
      %v1453 = vadd.f32 %v1217, %v1392
      %v1454 = vadd.f32 %v1218, %v1395
      %v1455 = vadd.f32 %v1219, %v1397
      %v1456 = vadd.f32 %v1220, %v1400
      %v1457 = vadd.f32 %v1221, %v1402
      %v1458 = vadd.f32 %v1222, %v1405
      %v1459 = vadd.f32 %v1223, %v1407
      %v1460 = vadd.f32 %v1224, %v1410
      %v1461 = vadd.f32 %v1225, %v1412
      %v1462 = vadd.f32 %v1226, %v1415
      %v1463 = vadd.f32 %v1227, %v1417
      %v1464 = vadd.f32 %v1228, %v1420
      %v1465 = vadd.f32 %v1229, %v1422
      %v1466 = vadd.f32 %v1230, %v1425
      %v1467 = vadd.f32 %v1231, %v1427
      %s1468 = scalar_lea.vmem %s1, 10
      %v1469 = vld [vmem:[%s1468] sm:$0x3]
      %v1471 = vsel %vm507, %v1469, 0
      %1473 = vmatpush.bf16.msra.mxu0 0
      %1474 = vmatpush.bf16.msra.mxu0 0
      %1475 = vmatpush.bf16.msra.mxu0 0
      %1476 = vmatpush.bf16.msra.mxu0 0
      %1477 = vmatpush.bf16.msra.mxu0 0
      %1478 = vmatpush.bf16.msra.mxu0 0
      %1479 = vmatpush.bf16.msra.mxu0 0
      %1480 = vmatpush.bf16.msra.mxu0 %v1471
      %1481 = vmatmul.bf16.gmra.mxu0 %v436
      %v1482 = vpop.f32.mrf.mxu0
      %v1483 = vpop.f32.mrf.mxu0
      %1484 = vmatmul.bf16.gmra.mxu0 %v439
      %v1485 = vpop.f32.mrf.mxu0
      %v1486 = vpop.f32.mrf.mxu0
      %1487 = vmatmul.bf16.gmra.mxu0 %v442
      %v1488 = vpop.f32.mrf.mxu0
      %v1489 = vadd.f32 0.0, %v1488
      %v1490 = vpop.f32.mrf.mxu0
      %v1491 = vadd.f32 0.0, %v1490
      %1492 = vmatmul.bf16.gmra.mxu0 %v445
      %v1493 = vpop.f32.mrf.mxu0
      %v1494 = vadd.f32 0.0, %v1493
      %v1495 = vpop.f32.mrf.mxu0
      %1496 = vmatmul.bf16.gmra.mxu0 %v448
      %v1497 = vpop.f32.mrf.mxu0
      %v1498 = vadd.f32 0.0, %v1497
      %v1499 = vpop.f32.mrf.mxu0
      %v1500 = vadd.f32 0.0, %v1499
      %1501 = vmatmul.bf16.gmra.mxu0 %v451
      %v1502 = vpop.f32.mrf.mxu0
      %v1503 = vadd.f32 0.0, %v1502
      %v1504 = vpop.f32.mrf.mxu0
      %1505 = vmatmul.bf16.gmra.mxu0 %v454
      %v1506 = vpop.f32.mrf.mxu0
      %v1507 = vadd.f32 0.0, %v1506
      %v1508 = vpop.f32.mrf.mxu0
      %v1509 = vadd.f32 0.0, %v1508
      %1510 = vmatmul.bf16.gmra.mxu0 %v457
      %v1511 = vpop.f32.mrf.mxu0
      %v1512 = vadd.f32 0.0, %v1511
      %v1513 = vpop.f32.mrf.mxu0
      %1514 = vmatmul.bf16.gmra.mxu0 %v460
      %v1515 = vpop.f32.mrf.mxu0
      %v1516 = vadd.f32 0.0, %v1515
      %v1517 = vpop.f32.mrf.mxu0
      %v1518 = vadd.f32 0.0, %v1517
      %1519 = vmatmul.bf16.gmra.mxu0 %v463
      %v1520 = vpop.f32.mrf.mxu0
      %v1521 = vadd.f32 0.0, %v1520
      %v1522 = vpop.f32.mrf.mxu0
      %1523 = vmatmul.bf16.gmra.mxu0 %v466
      %v1524 = vpop.f32.mrf.mxu0
      %v1525 = vadd.f32 0.0, %v1524
      %v1526 = vpop.f32.mrf.mxu0
      %v1527 = vadd.f32 0.0, %v1526
      %1528 = vmatmul.bf16.gmra.mxu0 %v469
      %v1529 = vpop.f32.mrf.mxu0
      %v1530 = vadd.f32 0.0, %v1529
      %v1531 = vpop.f32.mrf.mxu0
      %1532 = vmatmul.bf16.gmra.mxu0 %v472
      %v1533 = vpop.f32.mrf.mxu0
      %v1534 = vadd.f32 0.0, %v1533
      %v1535 = vpop.f32.mrf.mxu0
      %v1536 = vadd.f32 0.0, %v1535
      %1537 = vmatmul.bf16.gmra.mxu0 %v475
      %v1538 = vpop.f32.mrf.mxu0
      %v1539 = vadd.f32 0.0, %v1538
      %v1540 = vpop.f32.mrf.mxu0
      %1541 = vmatmul.bf16.gmra.mxu0 %v478
      %v1542 = vpop.f32.mrf.mxu0
      %v1543 = vadd.f32 0.0, %v1542
      %v1544 = vpop.f32.mrf.mxu0
      %v1545 = vadd.f32 0.0, %v1544
      %1546 = vmatmul.bf16.gmra.mxu0 %v481
      %v1547 = vpop.f32.mrf.mxu0
      %v1548 = vadd.f32 0.0, %v1547
      %v1549 = vpop.f32.mrf.mxu0
      %1550 = vmatmul.bf16.gmra.mxu0 %v484
      %v1551 = vpop.f32.mrf.mxu0
      %v1552 = vadd.f32 0.0, %v1551
      %v1553 = vpop.f32.mrf.mxu0
      %v1554 = vadd.f32 0.0, %v1553
      %1555 = vmatmul.bf16.gmra.mxu0 %v487
      %v1556 = vpop.f32.mrf.mxu0
      %v1557 = vadd.f32 0.0, %v1556
      %v1558 = vpop.f32.mrf.mxu0
      %1559 = vmatmul.bf16.gmra.mxu0 %v490
      %v1560 = vpop.f32.mrf.mxu0
      %v1561 = vadd.f32 0.0, %v1560
      %v1562 = vpop.f32.mrf.mxu0
      %v1563 = vadd.f32 0.0, %v1562
      %1564 = vmatmul.bf16.gmra.mxu0 %v493
      %v1565 = vpop.f32.mrf.mxu0
      %v1566 = vadd.f32 0.0, %v1565
      %v1567 = vpop.f32.mrf.mxu0
      %1568 = vmatmul.bf16.gmra.mxu0 %v496
      %v1569 = vpop.f32.mrf.mxu0
      %v1570 = vadd.f32 0.0, %v1569
      %v1571 = vpop.f32.mrf.mxu0
      %v1572 = vadd.f32 0.0, %v1571
      %1573 = vmatmul.bf16.gmra.mxu0 %v499
      %v1574 = vpop.f32.mrf.mxu0
      %v1575 = vadd.f32 0.0, %v1574
      %v1576 = vpop.f32.mrf.mxu0
      %1577 = vmatmul.bf16.gmra.mxu0 %v502
      %v1578 = vpop.f32.mrf.mxu0
      %v1579 = vpop.f32.mrf.mxu0
      %1580 = vmatmul.bf16.gmra.mxu0 %v505
      %v1581 = vpop.f32.mrf.mxu0
      %v1582 = vpop.f32.mrf.mxu0
      %1583 = vdwg.mxu0
      %v1614 = vrot.slane %v1489, 2
      %v1615 = vrot.slane %v1491, 2
      %v1616 = vsel %vm1015, %v1614, %v1615
      %v1617 = vrot.slane %v1494, 2
      %v1618 = vsel %vm1015, %v1615, %v1617
      %v1619 = vrot.slane %v1498, 2
      %v1620 = vrot.slane %v1500, 2
      %v1621 = vsel %vm1015, %v1619, %v1620
      %v1622 = vrot.slane %v1503, 2
      %v1623 = vsel %vm1015, %v1620, %v1622
      %v1624 = vrot.slane %v1507, 2
      %v1625 = vrot.slane %v1509, 2
      %v1626 = vsel %vm1015, %v1624, %v1625
      %v1627 = vrot.slane %v1512, 2
      %v1628 = vsel %vm1015, %v1625, %v1627
      %v1629 = vrot.slane %v1516, 2
      %v1630 = vrot.slane %v1518, 2
      %v1631 = vsel %vm1015, %v1629, %v1630
      %v1632 = vrot.slane %v1521, 2
      %v1633 = vsel %vm1015, %v1630, %v1632
      %v1634 = vrot.slane %v1525, 2
      %v1635 = vrot.slane %v1527, 2
      %v1636 = vsel %vm1015, %v1634, %v1635
      %v1637 = vrot.slane %v1530, 2
      %v1638 = vsel %vm1015, %v1635, %v1637
      %v1639 = vrot.slane %v1534, 2
      %v1640 = vrot.slane %v1536, 2
      %v1641 = vsel %vm1015, %v1639, %v1640
      %v1642 = vrot.slane %v1539, 2
      %v1643 = vsel %vm1015, %v1640, %v1642
      %v1644 = vrot.slane %v1543, 2
      %v1645 = vrot.slane %v1545, 2
      %v1646 = vsel %vm1015, %v1644, %v1645
      %v1647 = vrot.slane %v1548, 2
      %v1648 = vsel %vm1015, %v1645, %v1647
      %v1649 = vrot.slane %v1552, 2
      %v1650 = vrot.slane %v1554, 2
      %v1651 = vsel %vm1015, %v1649, %v1650
      %v1652 = vrot.slane %v1557, 2
      %v1653 = vsel %vm1015, %v1650, %v1652
      %v1654 = vrot.slane %v1561, 2
      %v1655 = vrot.slane %v1563, 2
      %v1656 = vsel %vm1015, %v1654, %v1655
      %v1657 = vrot.slane %v1566, 2
      %v1658 = vsel %vm1015, %v1655, %v1657
      %v1659 = vrot.slane %v1570, 2
      %v1660 = vrot.slane %v1572, 2
      %v1661 = vsel %vm1015, %v1659, %v1660
      %v1662 = vrot.slane %v1575, 2
      %v1663 = vsel %vm1015, %v1660, %v1662
      %v1684 = vadd.f32 %v1448, %v1616
      %v1685 = vadd.f32 %v1449, %v1618
      %v1686 = vadd.f32 %v1450, %v1621
      %v1687 = vadd.f32 %v1451, %v1623
      %v1688 = vadd.f32 %v1452, %v1626
      %v1689 = vadd.f32 %v1453, %v1628
      %v1690 = vadd.f32 %v1454, %v1631
      %v1691 = vadd.f32 %v1455, %v1633
      %v1692 = vadd.f32 %v1456, %v1636
      %v1693 = vadd.f32 %v1457, %v1638
      %v1694 = vadd.f32 %v1458, %v1641
      %v1695 = vadd.f32 %v1459, %v1643
      %v1696 = vadd.f32 %v1460, %v1646
      %v1697 = vadd.f32 %v1461, %v1648
      %v1698 = vadd.f32 %v1462, %v1651
      %v1699 = vadd.f32 %v1463, %v1653
      %v1700 = vadd.f32 %v1464, %v1656
      %v1701 = vadd.f32 %v1465, %v1658
      %v1702 = vadd.f32 %v1466, %v1661
      %v1703 = vadd.f32 %v1467, %v1663
      %s1704 = scalar_lea.vmem %s1, 12
      %v1705 = vld [vmem:[%s1704] sm:$0x3]
      %v1707 = vsel %vm507, %v1705, 0
      %1709 = vmatpush.bf16.msra.mxu0 0
      %1710 = vmatpush.bf16.msra.mxu0 0
      %1711 = vmatpush.bf16.msra.mxu0 0
      %1712 = vmatpush.bf16.msra.mxu0 0
      %1713 = vmatpush.bf16.msra.mxu0 0
      %1714 = vmatpush.bf16.msra.mxu0 0
      %1715 = vmatpush.bf16.msra.mxu0 0
      %1716 = vmatpush.bf16.msra.mxu0 %v1707
      %1717 = vmatmul.bf16.gmra.mxu0 %v436
      %v1718 = vpop.f32.mrf.mxu0
      %v1719 = vpop.f32.mrf.mxu0
      %1720 = vmatmul.bf16.gmra.mxu0 %v439
      %v1721 = vpop.f32.mrf.mxu0
      %v1722 = vpop.f32.mrf.mxu0
      %1723 = vmatmul.bf16.gmra.mxu0 %v442
      %v1724 = vpop.f32.mrf.mxu0
      %v1725 = vpop.f32.mrf.mxu0
      %1726 = vmatmul.bf16.gmra.mxu0 %v445
      %v1727 = vpop.f32.mrf.mxu0
      %v1728 = vpop.f32.mrf.mxu0
      %1729 = vmatmul.bf16.gmra.mxu0 %v448
      %v1730 = vpop.f32.mrf.mxu0
      %v1731 = vadd.f32 0.0, %v1730
      %v1732 = vpop.f32.mrf.mxu0
      %v1733 = vadd.f32 0.0, %v1732
      %1734 = vmatmul.bf16.gmra.mxu0 %v451
      %v1735 = vpop.f32.mrf.mxu0
      %v1736 = vpop.f32.mrf.mxu0
      %1737 = vmatmul.bf16.gmra.mxu0 %v454
      %v1738 = vpop.f32.mrf.mxu0
      %v1739 = vadd.f32 0.0, %v1738
      %v1740 = vpop.f32.mrf.mxu0
      %v1741 = vadd.f32 0.0, %v1740
      %1742 = vmatmul.bf16.gmra.mxu0 %v457
      %v1743 = vpop.f32.mrf.mxu0
      %v1744 = vpop.f32.mrf.mxu0
      %1745 = vmatmul.bf16.gmra.mxu0 %v460
      %v1746 = vpop.f32.mrf.mxu0
      %v1747 = vadd.f32 0.0, %v1746
      %v1748 = vpop.f32.mrf.mxu0
      %v1749 = vadd.f32 0.0, %v1748
      %1750 = vmatmul.bf16.gmra.mxu0 %v463
      %v1751 = vpop.f32.mrf.mxu0
      %v1752 = vpop.f32.mrf.mxu0
      %1753 = vmatmul.bf16.gmra.mxu0 %v466
      %v1754 = vpop.f32.mrf.mxu0
      %v1755 = vadd.f32 0.0, %v1754
      %v1756 = vpop.f32.mrf.mxu0
      %v1757 = vadd.f32 0.0, %v1756
      %1758 = vmatmul.bf16.gmra.mxu0 %v469
      %v1759 = vpop.f32.mrf.mxu0
      %v1760 = vpop.f32.mrf.mxu0
      %1761 = vmatmul.bf16.gmra.mxu0 %v472
      %v1762 = vpop.f32.mrf.mxu0
      %v1763 = vadd.f32 0.0, %v1762
      %v1764 = vpop.f32.mrf.mxu0
      %v1765 = vadd.f32 0.0, %v1764
      %1766 = vmatmul.bf16.gmra.mxu0 %v475
      %v1767 = vpop.f32.mrf.mxu0
      %v1768 = vpop.f32.mrf.mxu0
      %1769 = vmatmul.bf16.gmra.mxu0 %v478
      %v1770 = vpop.f32.mrf.mxu0
      %v1771 = vadd.f32 0.0, %v1770
      %v1772 = vpop.f32.mrf.mxu0
      %v1773 = vadd.f32 0.0, %v1772
      %1774 = vmatmul.bf16.gmra.mxu0 %v481
      %v1775 = vpop.f32.mrf.mxu0
      %v1776 = vpop.f32.mrf.mxu0
      %1777 = vmatmul.bf16.gmra.mxu0 %v484
      %v1778 = vpop.f32.mrf.mxu0
      %v1779 = vadd.f32 0.0, %v1778
      %v1780 = vpop.f32.mrf.mxu0
      %v1781 = vadd.f32 0.0, %v1780
      %1782 = vmatmul.bf16.gmra.mxu0 %v487
      %v1783 = vpop.f32.mrf.mxu0
      %v1784 = vpop.f32.mrf.mxu0
      %1785 = vmatmul.bf16.gmra.mxu0 %v490
      %v1786 = vpop.f32.mrf.mxu0
      %v1787 = vadd.f32 0.0, %v1786
      %v1788 = vpop.f32.mrf.mxu0
      %v1789 = vadd.f32 0.0, %v1788
      %1790 = vmatmul.bf16.gmra.mxu0 %v493
      %v1791 = vpop.f32.mrf.mxu0
      %v1792 = vpop.f32.mrf.mxu0
      %1793 = vmatmul.bf16.gmra.mxu0 %v496
      %v1794 = vpop.f32.mrf.mxu0
      %v1795 = vadd.f32 0.0, %v1794
      %v1796 = vpop.f32.mrf.mxu0
      %v1797 = vadd.f32 0.0, %v1796
      %1798 = vmatmul.bf16.gmra.mxu0 %v499
      %v1799 = vpop.f32.mrf.mxu0
      %v1800 = vpop.f32.mrf.mxu0
      %1801 = vmatmul.bf16.gmra.mxu0 %v502
      %v1802 = vpop.f32.mrf.mxu0
      %v1803 = vadd.f32 0.0, %v1802
      %v1804 = vpop.f32.mrf.mxu0
      %v1805 = vadd.f32 0.0, %v1804
      %1806 = vmatmul.bf16.gmra.mxu0 %v505
      %v1807 = vpop.f32.mrf.mxu0
      %v1808 = vpop.f32.mrf.mxu0
      %1809 = vdwg.mxu0
      %v1810 = vadd.f32 %v1684, %v1731
      %v1811 = vadd.f32 %v1685, %v1733
      %v1812 = vadd.f32 %v1686, %v1739
      %v1813 = vadd.f32 %v1687, %v1741
      %v1814 = vadd.f32 %v1688, %v1747
      %v1815 = vadd.f32 %v1689, %v1749
      %v1816 = vadd.f32 %v1690, %v1755
      %v1817 = vadd.f32 %v1691, %v1757
      %v1818 = vadd.f32 %v1692, %v1763
      %v1819 = vadd.f32 %v1693, %v1765
      %v1820 = vadd.f32 %v1694, %v1771
      %v1821 = vadd.f32 %v1695, %v1773
      %v1822 = vadd.f32 %v1696, %v1779
      %v1823 = vadd.f32 %v1697, %v1781
      %v1824 = vadd.f32 %v1698, %v1787
      %v1825 = vadd.f32 %v1699, %v1789
      %v1826 = vadd.f32 %v1700, %v1795
      %v1827 = vadd.f32 %v1701, %v1797
      %v1828 = vadd.f32 %v1702, %v1803
      %v1829 = vadd.f32 %v1703, %v1805
      %s1830 = scalar_lea.vmem %s1, 14
      %v1831 = vld [vmem:[%s1830] sm:$0x3]
      %v1833 = vsel %vm507, %v1831, 0
      %1835 = vmatpush.bf16.msra.mxu0 0
      %1836 = vmatpush.bf16.msra.mxu0 0
      %1837 = vmatpush.bf16.msra.mxu0 0
      %1838 = vmatpush.bf16.msra.mxu0 0
      %1839 = vmatpush.bf16.msra.mxu0 0
      %1840 = vmatpush.bf16.msra.mxu0 0
      %1841 = vmatpush.bf16.msra.mxu0 0
      %1842 = vmatpush.bf16.msra.mxu0 %v1833
      %1843 = vmatmul.bf16.gmra.mxu0 %v436
      %v1844 = vpop.f32.mrf.mxu0
      %v1845 = vpop.f32.mrf.mxu0
      %1846 = vmatmul.bf16.gmra.mxu0 %v439
      %v1847 = vpop.f32.mrf.mxu0
      %v1848 = vpop.f32.mrf.mxu0
      %1849 = vmatmul.bf16.gmra.mxu0 %v442
      %v1850 = vpop.f32.mrf.mxu0
      %v1851 = vpop.f32.mrf.mxu0
      %1852 = vmatmul.bf16.gmra.mxu0 %v445
      %v1853 = vpop.f32.mrf.mxu0
      %v1854 = vpop.f32.mrf.mxu0
      %1855 = vmatmul.bf16.gmra.mxu0 %v448
      %v1856 = vpop.f32.mrf.mxu0
      %v1857 = vadd.f32 0.0, %v1856
      %v1858 = vpop.f32.mrf.mxu0
      %v1859 = vadd.f32 0.0, %v1858
      %1860 = vmatmul.bf16.gmra.mxu0 %v451
      %v1861 = vpop.f32.mrf.mxu0
      %v1862 = vadd.f32 0.0, %v1861
      %v1863 = vpop.f32.mrf.mxu0
      %1864 = vmatmul.bf16.gmra.mxu0 %v454
      %v1865 = vpop.f32.mrf.mxu0
      %v1866 = vadd.f32 0.0, %v1865
      %v1867 = vpop.f32.mrf.mxu0
      %v1868 = vadd.f32 0.0, %v1867
      %1869 = vmatmul.bf16.gmra.mxu0 %v457
      %v1870 = vpop.f32.mrf.mxu0
      %v1871 = vadd.f32 0.0, %v1870
      %v1872 = vpop.f32.mrf.mxu0
      %1873 = vmatmul.bf16.gmra.mxu0 %v460
      %v1874 = vpop.f32.mrf.mxu0
      %v1875 = vadd.f32 0.0, %v1874
      %v1876 = vpop.f32.mrf.mxu0
      %v1877 = vadd.f32 0.0, %v1876
      %1878 = vmatmul.bf16.gmra.mxu0 %v463
      %v1879 = vpop.f32.mrf.mxu0
      %v1880 = vadd.f32 0.0, %v1879
      %v1881 = vpop.f32.mrf.mxu0
      %1882 = vmatmul.bf16.gmra.mxu0 %v466
      %v1883 = vpop.f32.mrf.mxu0
      %v1884 = vadd.f32 0.0, %v1883
      %v1885 = vpop.f32.mrf.mxu0
      %v1886 = vadd.f32 0.0, %v1885
      %1887 = vmatmul.bf16.gmra.mxu0 %v469
      %v1888 = vpop.f32.mrf.mxu0
      %v1889 = vadd.f32 0.0, %v1888
      %v1890 = vpop.f32.mrf.mxu0
      %1891 = vmatmul.bf16.gmra.mxu0 %v472
      %v1892 = vpop.f32.mrf.mxu0
      %v1893 = vadd.f32 0.0, %v1892
      %v1894 = vpop.f32.mrf.mxu0
      %v1895 = vadd.f32 0.0, %v1894
      %1896 = vmatmul.bf16.gmra.mxu0 %v475
      %v1897 = vpop.f32.mrf.mxu0
      %v1898 = vadd.f32 0.0, %v1897
      %v1899 = vpop.f32.mrf.mxu0
      %1900 = vmatmul.bf16.gmra.mxu0 %v478
      %v1901 = vpop.f32.mrf.mxu0
      %v1902 = vadd.f32 0.0, %v1901
      %v1903 = vpop.f32.mrf.mxu0
      %v1904 = vadd.f32 0.0, %v1903
      %1905 = vmatmul.bf16.gmra.mxu0 %v481
      %v1906 = vpop.f32.mrf.mxu0
      %v1907 = vadd.f32 0.0, %v1906
      %v1908 = vpop.f32.mrf.mxu0
      %1909 = vmatmul.bf16.gmra.mxu0 %v484
      %v1910 = vpop.f32.mrf.mxu0
      %v1911 = vadd.f32 0.0, %v1910
      %v1912 = vpop.f32.mrf.mxu0
      %v1913 = vadd.f32 0.0, %v1912
      %1914 = vmatmul.bf16.gmra.mxu0 %v487
      %v1915 = vpop.f32.mrf.mxu0
      %v1916 = vadd.f32 0.0, %v1915
      %v1917 = vpop.f32.mrf.mxu0
      %1918 = vmatmul.bf16.gmra.mxu0 %v490
      %v1919 = vpop.f32.mrf.mxu0
      %v1920 = vadd.f32 0.0, %v1919
      %v1921 = vpop.f32.mrf.mxu0
      %v1922 = vadd.f32 0.0, %v1921
      %1923 = vmatmul.bf16.gmra.mxu0 %v493
      %v1924 = vpop.f32.mrf.mxu0
      %v1925 = vadd.f32 0.0, %v1924
      %v1926 = vpop.f32.mrf.mxu0
      %1927 = vmatmul.bf16.gmra.mxu0 %v496
      %v1928 = vpop.f32.mrf.mxu0
      %v1929 = vadd.f32 0.0, %v1928
      %v1930 = vpop.f32.mrf.mxu0
      %v1931 = vadd.f32 0.0, %v1930
      %1932 = vmatmul.bf16.gmra.mxu0 %v499
      %v1933 = vpop.f32.mrf.mxu0
      %v1934 = vadd.f32 0.0, %v1933
      %v1935 = vpop.f32.mrf.mxu0
      %1936 = vmatmul.bf16.gmra.mxu0 %v502
      %v1937 = vpop.f32.mrf.mxu0
      %v1938 = vadd.f32 0.0, %v1937
      %v1939 = vpop.f32.mrf.mxu0
      %v1940 = vadd.f32 0.0, %v1939
      %1941 = vmatmul.bf16.gmra.mxu0 %v505
      %v1942 = vpop.f32.mrf.mxu0
      %v1943 = vadd.f32 0.0, %v1942
      %v1944 = vpop.f32.mrf.mxu0
      %1945 = vdwg.mxu0
      %v1976 = vrot.slane %v1857, 1
      %v1977 = vrot.slane %v1859, 1
      %v1978 = vsel %vm778, %v1976, %v1977
      %v1979 = vrot.slane %v1862, 1
      %v1980 = vsel %vm778, %v1977, %v1979
      %v1981 = vrot.slane %v1866, 1
      %v1982 = vrot.slane %v1868, 1
      %v1983 = vsel %vm778, %v1981, %v1982
      %v1984 = vrot.slane %v1871, 1
      %v1985 = vsel %vm778, %v1982, %v1984
      %v1986 = vrot.slane %v1875, 1
      %v1987 = vrot.slane %v1877, 1
      %v1988 = vsel %vm778, %v1986, %v1987
      %v1989 = vrot.slane %v1880, 1
      %v1990 = vsel %vm778, %v1987, %v1989
      %v1991 = vrot.slane %v1884, 1
      %v1992 = vrot.slane %v1886, 1
      %v1993 = vsel %vm778, %v1991, %v1992
      %v1994 = vrot.slane %v1889, 1
      %v1995 = vsel %vm778, %v1992, %v1994
      %v1996 = vrot.slane %v1893, 1
      %v1997 = vrot.slane %v1895, 1
      %v1998 = vsel %vm778, %v1996, %v1997
      %v1999 = vrot.slane %v1898, 1
      %v2000 = vsel %vm778, %v1997, %v1999
      %v2001 = vrot.slane %v1902, 1
      %v2002 = vrot.slane %v1904, 1
      %v2003 = vsel %vm778, %v2001, %v2002
      %v2004 = vrot.slane %v1907, 1
      %v2005 = vsel %vm778, %v2002, %v2004
      %v2006 = vrot.slane %v1911, 1
      %v2007 = vrot.slane %v1913, 1
      %v2008 = vsel %vm778, %v2006, %v2007
      %v2009 = vrot.slane %v1916, 1
      %v2010 = vsel %vm778, %v2007, %v2009
      %v2011 = vrot.slane %v1920, 1
      %v2012 = vrot.slane %v1922, 1
      %v2013 = vsel %vm778, %v2011, %v2012
      %v2014 = vrot.slane %v1925, 1
      %v2015 = vsel %vm778, %v2012, %v2014
      %v2016 = vrot.slane %v1929, 1
      %v2017 = vrot.slane %v1931, 1
      %v2018 = vsel %vm778, %v2016, %v2017
      %v2019 = vrot.slane %v1934, 1
      %v2020 = vsel %vm778, %v2017, %v2019
      %v2021 = vrot.slane %v1938, 1
      %v2022 = vrot.slane %v1940, 1
      %v2023 = vsel %vm778, %v2021, %v2022
      %v2024 = vrot.slane %v1943, 1
      %v2025 = vsel %vm778, %v2022, %v2024
      %v2046 = vadd.f32 %v1810, %v1978
      %v2047 = vadd.f32 %v1811, %v1980
      %v2048 = vadd.f32 %v1812, %v1983
      %v2049 = vadd.f32 %v1813, %v1985
      %v2050 = vadd.f32 %v1814, %v1988
      %v2051 = vadd.f32 %v1815, %v1990
      %v2052 = vadd.f32 %v1816, %v1993
      %v2053 = vadd.f32 %v1817, %v1995
      %v2054 = vadd.f32 %v1818, %v1998
      %v2055 = vadd.f32 %v1819, %v2000
      %v2056 = vadd.f32 %v1820, %v2003
      %v2057 = vadd.f32 %v1821, %v2005
      %v2058 = vadd.f32 %v1822, %v2008
      %v2059 = vadd.f32 %v1823, %v2010
      %v2060 = vadd.f32 %v1824, %v2013
      %v2061 = vadd.f32 %v1825, %v2015
      %v2062 = vadd.f32 %v1826, %v2018
      %v2063 = vadd.f32 %v1827, %v2020
      %v2064 = vadd.f32 %v1828, %v2023
      %v2065 = vadd.f32 %v1829, %v2025
      %s2066 = scalar_lea.vmem %s1, 16
      %v2067 = vld [vmem:[%s2066] sm:$0x3]
      %v2069 = vsel %vm507, %v2067, 0
      %2071 = vmatpush.bf16.msra.mxu0 0
      %2072 = vmatpush.bf16.msra.mxu0 0
      %2073 = vmatpush.bf16.msra.mxu0 0
      %2074 = vmatpush.bf16.msra.mxu0 0
      %2075 = vmatpush.bf16.msra.mxu0 0
      %2076 = vmatpush.bf16.msra.mxu0 0
      %2077 = vmatpush.bf16.msra.mxu0 0
      %2078 = vmatpush.bf16.msra.mxu0 %v2069
      %2079 = vmatmul.bf16.gmra.mxu0 %v436
      %v2080 = vpop.f32.mrf.mxu0
      %v2081 = vpop.f32.mrf.mxu0
      %2082 = vmatmul.bf16.gmra.mxu0 %v439
      %v2083 = vpop.f32.mrf.mxu0
      %v2084 = vpop.f32.mrf.mxu0
      %2085 = vmatmul.bf16.gmra.mxu0 %v442
      %v2086 = vpop.f32.mrf.mxu0
      %v2087 = vpop.f32.mrf.mxu0
      %2088 = vmatmul.bf16.gmra.mxu0 %v445
      %v2089 = vpop.f32.mrf.mxu0
      %v2090 = vpop.f32.mrf.mxu0
      %2091 = vmatmul.bf16.gmra.mxu0 %v448
      %v2092 = vpop.f32.mrf.mxu0
      %v2093 = vadd.f32 0.0, %v2092
      %v2094 = vpop.f32.mrf.mxu0
      %v2095 = vadd.f32 0.0, %v2094
      %2096 = vmatmul.bf16.gmra.mxu0 %v451
      %v2097 = vpop.f32.mrf.mxu0
      %v2098 = vadd.f32 0.0, %v2097
      %v2099 = vpop.f32.mrf.mxu0
      %2100 = vmatmul.bf16.gmra.mxu0 %v454
      %v2101 = vpop.f32.mrf.mxu0
      %v2102 = vadd.f32 0.0, %v2101
      %v2103 = vpop.f32.mrf.mxu0
      %v2104 = vadd.f32 0.0, %v2103
      %2105 = vmatmul.bf16.gmra.mxu0 %v457
      %v2106 = vpop.f32.mrf.mxu0
      %v2107 = vadd.f32 0.0, %v2106
      %v2108 = vpop.f32.mrf.mxu0
      %2109 = vmatmul.bf16.gmra.mxu0 %v460
      %v2110 = vpop.f32.mrf.mxu0
      %v2111 = vadd.f32 0.0, %v2110
      %v2112 = vpop.f32.mrf.mxu0
      %v2113 = vadd.f32 0.0, %v2112
      %2114 = vmatmul.bf16.gmra.mxu0 %v463
      %v2115 = vpop.f32.mrf.mxu0
      %v2116 = vadd.f32 0.0, %v2115
      %v2117 = vpop.f32.mrf.mxu0
      %2118 = vmatmul.bf16.gmra.mxu0 %v466
      %v2119 = vpop.f32.mrf.mxu0
      %v2120 = vadd.f32 0.0, %v2119
      %v2121 = vpop.f32.mrf.mxu0
      %v2122 = vadd.f32 0.0, %v2121
      %2123 = vmatmul.bf16.gmra.mxu0 %v469
      %v2124 = vpop.f32.mrf.mxu0
      %v2125 = vadd.f32 0.0, %v2124
      %v2126 = vpop.f32.mrf.mxu0
      %2127 = vmatmul.bf16.gmra.mxu0 %v472
      %v2128 = vpop.f32.mrf.mxu0
      %v2129 = vadd.f32 0.0, %v2128
      %v2130 = vpop.f32.mrf.mxu0
      %v2131 = vadd.f32 0.0, %v2130
      %2132 = vmatmul.bf16.gmra.mxu0 %v475
      %v2133 = vpop.f32.mrf.mxu0
      %v2134 = vadd.f32 0.0, %v2133
      %v2135 = vpop.f32.mrf.mxu0
      %2136 = vmatmul.bf16.gmra.mxu0 %v478
      %v2137 = vpop.f32.mrf.mxu0
      %v2138 = vadd.f32 0.0, %v2137
      %v2139 = vpop.f32.mrf.mxu0
      %v2140 = vadd.f32 0.0, %v2139
      %2141 = vmatmul.bf16.gmra.mxu0 %v481
      %v2142 = vpop.f32.mrf.mxu0
      %v2143 = vadd.f32 0.0, %v2142
      %v2144 = vpop.f32.mrf.mxu0
      %2145 = vmatmul.bf16.gmra.mxu0 %v484
      %v2146 = vpop.f32.mrf.mxu0
      %v2147 = vadd.f32 0.0, %v2146
      %v2148 = vpop.f32.mrf.mxu0
      %v2149 = vadd.f32 0.0, %v2148
      %2150 = vmatmul.bf16.gmra.mxu0 %v487
      %v2151 = vpop.f32.mrf.mxu0
      %v2152 = vadd.f32 0.0, %v2151
      %v2153 = vpop.f32.mrf.mxu0
      %2154 = vmatmul.bf16.gmra.mxu0 %v490
      %v2155 = vpop.f32.mrf.mxu0
      %v2156 = vadd.f32 0.0, %v2155
      %v2157 = vpop.f32.mrf.mxu0
      %v2158 = vadd.f32 0.0, %v2157
      %2159 = vmatmul.bf16.gmra.mxu0 %v493
      %v2160 = vpop.f32.mrf.mxu0
      %v2161 = vadd.f32 0.0, %v2160
      %v2162 = vpop.f32.mrf.mxu0
      %2163 = vmatmul.bf16.gmra.mxu0 %v496
      %v2164 = vpop.f32.mrf.mxu0
      %v2165 = vadd.f32 0.0, %v2164
      %v2166 = vpop.f32.mrf.mxu0
      %v2167 = vadd.f32 0.0, %v2166
      %2168 = vmatmul.bf16.gmra.mxu0 %v499
      %v2169 = vpop.f32.mrf.mxu0
      %v2170 = vadd.f32 0.0, %v2169
      %v2171 = vpop.f32.mrf.mxu0
      %2172 = vmatmul.bf16.gmra.mxu0 %v502
      %v2173 = vpop.f32.mrf.mxu0
      %v2174 = vadd.f32 0.0, %v2173
      %v2175 = vpop.f32.mrf.mxu0
      %v2176 = vadd.f32 0.0, %v2175
      %2177 = vmatmul.bf16.gmra.mxu0 %v505
      %v2178 = vpop.f32.mrf.mxu0
      %v2179 = vadd.f32 0.0, %v2178
      %v2180 = vpop.f32.mrf.mxu0
      %2181 = vdwg.mxu0
      %v2212 = vrot.slane %v2093, 2
      %v2213 = vrot.slane %v2095, 2
      %v2214 = vsel %vm1015, %v2212, %v2213
      %v2215 = vrot.slane %v2098, 2
      %v2216 = vsel %vm1015, %v2213, %v2215
      %v2217 = vrot.slane %v2102, 2
      %v2218 = vrot.slane %v2104, 2
      %v2219 = vsel %vm1015, %v2217, %v2218
      %v2220 = vrot.slane %v2107, 2
      %v2221 = vsel %vm1015, %v2218, %v2220
      %v2222 = vrot.slane %v2111, 2
      %v2223 = vrot.slane %v2113, 2
      %v2224 = vsel %vm1015, %v2222, %v2223
      %v2225 = vrot.slane %v2116, 2
      %v2226 = vsel %vm1015, %v2223, %v2225
      %v2227 = vrot.slane %v2120, 2
      %v2228 = vrot.slane %v2122, 2
      %v2229 = vsel %vm1015, %v2227, %v2228
      %v2230 = vrot.slane %v2125, 2
      %v2231 = vsel %vm1015, %v2228, %v2230
      %v2232 = vrot.slane %v2129, 2
      %v2233 = vrot.slane %v2131, 2
      %v2234 = vsel %vm1015, %v2232, %v2233
      %v2235 = vrot.slane %v2134, 2
      %v2236 = vsel %vm1015, %v2233, %v2235
      %v2237 = vrot.slane %v2138, 2
      %v2238 = vrot.slane %v2140, 2
      %v2239 = vsel %vm1015, %v2237, %v2238
      %v2240 = vrot.slane %v2143, 2
      %v2241 = vsel %vm1015, %v2238, %v2240
      %v2242 = vrot.slane %v2147, 2
      %v2243 = vrot.slane %v2149, 2
      %v2244 = vsel %vm1015, %v2242, %v2243
      %v2245 = vrot.slane %v2152, 2
      %v2246 = vsel %vm1015, %v2243, %v2245
      %v2247 = vrot.slane %v2156, 2
      %v2248 = vrot.slane %v2158, 2
      %v2249 = vsel %vm1015, %v2247, %v2248
      %v2250 = vrot.slane %v2161, 2
      %v2251 = vsel %vm1015, %v2248, %v2250
      %v2252 = vrot.slane %v2165, 2
      %v2253 = vrot.slane %v2167, 2
      %v2254 = vsel %vm1015, %v2252, %v2253
      %v2255 = vrot.slane %v2170, 2
      %v2256 = vsel %vm1015, %v2253, %v2255
      %v2257 = vrot.slane %v2174, 2
      %v2258 = vrot.slane %v2176, 2
      %v2259 = vsel %vm1015, %v2257, %v2258
      %v2260 = vrot.slane %v2179, 2
      %v2261 = vsel %vm1015, %v2258, %v2260
      %v2282 = vadd.f32 %v2046, %v2214
      %v2283 = vadd.f32 %v2047, %v2216
      %v2284 = vadd.f32 %v2048, %v2219
      %v2285 = vadd.f32 %v2049, %v2221
      %v2286 = vadd.f32 %v2050, %v2224
      %v2287 = vadd.f32 %v2051, %v2226
      %v2288 = vadd.f32 %v2052, %v2229
      %v2289 = vadd.f32 %v2053, %v2231
      %v2290 = vadd.f32 %v2054, %v2234
      %v2291 = vadd.f32 %v2055, %v2236
      %v2292 = vadd.f32 %v2056, %v2239
      %v2293 = vadd.f32 %v2057, %v2241
      %v2294 = vadd.f32 %v2058, %v2244
      %v2295 = vadd.f32 %v2059, %v2246
      %v2296 = vadd.f32 %v2060, %v2249
      %v2297 = vadd.f32 %v2061, %v2251
      %v2298 = vadd.f32 %v2062, %v2254
      %v2299 = vadd.f32 %v2063, %v2256
      %v2300 = vadd.f32 %v2064, %v2259
      %v2301 = vadd.f32 %v2065, %v2261
      %v2302 = vld [vmem:[%s2] sm:$0x1]
      %v2304 = vperm.slane %v2302, 0
      %v2306 = vadd.f32 %v2282, %v2304
      %v2307 = vadd.f32 %v2283, %v2304
      %v2308 = vadd.f32 %v2284, %v2304
      %v2309 = vadd.f32 %v2285, %v2304
      %v2310 = vadd.f32 %v2286, %v2304
      %v2311 = vadd.f32 %v2287, %v2304
      %v2312 = vadd.f32 %v2288, %v2304
      %v2313 = vadd.f32 %v2289, %v2304
      %v2314 = vadd.f32 %v2290, %v2304
      %v2315 = vadd.f32 %v2291, %v2304
      %v2316 = vadd.f32 %v2292, %v2304
      %v2317 = vadd.f32 %v2293, %v2304
      %v2318 = vadd.f32 %v2294, %v2304
      %v2319 = vadd.f32 %v2295, %v2304
      %v2320 = vadd.f32 %v2296, %v2304
      %v2321 = vadd.f32 %v2297, %v2304
      %v2322 = vadd.f32 %v2298, %v2304
      %v2323 = vadd.f32 %v2299, %v2304
      %v2324 = vadd.f32 %v2300, %v2304
      %v2325 = vadd.f32 %v2301, %v2304
      %v2326 = vmax.f32 %v2306, 0.0
      %v2327 = vmax.f32 %v2307, 0.0
      %v2328 = vmax.f32 %v2308, 0.0
      %v2329 = vmax.f32 %v2309, 0.0
      %v2330 = vmax.f32 %v2310, 0.0
      %v2331 = vmax.f32 %v2311, 0.0
      %v2332 = vmax.f32 %v2312, 0.0
      %v2333 = vmax.f32 %v2313, 0.0
      %v2334 = vmax.f32 %v2314, 0.0
      %v2335 = vmax.f32 %v2315, 0.0
      %v2336 = vmax.f32 %v2316, 0.0
      %v2337 = vmax.f32 %v2317, 0.0
      %v2338 = vmax.f32 %v2318, 0.0
      %v2339 = vmax.f32 %v2319, 0.0
      %v2340 = vmax.f32 %v2320, 0.0
      %v2341 = vmax.f32 %v2321, 0.0
      %v2342 = vmax.f32 %v2322, 0.0
      %v2343 = vmax.f32 %v2323, 0.0
      %v2344 = vmax.f32 %v2324, 0.0
      %v2345 = vmax.f32 %v2325, 0.0
      %v2346 = vpack.c.bf16 %v2326, %v2326
      %v2347 = vpack.c.bf16 %v2327, %v2327
      %v2348 = vpack.c.bf16 %v2328, %v2328
      %v2349 = vpack.c.bf16 %v2329, %v2329
      %v2350 = vpack.c.bf16 %v2330, %v2330
      %v2351 = vpack.c.bf16 %v2331, %v2331
      %v2352 = vpack.c.bf16 %v2332, %v2332
      %v2353 = vpack.c.bf16 %v2333, %v2333
      %v2354 = vpack.c.bf16 %v2334, %v2334
      %v2355 = vpack.c.bf16 %v2335, %v2335
      %v2356 = vpack.c.bf16 %v2336, %v2336
      %v2357 = vpack.c.bf16 %v2337, %v2337
      %v2358 = vpack.c.bf16 %v2338, %v2338
      %v2359 = vpack.c.bf16 %v2339, %v2339
      %v2360 = vpack.c.bf16 %v2340, %v2340
      %v2361 = vpack.c.bf16 %v2341, %v2341
      %v2362 = vpack.c.bf16 %v2342, %v2342
      %v2363 = vpack.c.bf16 %v2343, %v2343
      %v2364 = vpack.c.bf16 %v2344, %v2344
      %v2365 = vpack.c.bf16 %v2345, %v2345
      %vm2366 = vsmask.f32 256
      %vm2367 = vsmask.f32 4368
      %vm2368 = vmor %vm2366, %vm2367
      %v2370 = vshrl.u32 %v2346, 16
      %v2372 = vrot.slane %v2370, 7
      %v2373 = vshll.u32 %v2346, 16
      %v2375 = vor.u32 %v2372, %v2373
      %v2376 = vrot.slane %v2372, 4
      %v2378 = vshrl.u32 %v2347, 16
      %v2380 = vrot.slane %v2378, 7
      %v2381 = vshll.u32 %v2347, 16
      %v2383 = vor.u32 %v2380, %v2381
      %v2384 = vsel %vm2368, %v2376, %v2383
      %v2385 = vrot.slane %v2380, 4
      %v2387 = vshrl.u32 %v2348, 16
      %v2389 = vrot.slane %v2387, 7
      %v2390 = vshll.u32 %v2348, 16
      %v2392 = vor.u32 %v2389, %v2390
      %v2393 = vrot.slane %v2389, 4
      %v2395 = vshrl.u32 %v2349, 16
      %v2397 = vrot.slane %v2395, 7
      %v2398 = vshll.u32 %v2349, 16
      %v2400 = vor.u32 %v2397, %v2398
      %v2401 = vsel %vm2368, %v2393, %v2400
      %v2402 = vrot.slane %v2397, 4
      %v2404 = vshrl.u32 %v2350, 16
      %v2406 = vrot.slane %v2404, 7
      %v2407 = vshll.u32 %v2350, 16
      %v2409 = vor.u32 %v2406, %v2407
      %v2410 = vrot.slane %v2406, 4
      %v2412 = vshrl.u32 %v2351, 16
      %v2414 = vrot.slane %v2412, 7
      %v2415 = vshll.u32 %v2351, 16
      %v2417 = vor.u32 %v2414, %v2415
      %v2418 = vsel %vm2368, %v2410, %v2417
      %v2419 = vrot.slane %v2414, 4
      %v2421 = vshrl.u32 %v2352, 16
      %v2423 = vrot.slane %v2421, 7
      %v2424 = vshll.u32 %v2352, 16
      %v2426 = vor.u32 %v2423, %v2424
      %v2427 = vrot.slane %v2423, 4
      %v2429 = vshrl.u32 %v2353, 16
      %v2431 = vrot.slane %v2429, 7
      %v2432 = vshll.u32 %v2353, 16
      %v2434 = vor.u32 %v2431, %v2432
      %v2435 = vsel %vm2368, %v2427, %v2434
      %v2436 = vrot.slane %v2431, 4
      %v2438 = vshrl.u32 %v2354, 16
      %v2440 = vrot.slane %v2438, 7
      %v2441 = vshll.u32 %v2354, 16
      %v2443 = vor.u32 %v2440, %v2441
      %v2444 = vrot.slane %v2440, 4
      %v2446 = vshrl.u32 %v2355, 16
      %v2448 = vrot.slane %v2446, 7
      %v2449 = vshll.u32 %v2355, 16
      %v2451 = vor.u32 %v2448, %v2449
      %v2452 = vsel %vm2368, %v2444, %v2451
      %v2453 = vrot.slane %v2448, 4
      %v2455 = vshrl.u32 %v2356, 16
      %v2457 = vrot.slane %v2455, 7
      %v2458 = vshll.u32 %v2356, 16
      %v2460 = vor.u32 %v2457, %v2458
      %v2461 = vrot.slane %v2457, 4
      %v2463 = vshrl.u32 %v2357, 16
      %v2465 = vrot.slane %v2463, 7
      %v2466 = vshll.u32 %v2357, 16
      %v2468 = vor.u32 %v2465, %v2466
      %v2469 = vsel %vm2368, %v2461, %v2468
      %v2470 = vrot.slane %v2465, 4
      %v2472 = vshrl.u32 %v2358, 16
      %v2474 = vrot.slane %v2472, 7
      %v2475 = vshll.u32 %v2358, 16
      %v2477 = vor.u32 %v2474, %v2475
      %v2478 = vrot.slane %v2474, 4
      %v2480 = vshrl.u32 %v2359, 16
      %v2482 = vrot.slane %v2480, 7
      %v2483 = vshll.u32 %v2359, 16
      %v2485 = vor.u32 %v2482, %v2483
      %v2486 = vsel %vm2368, %v2478, %v2485
      %v2487 = vrot.slane %v2482, 4
      %v2489 = vshrl.u32 %v2360, 16
      %v2491 = vrot.slane %v2489, 7
      %v2492 = vshll.u32 %v2360, 16
      %v2494 = vor.u32 %v2491, %v2492
      %v2495 = vrot.slane %v2491, 4
      %v2497 = vshrl.u32 %v2361, 16
      %v2499 = vrot.slane %v2497, 7
      %v2500 = vshll.u32 %v2361, 16
      %v2502 = vor.u32 %v2499, %v2500
      %v2503 = vsel %vm2368, %v2495, %v2502
      %v2504 = vrot.slane %v2499, 4
      %v2506 = vshrl.u32 %v2362, 16
      %v2508 = vrot.slane %v2506, 7
      %v2509 = vshll.u32 %v2362, 16
      %v2511 = vor.u32 %v2508, %v2509
      %v2512 = vrot.slane %v2508, 4
      %v2514 = vshrl.u32 %v2363, 16
      %v2516 = vrot.slane %v2514, 7
      %v2517 = vshll.u32 %v2363, 16
      %v2519 = vor.u32 %v2516, %v2517
      %v2520 = vsel %vm2368, %v2512, %v2519
      %v2521 = vrot.slane %v2516, 4
      %v2523 = vshrl.u32 %v2364, 16
      %v2525 = vrot.slane %v2523, 7
      %v2526 = vshll.u32 %v2364, 16
      %v2528 = vor.u32 %v2525, %v2526
      %v2529 = vrot.slane %v2525, 4
      %v2531 = vshrl.u32 %v2365, 16
      %v2533 = vrot.slane %v2531, 7
      %v2534 = vshll.u32 %v2365, 16
      %v2536 = vor.u32 %v2533, %v2534
      %v2537 = vsel %vm2368, %v2529, %v2536
      %v2538 = vrot.slane %v2533, 4
      %vm2569 = vcmask 27648
      %vm2570 = vsmask.f32 7938
      %vm2571 = vmand %vm2569, %vm2570
      %v2572 = vld [vmem:[#allocation2] sm:$0xf]
      %v2573 = vsel %vm2571, %v2375, %v2572
      %2574 = vst [vmem:[#allocation2] sm:$0xf] %v2573
      %vm2575 = vcmask 27648
      %2576 = vst.msk [vmem:[#allocation2 + $0x4] sm:$0xf] %vm2575, %v2384
      %vm2577 = vcmask 24576
      %vm2578 = vmand %vm2577, %vm2366
      %v2579 = vld [vmem:[#allocation2 + $0x8] sm:$0x1]
      %v2580 = vsel %vm2578, %v2385, %v2579
      %2581 = vst [vmem:[#allocation2 + $0x8] sm:$0x1] %v2580
      %v2582 = vld [vmem:[#allocation2 + $0x10] sm:$0xf]
      %v2583 = vsel %vm2571, %v2392, %v2582
      %2584 = vst [vmem:[#allocation2 + $0x10] sm:$0xf] %v2583
      %2585 = vst.msk [vmem:[#allocation2 + $0x14] sm:$0xf] %vm2575, %v2401
      %v2586 = vld [vmem:[#allocation2 + $0x18] sm:$0x1]
      %v2587 = vsel %vm2578, %v2402, %v2586
      %2588 = vst [vmem:[#allocation2 + $0x18] sm:$0x1] %v2587
      %v2589 = vld [vmem:[#allocation2 + $0x20] sm:$0xf]
      %v2590 = vsel %vm2571, %v2409, %v2589
      %2591 = vst [vmem:[#allocation2 + $0x20] sm:$0xf] %v2590
      %2592 = vst.msk [vmem:[#allocation2 + $0x24] sm:$0xf] %vm2575, %v2418
      %v2593 = vld [vmem:[#allocation2 + $0x28] sm:$0x1]
      %v2594 = vsel %vm2578, %v2419, %v2593
      %2595 = vst [vmem:[#allocation2 + $0x28] sm:$0x1] %v2594
      %v2596 = vld [vmem:[#allocation2 + $0x30] sm:$0xf]
      %v2597 = vsel %vm2571, %v2426, %v2596
      %2598 = vst [vmem:[#allocation2 + $0x30] sm:$0xf] %v2597
      %2599 = vst.msk [vmem:[#allocation2 + $0x34] sm:$0xf] %vm2575, %v2435
      %v2600 = vld [vmem:[#allocation2 + $0x38] sm:$0x1]
      %v2601 = vsel %vm2578, %v2436, %v2600
      %2602 = vst [vmem:[#allocation2 + $0x38] sm:$0x1] %v2601
      %v2603 = vld [vmem:[#allocation2 + $0x40] sm:$0xf]
      %v2604 = vsel %vm2571, %v2443, %v2603
      %2605 = vst [vmem:[#allocation2 + $0x40] sm:$0xf] %v2604
      %2606 = vst.msk [vmem:[#allocation2 + $0x44] sm:$0xf] %vm2575, %v2452
      %v2607 = vld [vmem:[#allocation2 + $0x48] sm:$0x1]
      %v2608 = vsel %vm2578, %v2453, %v2607
      %2609 = vst [vmem:[#allocation2 + $0x48] sm:$0x1] %v2608
      %v2610 = vld [vmem:[#allocation2 + $0x50] sm:$0xf]
      %v2611 = vsel %vm2571, %v2460, %v2610
      %2612 = vst [vmem:[#allocation2 + $0x50] sm:$0xf] %v2611
      %2613 = vst.msk [vmem:[#allocation2 + $0x54] sm:$0xf] %vm2575, %v2469
      %v2614 = vld [vmem:[#allocation2 + $0x58] sm:$0x1]
      %v2615 = vsel %vm2578, %v2470, %v2614
      %2616 = vst [vmem:[#allocation2 + $0x58] sm:$0x1] %v2615
      %v2617 = vld [vmem:[#allocation2 + $0x60] sm:$0xf]
      %v2618 = vsel %vm2571, %v2477, %v2617
      %2619 = vst [vmem:[#allocation2 + $0x60] sm:$0xf] %v2618
      %2620 = vst.msk [vmem:[#allocation2 + $0x64] sm:$0xf] %vm2575, %v2486
      %v2621 = vld [vmem:[#allocation2 + $0x68] sm:$0x1]
      %v2622 = vsel %vm2578, %v2487, %v2621
      %2623 = vst [vmem:[#allocation2 + $0x68] sm:$0x1] %v2622
      %v2624 = vld [vmem:[#allocation2 + $0x70] sm:$0xf]
      %v2625 = vsel %vm2571, %v2494, %v2624
      %2626 = vst [vmem:[#allocation2 + $0x70] sm:$0xf] %v2625
      %2627 = vst.msk [vmem:[#allocation2 + $0x74] sm:$0xf] %vm2575, %v2503
      %v2628 = vld [vmem:[#allocation2 + $0x78] sm:$0x1]
      %v2629 = vsel %vm2578, %v2504, %v2628
      %2630 = vst [vmem:[#allocation2 + $0x78] sm:$0x1] %v2629
      %v2631 = vld [vmem:[#allocation2 + $0x80] sm:$0xf]
      %v2632 = vsel %vm2571, %v2511, %v2631
      %2633 = vst [vmem:[#allocation2 + $0x80] sm:$0xf] %v2632
      %2634 = vst.msk [vmem:[#allocation2 + $0x84] sm:$0xf] %vm2575, %v2520
      %v2635 = vld [vmem:[#allocation2 + $0x88] sm:$0x1]
      %v2636 = vsel %vm2578, %v2521, %v2635
      %2637 = vst [vmem:[#allocation2 + $0x88] sm:$0x1] %v2636
      %v2638 = vld [vmem:[#allocation2 + $0x90] sm:$0xf]
      %v2639 = vsel %vm2571, %v2528, %v2638
      %2640 = vst [vmem:[#allocation2 + $0x90] sm:$0xf] %v2639
      %2641 = vst.msk [vmem:[#allocation2 + $0x94] sm:$0xf] %vm2575, %v2537
      %v2642 = vld [vmem:[#allocation2 + $0x98] sm:$0x1]
      %v2643 = vsel %vm2578, %v2538, %v2642
      %2644 = vst [vmem:[#allocation2 + $0x98] sm:$0x1] %v2643
      %v2645 = vrot.slane %v2370, 4
      %v2646 = vrot.slane %v2645, 4
      %v2647 = vrot.slane %v2387, 4
      %v2648 = vrot.slane %v2647, 4
      %v2649 = vrot.slane %v2404, 4
      %v2650 = vrot.slane %v2649, 4
      %v2651 = vrot.slane %v2421, 4
      %v2652 = vrot.slane %v2651, 4
      %v2653 = vrot.slane %v2438, 4
      %v2654 = vrot.slane %v2653, 4
      %v2655 = vrot.slane %v2455, 4
      %v2656 = vrot.slane %v2655, 4
      %v2657 = vrot.slane %v2472, 4
      %v2658 = vrot.slane %v2657, 4
      %v2659 = vrot.slane %v2489, 4
      %v2660 = vrot.slane %v2659, 4
      %v2661 = vrot.slane %v2506, 4
      %v2662 = vrot.slane %v2661, 4
      %v2663 = vrot.slane %v2523, 4
      %v2664 = vrot.slane %v2663, 4
      %v2675 = vld [vmem:[#allocation2] sm:$0x1]
      %v2676 = vsel %vm2578, %v2646, %v2675
      %2677 = vst [vmem:[#allocation2] sm:$0x1] %v2676
      %v2678 = vld [vmem:[#allocation2 + $0x10] sm:$0x1]
      %v2679 = vsel %vm2578, %v2648, %v2678
      %2680 = vst [vmem:[#allocation2 + $0x10] sm:$0x1] %v2679
      %v2681 = vld [vmem:[#allocation2 + $0x20] sm:$0x1]
      %v2682 = vsel %vm2578, %v2650, %v2681
      %2683 = vst [vmem:[#allocation2 + $0x20] sm:$0x1] %v2682
      %v2684 = vld [vmem:[#allocation2 + $0x30] sm:$0x1]
      %v2685 = vsel %vm2578, %v2652, %v2684
      %2686 = vst [vmem:[#allocation2 + $0x30] sm:$0x1] %v2685
      %v2687 = vld [vmem:[#allocation2 + $0x40] sm:$0x1]
      %v2688 = vsel %vm2578, %v2654, %v2687
      %2689 = vst [vmem:[#allocation2 + $0x40] sm:$0x1] %v2688
      %v2690 = vld [vmem:[#allocation2 + $0x50] sm:$0x1]
      %v2691 = vsel %vm2578, %v2656, %v2690
      %2692 = vst [vmem:[#allocation2 + $0x50] sm:$0x1] %v2691
      %v2693 = vld [vmem:[#allocation2 + $0x60] sm:$0x1]
      %v2694 = vsel %vm2578, %v2658, %v2693
      %2695 = vst [vmem:[#allocation2 + $0x60] sm:$0x1] %v2694
      %v2696 = vld [vmem:[#allocation2 + $0x70] sm:$0x1]
      %v2697 = vsel %vm2578, %v2660, %v2696
      %2698 = vst [vmem:[#allocation2 + $0x70] sm:$0x1] %v2697
      %v2699 = vld [vmem:[#allocation2 + $0x80] sm:$0x1]
      %v2700 = vsel %vm2578, %v2662, %v2699
      %2701 = vst [vmem:[#allocation2 + $0x80] sm:$0x1] %v2700
      %v2702 = vld [vmem:[#allocation2 + $0x90] sm:$0x1]
      %v2703 = vsel %vm2578, %v2664, %v2702
      %2704 = vst [vmem:[#allocation2 + $0x90] sm:$0x1] %v2703
      %v2705 = vrot.slane %v2381, 7
      %v2706 = vrot.slane %v2705, 4
      %v2707 = vrot.slane %v2398, 7
      %v2708 = vrot.slane %v2707, 4
      %v2709 = vrot.slane %v2415, 7
      %v2710 = vrot.slane %v2709, 4
      %v2711 = vrot.slane %v2432, 7
      %v2712 = vrot.slane %v2711, 4
      %v2713 = vrot.slane %v2449, 7
      %v2714 = vrot.slane %v2713, 4
      %v2715 = vrot.slane %v2466, 7
      %v2716 = vrot.slane %v2715, 4
      %v2717 = vrot.slane %v2483, 7
      %v2718 = vrot.slane %v2717, 4
      %v2719 = vrot.slane %v2500, 7
      %v2720 = vrot.slane %v2719, 4
      %v2721 = vrot.slane %v2517, 7
      %v2722 = vrot.slane %v2721, 4
      %v2723 = vrot.slane %v2534, 7
      %v2724 = vrot.slane %v2723, 4
      %vm2735 = vmand %vm2577, %vm2570
      %v2736 = vld [vmem:[#allocation2 + $0x8] sm:$0x1]
      %v2737 = vsel %vm2735, %v2706, %v2736
      %2738 = vst [vmem:[#allocation2 + $0x8] sm:$0x1] %v2737
      %v2739 = vld [vmem:[#allocation2 + $0x18] sm:$0x1]
      %v2740 = vsel %vm2735, %v2708, %v2739
      %2741 = vst [vmem:[#allocation2 + $0x18] sm:$0x1] %v2740
      %v2742 = vld [vmem:[#allocation2 + $0x28] sm:$0x1]
      %v2743 = vsel %vm2735, %v2710, %v2742
      %2744 = vst [vmem:[#allocation2 + $0x28] sm:$0x1] %v2743
      %v2745 = vld [vmem:[#allocation2 + $0x38] sm:$0x1]
      %v2746 = vsel %vm2735, %v2712, %v2745
      %2747 = vst [vmem:[#allocation2 + $0x38] sm:$0x1] %v2746
      %v2748 = vld [vmem:[#allocation2 + $0x48] sm:$0x1]
      %v2749 = vsel %vm2735, %v2714, %v2748
      %2750 = vst [vmem:[#allocation2 + $0x48] sm:$0x1] %v2749
      %v2751 = vld [vmem:[#allocation2 + $0x58] sm:$0x1]
      %v2752 = vsel %vm2735, %v2716, %v2751
      %2753 = vst [vmem:[#allocation2 + $0x58] sm:$0x1] %v2752
      %v2754 = vld [vmem:[#allocation2 + $0x68] sm:$0x1]
      %v2755 = vsel %vm2735, %v2718, %v2754
      %2756 = vst [vmem:[#allocation2 + $0x68] sm:$0x1] %v2755
      %v2757 = vld [vmem:[#allocation2 + $0x78] sm:$0x1]
      %v2758 = vsel %vm2735, %v2720, %v2757
      %2759 = vst [vmem:[#allocation2 + $0x78] sm:$0x1] %v2758
      %v2760 = vld [vmem:[#allocation2 + $0x88] sm:$0x1]
      %v2761 = vsel %vm2735, %v2722, %v2760
      %2762 = vst [vmem:[#allocation2 + $0x88] sm:$0x1] %v2761
      %v2763 = vld [vmem:[#allocation2 + $0x98] sm:$0x1]
      %v2764 = vsel %vm2735, %v2724, %v2763
      %2765 = vst [vmem:[#allocation2 + $0x98] sm:$0x1] %v2764
      %vm2766 = vcmask 27649
      %2767 = vst.msk [vmem:[#allocation2 + $0x8] sm:$0xe] %vm2766, 0
      %2768 = vst.msk [vmem:[#allocation2 + $0xc] sm:$0xf] %vm2575, 0
      %2769 = vst.msk [vmem:[#allocation2 + $0x18] sm:$0xe] %vm2766, 0
      %2770 = vst.msk [vmem:[#allocation2 + $0x1c] sm:$0xf] %vm2575, 0
      %2771 = vst.msk [vmem:[#allocation2 + $0x28] sm:$0xe] %vm2766, 0
      %2772 = vst.msk [vmem:[#allocation2 + $0x2c] sm:$0xf] %vm2575, 0
      %2773 = vst.msk [vmem:[#allocation2 + $0x38] sm:$0xe] %vm2766, 0
      %2774 = vst.msk [vmem:[#allocation2 + $0x3c] sm:$0xf] %vm2575, 0
      %2775 = vst.msk [vmem:[#allocation2 + $0x48] sm:$0xe] %vm2766, 0
      %2776 = vst.msk [vmem:[#allocation2 + $0x4c] sm:$0xf] %vm2575, 0
      %2777 = vst.msk [vmem:[#allocation2 + $0x58] sm:$0xe] %vm2766, 0
      %2778 = vst.msk [vmem:[#allocation2 + $0x5c] sm:$0xf] %vm2575, 0
      %2779 = vst.msk [vmem:[#allocation2 + $0x68] sm:$0xe] %vm2766, 0
      %2780 = vst.msk [vmem:[#allocation2 + $0x6c] sm:$0xf] %vm2575, 0
      %2781 = vst.msk [vmem:[#allocation2 + $0x78] sm:$0xe] %vm2766, 0
      %2782 = vst.msk [vmem:[#allocation2 + $0x7c] sm:$0xf] %vm2575, 0
      %2783 = vst.msk [vmem:[#allocation2 + $0x88] sm:$0xe] %vm2766, 0
      %2784 = vst.msk [vmem:[#allocation2 + $0x8c] sm:$0xf] %vm2575, 0
      %2785 = vst.msk [vmem:[#allocation2 + $0x98] sm:$0xe] %vm2766, 0
      %2786 = vst.msk [vmem:[#allocation2 + $0x9c] sm:$0xf] %vm2575, 0
      %p2787 = scmp.eq.s32.totalorder %s21, 0
      // Predicated region
      $region41: #{resnet_block_forward.1} parent=39 // pred_check
        %p2788 = pneg %p2787
      $region42: #{resnet_block_forward.1} parent=39 // pred_check_branch
        %2790 = sbr.rel (%p2788) target = $region44
      $region43: #{resnet_block_forward.1} parent=39 // pred_region
        %s2791 = scalar_lea.vmem [#allocation2], 32
        %v2792 = vld [vmem:[%s2791] sm:$0xf]
        %v2793 = vld [vmem:[%s2791 + $0x4] sm:$0xf]
        %v2794 = vld [vmem:[%s2791 + $0x8] sm:$0xf]
        %v2795 = vld [vmem:[%s2791 + $0xc] sm:$0xf]
        %2796 = vst.msk [vmem:[#allocation2] sm:$0xf] %vm2575, %v2792
        %2797 = vst.msk [vmem:[#allocation2 + $0x4] sm:$0xf] %vm2575, %v2793
        %2798 = vst.msk [vmem:[#allocation2 + $0x8] sm:$0xf] %vm2575, %v2794
        %2799 = vst.msk [vmem:[#allocation2 + $0xc] sm:$0xf] %vm2575, %v2795
      $region44: #{resnet_block_forward.1} parent=39 // pred_fallthru
        _
      %p2800 = scmp.eq.s32.totalorder %s21, 1
      // Predicated region
      $region45: #{resnet_block_forward.1} parent=39 // pred_check
        %p2801 = pneg %p2800
      $region46: #{resnet_block_forward.1} parent=39 // pred_check_branch
        %2803 = sbr.rel (%p2801) target = $region48
      $region47: #{resnet_block_forward.1} parent=39 // pred_region
        %s2804 = scalar_lea.vmem [#allocation2], 112
        %v2805 = vld [vmem:[%s2804] sm:$0xf]
        %v2806 = vld [vmem:[%s2804 + $0x4] sm:$0xf]
        %v2807 = vld [vmem:[%s2804 + $0x8] sm:$0xf]
        %v2808 = vld [vmem:[%s2804 + $0xc] sm:$0xf]
        %s2809 = scalar_lea.vmem [#allocation2], 144
        %2810 = vst.msk [vmem:[%s2809] sm:$0xf] %vm2575, %v2805
        %2811 = vst.msk [vmem:[%s2809 + $0x4] sm:$0xf] %vm2575, %v2806
        %2812 = vst.msk [vmem:[%s2809 + $0x8] sm:$0xf] %vm2575, %v2807
        %2813 = vst.msk [vmem:[%s2809 + $0xc] sm:$0xf] %vm2575, %v2808
      $region48: #{resnet_block_forward.1} parent=39 // pred_fallthru
        _
      %v2814 = vld [vmem:[#allocation2] sm:$0xf]
      %v2815 = vld [vmem:[#allocation2 + $0x4] sm:$0xf]
      %v2816 = vld [vmem:[#allocation2 + $0x8] sm:$0xf]
      %v2817 = vld [vmem:[#allocation2 + $0xc] sm:$0xf]
      %v2818 = vld [vmem:[#allocation2 + $0x10] sm:$0xf]
      %v2819 = vld [vmem:[#allocation2 + $0x14] sm:$0xf]
      %v2820 = vld [vmem:[#allocation2 + $0x18] sm:$0xf]
      %v2821 = vld [vmem:[#allocation2 + $0x1c] sm:$0xf]
      %v2822 = vld [vmem:[#allocation2 + $0x20] sm:$0xf]
      %v2823 = vld [vmem:[#allocation2 + $0x24] sm:$0xf]
      %v2824 = vld [vmem:[#allocation2 + $0x28] sm:$0xf]
      %v2825 = vld [vmem:[#allocation2 + $0x2c] sm:$0xf]
      %v2826 = vld [vmem:[#allocation2 + $0x30] sm:$0xf]
      %v2827 = vld [vmem:[#allocation2 + $0x34] sm:$0xf]
      %v2828 = vld [vmem:[#allocation2 + $0x38] sm:$0xf]
      %v2829 = vld [vmem:[#allocation2 + $0x3c] sm:$0xf]
      %v2830 = vld [vmem:[#allocation2 + $0x40] sm:$0xf]
      %v2831 = vld [vmem:[#allocation2 + $0x44] sm:$0xf]
      %v2832 = vld [vmem:[#allocation2 + $0x48] sm:$0xf]
      %v2833 = vld [vmem:[#allocation2 + $0x4c] sm:$0xf]
      %v2834 = vld [vmem:[#allocation2 + $0x50] sm:$0xf]
      %v2835 = vld [vmem:[#allocation2 + $0x54] sm:$0xf]
      %v2836 = vld [vmem:[#allocation2 + $0x58] sm:$0xf]
      %v2837 = vld [vmem:[#allocation2 + $0x5c] sm:$0xf]
      %v2838 = vld [vmem:[#allocation2 + $0x60] sm:$0xf]
      %v2839 = vld [vmem:[#allocation2 + $0x64] sm:$0xf]
      %v2840 = vld [vmem:[#allocation2 + $0x68] sm:$0xf]
      %v2841 = vld [vmem:[#allocation2 + $0x6c] sm:$0xf]
      %v2842 = vld [vmem:[#allocation2 + $0x70] sm:$0xf]
      %v2843 = vld [vmem:[#allocation2 + $0x74] sm:$0xf]
      %v2844 = vld [vmem:[#allocation2 + $0x78] sm:$0xf]
      %v2845 = vld [vmem:[#allocation2 + $0x7c] sm:$0xf]
      %v2846 = vld [vmem:[#allocation2 + $0x80] sm:$0xf]
      %v2847 = vld [vmem:[#allocation2 + $0x84] sm:$0xf]
      %v2848 = vld [vmem:[#allocation2 + $0x88] sm:$0xf]
      %v2849 = vld [vmem:[#allocation2 + $0x8c] sm:$0xf]
      %v2850 = vld [vmem:[#allocation2 + $0x90] sm:$0xf]
      %v2851 = vld [vmem:[#allocation2 + $0x94] sm:$0xf]
      %v2852 = vld [vmem:[#allocation2 + $0x98] sm:$0xf]
      %v2853 = vld [vmem:[#allocation2 + $0x9c] sm:$0xf]
      %v2854 = vld [vmem:[%s3] sm:$0x3]
      %v2895 = vunpack.c.l.b16 %v2814
      %v2896 = vunpack.c.l.b16 %v2815
      %v2897 = vunpack.c.l.b16 %v2816
      %v2898 = vunpack.c.l.b16 %v2817
      %v2899 = vunpack.c.l.b16 %v2818
      %v2900 = vunpack.c.l.b16 %v2819
      %v2901 = vunpack.c.l.b16 %v2820
      %v2902 = vunpack.c.l.b16 %v2821
      %v2903 = vunpack.c.l.b16 %v2822
      %v2904 = vunpack.c.l.b16 %v2823
      %v2905 = vunpack.c.l.b16 %v2824
      %v2906 = vunpack.c.l.b16 %v2825
      %v2907 = vunpack.c.l.b16 %v2826
      %v2908 = vunpack.c.l.b16 %v2827
      %v2909 = vunpack.c.l.b16 %v2828
      %v2910 = vunpack.c.l.b16 %v2829
      %v2911 = vunpack.c.l.b16 %v2830
      %v2912 = vunpack.c.l.b16 %v2831
      %v2913 = vunpack.c.l.b16 %v2832
      %v2914 = vunpack.c.l.b16 %v2833
      %v2915 = vunpack.c.l.b16 %v2834
      %v2916 = vunpack.c.l.b16 %v2835
      %v2917 = vunpack.c.l.b16 %v2836
      %v2918 = vunpack.c.l.b16 %v2837
      %v2919 = vunpack.c.l.b16 %v2838
      %v2920 = vunpack.c.l.b16 %v2839
      %v2921 = vunpack.c.l.b16 %v2840
      %v2922 = vunpack.c.l.b16 %v2841
      %v2923 = vunpack.c.l.b16 %v2842
      %v2924 = vunpack.c.l.b16 %v2843
      %v2925 = vunpack.c.l.b16 %v2844
      %v2926 = vunpack.c.l.b16 %v2845
      %v2927 = vunpack.c.l.b16 %v2846
      %v2928 = vunpack.c.l.b16 %v2847
      %v2929 = vunpack.c.l.b16 %v2848
      %v2930 = vunpack.c.l.b16 %v2849
      %v2931 = vunpack.c.l.b16 %v2850
      %v2932 = vunpack.c.l.b16 %v2851
      %v2933 = vunpack.c.l.b16 %v2852
      %v2934 = vunpack.c.l.b16 %v2853
      %v2935 = vpack.c.b16 %v2896, %v2895
      %v2936 = vpack.c.b16 %v2898, %v2897
      %v2937 = vpack.c.b16 %v2900, %v2899
      %v2938 = vpack.c.b16 %v2902, %v2901
      %v2939 = vpack.c.b16 %v2904, %v2903
      %v2940 = vpack.c.b16 %v2906, %v2905
      %v2941 = vpack.c.b16 %v2908, %v2907
      %v2942 = vpack.c.b16 %v2910, %v2909
      %v2943 = vpack.c.b16 %v2912, %v2911
      %v2944 = vpack.c.b16 %v2914, %v2913
      %v2945 = vpack.c.b16 %v2916, %v2915
      %v2946 = vpack.c.b16 %v2918, %v2917
      %v2947 = vpack.c.b16 %v2920, %v2919
      %v2948 = vpack.c.b16 %v2922, %v2921
      %v2949 = vpack.c.b16 %v2924, %v2923
      %v2950 = vpack.c.b16 %v2926, %v2925
      %v2951 = vpack.c.b16 %v2928, %v2927
      %v2952 = vpack.c.b16 %v2930, %v2929
      %v2953 = vpack.c.b16 %v2932, %v2931
      %v2954 = vpack.c.b16 %v2934, %v2933
      %v2956 = vsel %vm434, %v2935, 0
      %v2959 = vsel %vm434, %v2936, 0
      %v2962 = vsel %vm434, %v2937, 0
      %v2965 = vsel %vm434, %v2938, 0
      %v2968 = vsel %vm434, %v2939, 0
      %v2971 = vsel %vm434, %v2940, 0
      %v2974 = vsel %vm434, %v2941, 0
      %v2977 = vsel %vm434, %v2942, 0
      %v2980 = vsel %vm434, %v2943, 0
      %v2983 = vsel %vm434, %v2944, 0
      %v2986 = vsel %vm434, %v2945, 0
      %v2989 = vsel %vm434, %v2946, 0
      %v2992 = vsel %vm434, %v2947, 0
      %v2995 = vsel %vm434, %v2948, 0
      %v2998 = vsel %vm434, %v2949, 0
      %v3001 = vsel %vm434, %v2950, 0
      %v3004 = vsel %vm434, %v2951, 0
      %v3007 = vsel %vm434, %v2952, 0
      %v3010 = vsel %vm434, %v2953, 0
      %v3013 = vsel %vm434, %v2954, 0
      %v3016 = vsel %vm507, %v2854, 0
      %3018 = vmatpush.bf16.msra.mxu0 0
      %3019 = vmatpush.bf16.msra.mxu0 0
      %3020 = vmatpush.bf16.msra.mxu0 0
      %3021 = vmatpush.bf16.msra.mxu0 0
      %3022 = vmatpush.bf16.msra.mxu0 0
      %3023 = vmatpush.bf16.msra.mxu0 0
      %3024 = vmatpush.bf16.msra.mxu0 0
      %3025 = vmatpush.bf16.msra.mxu0 %v3016
      %3026 = vmatmul.bf16.gmra.mxu0 %v2956
      %v3027 = vpop.f32.mrf.mxu0
      %v3028 = vadd.f32 0.0, %v3027
      %v3029 = vpop.f32.mrf.mxu0
      %v3030 = vadd.f32 0.0, %v3029
      %3031 = vmatmul.bf16.gmra.mxu0 %v2959
      %v3032 = vpop.f32.mrf.mxu0
      %v3033 = vpop.f32.mrf.mxu0
      %3034 = vmatmul.bf16.gmra.mxu0 %v2962
      %v3035 = vpop.f32.mrf.mxu0
      %v3036 = vadd.f32 0.0, %v3035
      %v3037 = vpop.f32.mrf.mxu0
      %v3038 = vadd.f32 0.0, %v3037
      %3039 = vmatmul.bf16.gmra.mxu0 %v2965
      %v3040 = vpop.f32.mrf.mxu0
      %v3041 = vpop.f32.mrf.mxu0
      %3042 = vmatmul.bf16.gmra.mxu0 %v2968
      %v3043 = vpop.f32.mrf.mxu0
      %v3044 = vadd.f32 0.0, %v3043
      %v3045 = vpop.f32.mrf.mxu0
      %v3046 = vadd.f32 0.0, %v3045
      %3047 = vmatmul.bf16.gmra.mxu0 %v2971
      %v3048 = vpop.f32.mrf.mxu0
      %v3049 = vpop.f32.mrf.mxu0
      %3050 = vmatmul.bf16.gmra.mxu0 %v2974
      %v3051 = vpop.f32.mrf.mxu0
      %v3052 = vadd.f32 0.0, %v3051
      %v3053 = vpop.f32.mrf.mxu0
      %v3054 = vadd.f32 0.0, %v3053
      %3055 = vmatmul.bf16.gmra.mxu0 %v2977
      %v3056 = vpop.f32.mrf.mxu0
      %v3057 = vpop.f32.mrf.mxu0
      %3058 = vmatmul.bf16.gmra.mxu0 %v2980
      %v3059 = vpop.f32.mrf.mxu0
      %v3060 = vadd.f32 0.0, %v3059
      %v3061 = vpop.f32.mrf.mxu0
      %v3062 = vadd.f32 0.0, %v3061
      %3063 = vmatmul.bf16.gmra.mxu0 %v2983
      %v3064 = vpop.f32.mrf.mxu0
      %v3065 = vpop.f32.mrf.mxu0
      %3066 = vmatmul.bf16.gmra.mxu0 %v2986
      %v3067 = vpop.f32.mrf.mxu0
      %v3068 = vadd.f32 0.0, %v3067
      %v3069 = vpop.f32.mrf.mxu0
      %v3070 = vadd.f32 0.0, %v3069
      %3071 = vmatmul.bf16.gmra.mxu0 %v2989
      %v3072 = vpop.f32.mrf.mxu0
      %v3073 = vpop.f32.mrf.mxu0
      %3074 = vmatmul.bf16.gmra.mxu0 %v2992
      %v3075 = vpop.f32.mrf.mxu0
      %v3076 = vadd.f32 0.0, %v3075
      %v3077 = vpop.f32.mrf.mxu0
      %v3078 = vadd.f32 0.0, %v3077
      %3079 = vmatmul.bf16.gmra.mxu0 %v2995
      %v3080 = vpop.f32.mrf.mxu0
      %v3081 = vpop.f32.mrf.mxu0
      %3082 = vmatmul.bf16.gmra.mxu0 %v2998
      %v3083 = vpop.f32.mrf.mxu0
      %v3084 = vadd.f32 0.0, %v3083
      %v3085 = vpop.f32.mrf.mxu0
      %v3086 = vadd.f32 0.0, %v3085
      %3087 = vmatmul.bf16.gmra.mxu0 %v3001
      %v3088 = vpop.f32.mrf.mxu0
      %v3089 = vpop.f32.mrf.mxu0
      %3090 = vmatmul.bf16.gmra.mxu0 %v3004
      %v3091 = vpop.f32.mrf.mxu0
      %v3092 = vpop.f32.mrf.mxu0
      %3093 = vmatmul.bf16.gmra.mxu0 %v3007
      %v3094 = vpop.f32.mrf.mxu0
      %v3095 = vpop.f32.mrf.mxu0
      %3096 = vmatmul.bf16.gmra.mxu0 %v3010
      %v3097 = vpop.f32.mrf.mxu0
      %v3098 = vpop.f32.mrf.mxu0
      %3099 = vmatmul.bf16.gmra.mxu0 %v3013
      %v3100 = vpop.f32.mrf.mxu0
      %v3101 = vpop.f32.mrf.mxu0
      %3102 = vdwg.mxu0
      %v3103 = vadd.f32 %v3028, 0.0
      %v3104 = vadd.f32 %v3030, 0.0
      %v3105 = vadd.f32 %v3036, 0.0
      %v3106 = vadd.f32 %v3038, 0.0
      %v3107 = vadd.f32 %v3044, 0.0
      %v3108 = vadd.f32 %v3046, 0.0
      %v3109 = vadd.f32 %v3052, 0.0
      %v3110 = vadd.f32 %v3054, 0.0
      %v3111 = vadd.f32 %v3060, 0.0
      %v3112 = vadd.f32 %v3062, 0.0
      %v3113 = vadd.f32 %v3068, 0.0
      %v3114 = vadd.f32 %v3070, 0.0
      %v3115 = vadd.f32 %v3076, 0.0
      %v3116 = vadd.f32 %v3078, 0.0
      %v3117 = vadd.f32 %v3084, 0.0
      %v3118 = vadd.f32 %v3086, 0.0
      %s3119 = scalar_lea.vmem %s3, 2
      %v3120 = vld [vmem:[%s3119] sm:$0x3]
      %v3122 = vsel %vm507, %v3120, 0
      %3124 = vmatpush.bf16.msra.mxu0 0
      %3125 = vmatpush.bf16.msra.mxu0 0
      %3126 = vmatpush.bf16.msra.mxu0 0
      %3127 = vmatpush.bf16.msra.mxu0 0
      %3128 = vmatpush.bf16.msra.mxu0 0
      %3129 = vmatpush.bf16.msra.mxu0 0
      %3130 = vmatpush.bf16.msra.mxu0 0
      %3131 = vmatpush.bf16.msra.mxu0 %v3122
      %3132 = vmatmul.bf16.gmra.mxu0 %v2956
      %v3133 = vpop.f32.mrf.mxu0
      %v3134 = vadd.f32 0.0, %v3133
      %v3135 = vpop.f32.mrf.mxu0
      %v3136 = vadd.f32 0.0, %v3135
      %3137 = vmatmul.bf16.gmra.mxu0 %v2959
      %v3138 = vpop.f32.mrf.mxu0
      %v3139 = vadd.f32 0.0, %v3138
      %v3140 = vpop.f32.mrf.mxu0
      %3141 = vmatmul.bf16.gmra.mxu0 %v2962
      %v3142 = vpop.f32.mrf.mxu0
      %v3143 = vadd.f32 0.0, %v3142
      %v3144 = vpop.f32.mrf.mxu0
      %v3145 = vadd.f32 0.0, %v3144
      %3146 = vmatmul.bf16.gmra.mxu0 %v2965
      %v3147 = vpop.f32.mrf.mxu0
      %v3148 = vadd.f32 0.0, %v3147
      %v3149 = vpop.f32.mrf.mxu0
      %3150 = vmatmul.bf16.gmra.mxu0 %v2968
      %v3151 = vpop.f32.mrf.mxu0
      %v3152 = vadd.f32 0.0, %v3151
      %v3153 = vpop.f32.mrf.mxu0
      %v3154 = vadd.f32 0.0, %v3153
      %3155 = vmatmul.bf16.gmra.mxu0 %v2971
      %v3156 = vpop.f32.mrf.mxu0
      %v3157 = vadd.f32 0.0, %v3156
      %v3158 = vpop.f32.mrf.mxu0
      %3159 = vmatmul.bf16.gmra.mxu0 %v2974
      %v3160 = vpop.f32.mrf.mxu0
      %v3161 = vadd.f32 0.0, %v3160
      %v3162 = vpop.f32.mrf.mxu0
      %v3163 = vadd.f32 0.0, %v3162
      %3164 = vmatmul.bf16.gmra.mxu0 %v2977
      %v3165 = vpop.f32.mrf.mxu0
      %v3166 = vadd.f32 0.0, %v3165
      %v3167 = vpop.f32.mrf.mxu0
      %3168 = vmatmul.bf16.gmra.mxu0 %v2980
      %v3169 = vpop.f32.mrf.mxu0
      %v3170 = vadd.f32 0.0, %v3169
      %v3171 = vpop.f32.mrf.mxu0
      %v3172 = vadd.f32 0.0, %v3171
      %3173 = vmatmul.bf16.gmra.mxu0 %v2983
      %v3174 = vpop.f32.mrf.mxu0
      %v3175 = vadd.f32 0.0, %v3174
      %v3176 = vpop.f32.mrf.mxu0
      %3177 = vmatmul.bf16.gmra.mxu0 %v2986
      %v3178 = vpop.f32.mrf.mxu0
      %v3179 = vadd.f32 0.0, %v3178
      %v3180 = vpop.f32.mrf.mxu0
      %v3181 = vadd.f32 0.0, %v3180
      %3182 = vmatmul.bf16.gmra.mxu0 %v2989
      %v3183 = vpop.f32.mrf.mxu0
      %v3184 = vadd.f32 0.0, %v3183
      %v3185 = vpop.f32.mrf.mxu0
      %3186 = vmatmul.bf16.gmra.mxu0 %v2992
      %v3187 = vpop.f32.mrf.mxu0
      %v3188 = vadd.f32 0.0, %v3187
      %v3189 = vpop.f32.mrf.mxu0
      %v3190 = vadd.f32 0.0, %v3189
      %3191 = vmatmul.bf16.gmra.mxu0 %v2995
      %v3192 = vpop.f32.mrf.mxu0
      %v3193 = vadd.f32 0.0, %v3192
      %v3194 = vpop.f32.mrf.mxu0
      %3195 = vmatmul.bf16.gmra.mxu0 %v2998
      %v3196 = vpop.f32.mrf.mxu0
      %v3197 = vadd.f32 0.0, %v3196
      %v3198 = vpop.f32.mrf.mxu0
      %v3199 = vadd.f32 0.0, %v3198
      %3200 = vmatmul.bf16.gmra.mxu0 %v3001
      %v3201 = vpop.f32.mrf.mxu0
      %v3202 = vadd.f32 0.0, %v3201
      %v3203 = vpop.f32.mrf.mxu0
      %3204 = vmatmul.bf16.gmra.mxu0 %v3004
      %v3205 = vpop.f32.mrf.mxu0
      %v3206 = vpop.f32.mrf.mxu0
      %3207 = vmatmul.bf16.gmra.mxu0 %v3007
      %v3208 = vpop.f32.mrf.mxu0
      %v3209 = vpop.f32.mrf.mxu0
      %3210 = vmatmul.bf16.gmra.mxu0 %v3010
      %v3211 = vpop.f32.mrf.mxu0
      %v3212 = vpop.f32.mrf.mxu0
      %3213 = vmatmul.bf16.gmra.mxu0 %v3013
      %v3214 = vpop.f32.mrf.mxu0
      %v3215 = vpop.f32.mrf.mxu0
      %3216 = vdwg.mxu0
      %v3241 = vrot.slane %v3134, 1
      %v3242 = vrot.slane %v3136, 1
      %v3243 = vsel %vm778, %v3241, %v3242
      %v3244 = vrot.slane %v3139, 1
      %v3245 = vsel %vm778, %v3242, %v3244
      %v3246 = vrot.slane %v3143, 1
      %v3247 = vrot.slane %v3145, 1
      %v3248 = vsel %vm778, %v3246, %v3247
      %v3249 = vrot.slane %v3148, 1
      %v3250 = vsel %vm778, %v3247, %v3249
      %v3251 = vrot.slane %v3152, 1
      %v3252 = vrot.slane %v3154, 1
      %v3253 = vsel %vm778, %v3251, %v3252
      %v3254 = vrot.slane %v3157, 1
      %v3255 = vsel %vm778, %v3252, %v3254
      %v3256 = vrot.slane %v3161, 1
      %v3257 = vrot.slane %v3163, 1
      %v3258 = vsel %vm778, %v3256, %v3257
      %v3259 = vrot.slane %v3166, 1
      %v3260 = vsel %vm778, %v3257, %v3259
      %v3261 = vrot.slane %v3170, 1
      %v3262 = vrot.slane %v3172, 1
      %v3263 = vsel %vm778, %v3261, %v3262
      %v3264 = vrot.slane %v3175, 1
      %v3265 = vsel %vm778, %v3262, %v3264
      %v3266 = vrot.slane %v3179, 1
      %v3267 = vrot.slane %v3181, 1
      %v3268 = vsel %vm778, %v3266, %v3267
      %v3269 = vrot.slane %v3184, 1
      %v3270 = vsel %vm778, %v3267, %v3269
      %v3271 = vrot.slane %v3188, 1
      %v3272 = vrot.slane %v3190, 1
      %v3273 = vsel %vm778, %v3271, %v3272
      %v3274 = vrot.slane %v3193, 1
      %v3275 = vsel %vm778, %v3272, %v3274
      %v3276 = vrot.slane %v3197, 1
      %v3277 = vrot.slane %v3199, 1
      %v3278 = vsel %vm778, %v3276, %v3277
      %v3279 = vrot.slane %v3202, 1
      %v3280 = vsel %vm778, %v3277, %v3279
      %v3297 = vadd.f32 %v3103, %v3243
      %v3298 = vadd.f32 %v3104, %v3245
      %v3299 = vadd.f32 %v3105, %v3248
      %v3300 = vadd.f32 %v3106, %v3250
      %v3301 = vadd.f32 %v3107, %v3253
      %v3302 = vadd.f32 %v3108, %v3255
      %v3303 = vadd.f32 %v3109, %v3258
      %v3304 = vadd.f32 %v3110, %v3260
      %v3305 = vadd.f32 %v3111, %v3263
      %v3306 = vadd.f32 %v3112, %v3265
      %v3307 = vadd.f32 %v3113, %v3268
      %v3308 = vadd.f32 %v3114, %v3270
      %v3309 = vadd.f32 %v3115, %v3273
      %v3310 = vadd.f32 %v3116, %v3275
      %v3311 = vadd.f32 %v3117, %v3278
      %v3312 = vadd.f32 %v3118, %v3280
      %s3313 = scalar_lea.vmem %s3, 4
      %v3314 = vld [vmem:[%s3313] sm:$0x3]
      %v3316 = vsel %vm507, %v3314, 0
      %3318 = vmatpush.bf16.msra.mxu0 0
      %3319 = vmatpush.bf16.msra.mxu0 0
      %3320 = vmatpush.bf16.msra.mxu0 0
      %3321 = vmatpush.bf16.msra.mxu0 0
      %3322 = vmatpush.bf16.msra.mxu0 0
      %3323 = vmatpush.bf16.msra.mxu0 0
      %3324 = vmatpush.bf16.msra.mxu0 0
      %3325 = vmatpush.bf16.msra.mxu0 %v3316
      %3326 = vmatmul.bf16.gmra.mxu0 %v2956
      %v3327 = vpop.f32.mrf.mxu0
      %v3328 = vadd.f32 0.0, %v3327
      %v3329 = vpop.f32.mrf.mxu0
      %v3330 = vadd.f32 0.0, %v3329
      %3331 = vmatmul.bf16.gmra.mxu0 %v2959
      %v3332 = vpop.f32.mrf.mxu0
      %v3333 = vadd.f32 0.0, %v3332
      %v3334 = vpop.f32.mrf.mxu0
      %3335 = vmatmul.bf16.gmra.mxu0 %v2962
      %v3336 = vpop.f32.mrf.mxu0
      %v3337 = vadd.f32 0.0, %v3336
      %v3338 = vpop.f32.mrf.mxu0
      %v3339 = vadd.f32 0.0, %v3338
      %3340 = vmatmul.bf16.gmra.mxu0 %v2965
      %v3341 = vpop.f32.mrf.mxu0
      %v3342 = vadd.f32 0.0, %v3341
      %v3343 = vpop.f32.mrf.mxu0
      %3344 = vmatmul.bf16.gmra.mxu0 %v2968
      %v3345 = vpop.f32.mrf.mxu0
      %v3346 = vadd.f32 0.0, %v3345
      %v3347 = vpop.f32.mrf.mxu0
      %v3348 = vadd.f32 0.0, %v3347
      %3349 = vmatmul.bf16.gmra.mxu0 %v2971
      %v3350 = vpop.f32.mrf.mxu0
      %v3351 = vadd.f32 0.0, %v3350
      %v3352 = vpop.f32.mrf.mxu0
      %3353 = vmatmul.bf16.gmra.mxu0 %v2974
      %v3354 = vpop.f32.mrf.mxu0
      %v3355 = vadd.f32 0.0, %v3354
      %v3356 = vpop.f32.mrf.mxu0
      %v3357 = vadd.f32 0.0, %v3356
      %3358 = vmatmul.bf16.gmra.mxu0 %v2977
      %v3359 = vpop.f32.mrf.mxu0
      %v3360 = vadd.f32 0.0, %v3359
      %v3361 = vpop.f32.mrf.mxu0
      %3362 = vmatmul.bf16.gmra.mxu0 %v2980
      %v3363 = vpop.f32.mrf.mxu0
      %v3364 = vadd.f32 0.0, %v3363
      %v3365 = vpop.f32.mrf.mxu0
      %v3366 = vadd.f32 0.0, %v3365
      %3367 = vmatmul.bf16.gmra.mxu0 %v2983
      %v3368 = vpop.f32.mrf.mxu0
      %v3369 = vadd.f32 0.0, %v3368
      %v3370 = vpop.f32.mrf.mxu0
      %3371 = vmatmul.bf16.gmra.mxu0 %v2986
      %v3372 = vpop.f32.mrf.mxu0
      %v3373 = vadd.f32 0.0, %v3372
      %v3374 = vpop.f32.mrf.mxu0
      %v3375 = vadd.f32 0.0, %v3374
      %3376 = vmatmul.bf16.gmra.mxu0 %v2989
      %v3377 = vpop.f32.mrf.mxu0
      %v3378 = vadd.f32 0.0, %v3377
      %v3379 = vpop.f32.mrf.mxu0
      %3380 = vmatmul.bf16.gmra.mxu0 %v2992
      %v3381 = vpop.f32.mrf.mxu0
      %v3382 = vadd.f32 0.0, %v3381
      %v3383 = vpop.f32.mrf.mxu0
      %v3384 = vadd.f32 0.0, %v3383
      %3385 = vmatmul.bf16.gmra.mxu0 %v2995
      %v3386 = vpop.f32.mrf.mxu0
      %v3387 = vadd.f32 0.0, %v3386
      %v3388 = vpop.f32.mrf.mxu0
      %3389 = vmatmul.bf16.gmra.mxu0 %v2998
      %v3390 = vpop.f32.mrf.mxu0
      %v3391 = vadd.f32 0.0, %v3390
      %v3392 = vpop.f32.mrf.mxu0
      %v3393 = vadd.f32 0.0, %v3392
      %3394 = vmatmul.bf16.gmra.mxu0 %v3001
      %v3395 = vpop.f32.mrf.mxu0
      %v3396 = vadd.f32 0.0, %v3395
      %v3397 = vpop.f32.mrf.mxu0
      %3398 = vmatmul.bf16.gmra.mxu0 %v3004
      %v3399 = vpop.f32.mrf.mxu0
      %v3400 = vpop.f32.mrf.mxu0
      %3401 = vmatmul.bf16.gmra.mxu0 %v3007
      %v3402 = vpop.f32.mrf.mxu0
      %v3403 = vpop.f32.mrf.mxu0
      %3404 = vmatmul.bf16.gmra.mxu0 %v3010
      %v3405 = vpop.f32.mrf.mxu0
      %v3406 = vpop.f32.mrf.mxu0
      %3407 = vmatmul.bf16.gmra.mxu0 %v3013
      %v3408 = vpop.f32.mrf.mxu0
      %v3409 = vpop.f32.mrf.mxu0
      %3410 = vdwg.mxu0
      %v3435 = vrot.slane %v3328, 2
      %v3436 = vrot.slane %v3330, 2
      %v3437 = vsel %vm1015, %v3435, %v3436
      %v3438 = vrot.slane %v3333, 2
      %v3439 = vsel %vm1015, %v3436, %v3438
      %v3440 = vrot.slane %v3337, 2
      %v3441 = vrot.slane %v3339, 2
      %v3442 = vsel %vm1015, %v3440, %v3441
      %v3443 = vrot.slane %v3342, 2
      %v3444 = vsel %vm1015, %v3441, %v3443
      %v3445 = vrot.slane %v3346, 2
      %v3446 = vrot.slane %v3348, 2
      %v3447 = vsel %vm1015, %v3445, %v3446
      %v3448 = vrot.slane %v3351, 2
      %v3449 = vsel %vm1015, %v3446, %v3448
      %v3450 = vrot.slane %v3355, 2
      %v3451 = vrot.slane %v3357, 2
      %v3452 = vsel %vm1015, %v3450, %v3451
      %v3453 = vrot.slane %v3360, 2
      %v3454 = vsel %vm1015, %v3451, %v3453
      %v3455 = vrot.slane %v3364, 2
      %v3456 = vrot.slane %v3366, 2
      %v3457 = vsel %vm1015, %v3455, %v3456
      %v3458 = vrot.slane %v3369, 2
      %v3459 = vsel %vm1015, %v3456, %v3458
      %v3460 = vrot.slane %v3373, 2
      %v3461 = vrot.slane %v3375, 2
      %v3462 = vsel %vm1015, %v3460, %v3461
      %v3463 = vrot.slane %v3378, 2
      %v3464 = vsel %vm1015, %v3461, %v3463
      %v3465 = vrot.slane %v3382, 2
      %v3466 = vrot.slane %v3384, 2
      %v3467 = vsel %vm1015, %v3465, %v3466
      %v3468 = vrot.slane %v3387, 2
      %v3469 = vsel %vm1015, %v3466, %v3468
      %v3470 = vrot.slane %v3391, 2
      %v3471 = vrot.slane %v3393, 2
      %v3472 = vsel %vm1015, %v3470, %v3471
      %v3473 = vrot.slane %v3396, 2
      %v3474 = vsel %vm1015, %v3471, %v3473
      %v3491 = vadd.f32 %v3297, %v3437
      %v3492 = vadd.f32 %v3298, %v3439
      %v3493 = vadd.f32 %v3299, %v3442
      %v3494 = vadd.f32 %v3300, %v3444
      %v3495 = vadd.f32 %v3301, %v3447
      %v3496 = vadd.f32 %v3302, %v3449
      %v3497 = vadd.f32 %v3303, %v3452
      %v3498 = vadd.f32 %v3304, %v3454
      %v3499 = vadd.f32 %v3305, %v3457
      %v3500 = vadd.f32 %v3306, %v3459
      %v3501 = vadd.f32 %v3307, %v3462
      %v3502 = vadd.f32 %v3308, %v3464
      %v3503 = vadd.f32 %v3309, %v3467
      %v3504 = vadd.f32 %v3310, %v3469
      %v3505 = vadd.f32 %v3311, %v3472
      %v3506 = vadd.f32 %v3312, %v3474
      %s3507 = scalar_lea.vmem %s3, 6
      %v3508 = vld [vmem:[%s3507] sm:$0x3]
      %v3510 = vsel %vm507, %v3508, 0
      %3512 = vmatpush.bf16.msra.mxu0 0
      %3513 = vmatpush.bf16.msra.mxu0 0
      %3514 = vmatpush.bf16.msra.mxu0 0
      %3515 = vmatpush.bf16.msra.mxu0 0
      %3516 = vmatpush.bf16.msra.mxu0 0
      %3517 = vmatpush.bf16.msra.mxu0 0
      %3518 = vmatpush.bf16.msra.mxu0 0
      %3519 = vmatpush.bf16.msra.mxu0 %v3510
      %3520 = vmatmul.bf16.gmra.mxu0 %v2956
      %v3521 = vpop.f32.mrf.mxu0
      %v3522 = vpop.f32.mrf.mxu0
      %3523 = vmatmul.bf16.gmra.mxu0 %v2959
      %v3524 = vpop.f32.mrf.mxu0
      %v3525 = vpop.f32.mrf.mxu0
      %3526 = vmatmul.bf16.gmra.mxu0 %v2962
      %v3527 = vpop.f32.mrf.mxu0
      %v3528 = vadd.f32 0.0, %v3527
      %v3529 = vpop.f32.mrf.mxu0
      %v3530 = vadd.f32 0.0, %v3529
      %3531 = vmatmul.bf16.gmra.mxu0 %v2965
      %v3532 = vpop.f32.mrf.mxu0
      %v3533 = vpop.f32.mrf.mxu0
      %3534 = vmatmul.bf16.gmra.mxu0 %v2968
      %v3535 = vpop.f32.mrf.mxu0
      %v3536 = vadd.f32 0.0, %v3535
      %v3537 = vpop.f32.mrf.mxu0
      %v3538 = vadd.f32 0.0, %v3537
      %3539 = vmatmul.bf16.gmra.mxu0 %v2971
      %v3540 = vpop.f32.mrf.mxu0
      %v3541 = vpop.f32.mrf.mxu0
      %3542 = vmatmul.bf16.gmra.mxu0 %v2974
      %v3543 = vpop.f32.mrf.mxu0
      %v3544 = vadd.f32 0.0, %v3543
      %v3545 = vpop.f32.mrf.mxu0
      %v3546 = vadd.f32 0.0, %v3545
      %3547 = vmatmul.bf16.gmra.mxu0 %v2977
      %v3548 = vpop.f32.mrf.mxu0
      %v3549 = vpop.f32.mrf.mxu0
      %3550 = vmatmul.bf16.gmra.mxu0 %v2980
      %v3551 = vpop.f32.mrf.mxu0
      %v3552 = vadd.f32 0.0, %v3551
      %v3553 = vpop.f32.mrf.mxu0
      %v3554 = vadd.f32 0.0, %v3553
      %3555 = vmatmul.bf16.gmra.mxu0 %v2983
      %v3556 = vpop.f32.mrf.mxu0
      %v3557 = vpop.f32.mrf.mxu0
      %3558 = vmatmul.bf16.gmra.mxu0 %v2986
      %v3559 = vpop.f32.mrf.mxu0
      %v3560 = vadd.f32 0.0, %v3559
      %v3561 = vpop.f32.mrf.mxu0
      %v3562 = vadd.f32 0.0, %v3561
      %3563 = vmatmul.bf16.gmra.mxu0 %v2989
      %v3564 = vpop.f32.mrf.mxu0
      %v3565 = vpop.f32.mrf.mxu0
      %3566 = vmatmul.bf16.gmra.mxu0 %v2992
      %v3567 = vpop.f32.mrf.mxu0
      %v3568 = vadd.f32 0.0, %v3567
      %v3569 = vpop.f32.mrf.mxu0
      %v3570 = vadd.f32 0.0, %v3569
      %3571 = vmatmul.bf16.gmra.mxu0 %v2995
      %v3572 = vpop.f32.mrf.mxu0
      %v3573 = vpop.f32.mrf.mxu0
      %3574 = vmatmul.bf16.gmra.mxu0 %v2998
      %v3575 = vpop.f32.mrf.mxu0
      %v3576 = vadd.f32 0.0, %v3575
      %v3577 = vpop.f32.mrf.mxu0
      %v3578 = vadd.f32 0.0, %v3577
      %3579 = vmatmul.bf16.gmra.mxu0 %v3001
      %v3580 = vpop.f32.mrf.mxu0
      %v3581 = vpop.f32.mrf.mxu0
      %3582 = vmatmul.bf16.gmra.mxu0 %v3004
      %v3583 = vpop.f32.mrf.mxu0
      %v3584 = vadd.f32 0.0, %v3583
      %v3585 = vpop.f32.mrf.mxu0
      %v3586 = vadd.f32 0.0, %v3585
      %3587 = vmatmul.bf16.gmra.mxu0 %v3007
      %v3588 = vpop.f32.mrf.mxu0
      %v3589 = vpop.f32.mrf.mxu0
      %3590 = vmatmul.bf16.gmra.mxu0 %v3010
      %v3591 = vpop.f32.mrf.mxu0
      %v3592 = vpop.f32.mrf.mxu0
      %3593 = vmatmul.bf16.gmra.mxu0 %v3013
      %v3594 = vpop.f32.mrf.mxu0
      %v3595 = vpop.f32.mrf.mxu0
      %3596 = vdwg.mxu0
      %v3597 = vadd.f32 %v3491, %v3528
      %v3598 = vadd.f32 %v3492, %v3530
      %v3599 = vadd.f32 %v3493, %v3536
      %v3600 = vadd.f32 %v3494, %v3538
      %v3601 = vadd.f32 %v3495, %v3544
      %v3602 = vadd.f32 %v3496, %v3546
      %v3603 = vadd.f32 %v3497, %v3552
      %v3604 = vadd.f32 %v3498, %v3554
      %v3605 = vadd.f32 %v3499, %v3560
      %v3606 = vadd.f32 %v3500, %v3562
      %v3607 = vadd.f32 %v3501, %v3568
      %v3608 = vadd.f32 %v3502, %v3570
      %v3609 = vadd.f32 %v3503, %v3576
      %v3610 = vadd.f32 %v3504, %v3578
      %v3611 = vadd.f32 %v3505, %v3584
      %v3612 = vadd.f32 %v3506, %v3586
      %s3613 = scalar_lea.vmem %s3, 8
      %v3614 = vld [vmem:[%s3613] sm:$0x3]
      %v3616 = vsel %vm507, %v3614, 0
      %3618 = vmatpush.bf16.msra.mxu0 0
      %3619 = vmatpush.bf16.msra.mxu0 0
      %3620 = vmatpush.bf16.msra.mxu0 0
      %3621 = vmatpush.bf16.msra.mxu0 0
      %3622 = vmatpush.bf16.msra.mxu0 0
      %3623 = vmatpush.bf16.msra.mxu0 0
      %3624 = vmatpush.bf16.msra.mxu0 0
      %3625 = vmatpush.bf16.msra.mxu0 %v3616
      %3626 = vmatmul.bf16.gmra.mxu0 %v2956
      %v3627 = vpop.f32.mrf.mxu0
      %v3628 = vpop.f32.mrf.mxu0
      %3629 = vmatmul.bf16.gmra.mxu0 %v2959
      %v3630 = vpop.f32.mrf.mxu0
      %v3631 = vpop.f32.mrf.mxu0
      %3632 = vmatmul.bf16.gmra.mxu0 %v2962
      %v3633 = vpop.f32.mrf.mxu0
      %v3634 = vadd.f32 0.0, %v3633
      %v3635 = vpop.f32.mrf.mxu0
      %v3636 = vadd.f32 0.0, %v3635
      %3637 = vmatmul.bf16.gmra.mxu0 %v2965
      %v3638 = vpop.f32.mrf.mxu0
      %v3639 = vadd.f32 0.0, %v3638
      %v3640 = vpop.f32.mrf.mxu0
      %3641 = vmatmul.bf16.gmra.mxu0 %v2968
      %v3642 = vpop.f32.mrf.mxu0
      %v3643 = vadd.f32 0.0, %v3642
      %v3644 = vpop.f32.mrf.mxu0
      %v3645 = vadd.f32 0.0, %v3644
      %3646 = vmatmul.bf16.gmra.mxu0 %v2971
      %v3647 = vpop.f32.mrf.mxu0
      %v3648 = vadd.f32 0.0, %v3647
      %v3649 = vpop.f32.mrf.mxu0
      %3650 = vmatmul.bf16.gmra.mxu0 %v2974
      %v3651 = vpop.f32.mrf.mxu0
      %v3652 = vadd.f32 0.0, %v3651
      %v3653 = vpop.f32.mrf.mxu0
      %v3654 = vadd.f32 0.0, %v3653
      %3655 = vmatmul.bf16.gmra.mxu0 %v2977
      %v3656 = vpop.f32.mrf.mxu0
      %v3657 = vadd.f32 0.0, %v3656
      %v3658 = vpop.f32.mrf.mxu0
      %3659 = vmatmul.bf16.gmra.mxu0 %v2980
      %v3660 = vpop.f32.mrf.mxu0
      %v3661 = vadd.f32 0.0, %v3660
      %v3662 = vpop.f32.mrf.mxu0
      %v3663 = vadd.f32 0.0, %v3662
      %3664 = vmatmul.bf16.gmra.mxu0 %v2983
      %v3665 = vpop.f32.mrf.mxu0
      %v3666 = vadd.f32 0.0, %v3665
      %v3667 = vpop.f32.mrf.mxu0
      %3668 = vmatmul.bf16.gmra.mxu0 %v2986
      %v3669 = vpop.f32.mrf.mxu0
      %v3670 = vadd.f32 0.0, %v3669
      %v3671 = vpop.f32.mrf.mxu0
      %v3672 = vadd.f32 0.0, %v3671
      %3673 = vmatmul.bf16.gmra.mxu0 %v2989
      %v3674 = vpop.f32.mrf.mxu0
      %v3675 = vadd.f32 0.0, %v3674
      %v3676 = vpop.f32.mrf.mxu0
      %3677 = vmatmul.bf16.gmra.mxu0 %v2992
      %v3678 = vpop.f32.mrf.mxu0
      %v3679 = vadd.f32 0.0, %v3678
      %v3680 = vpop.f32.mrf.mxu0
      %v3681 = vadd.f32 0.0, %v3680
      %3682 = vmatmul.bf16.gmra.mxu0 %v2995
      %v3683 = vpop.f32.mrf.mxu0
      %v3684 = vadd.f32 0.0, %v3683
      %v3685 = vpop.f32.mrf.mxu0
      %3686 = vmatmul.bf16.gmra.mxu0 %v2998
      %v3687 = vpop.f32.mrf.mxu0
      %v3688 = vadd.f32 0.0, %v3687
      %v3689 = vpop.f32.mrf.mxu0
      %v3690 = vadd.f32 0.0, %v3689
      %3691 = vmatmul.bf16.gmra.mxu0 %v3001
      %v3692 = vpop.f32.mrf.mxu0
      %v3693 = vadd.f32 0.0, %v3692
      %v3694 = vpop.f32.mrf.mxu0
      %3695 = vmatmul.bf16.gmra.mxu0 %v3004
      %v3696 = vpop.f32.mrf.mxu0
      %v3697 = vadd.f32 0.0, %v3696
      %v3698 = vpop.f32.mrf.mxu0
      %v3699 = vadd.f32 0.0, %v3698
      %3700 = vmatmul.bf16.gmra.mxu0 %v3007
      %v3701 = vpop.f32.mrf.mxu0
      %v3702 = vadd.f32 0.0, %v3701
      %v3703 = vpop.f32.mrf.mxu0
      %3704 = vmatmul.bf16.gmra.mxu0 %v3010
      %v3705 = vpop.f32.mrf.mxu0
      %v3706 = vpop.f32.mrf.mxu0
      %3707 = vmatmul.bf16.gmra.mxu0 %v3013
      %v3708 = vpop.f32.mrf.mxu0
      %v3709 = vpop.f32.mrf.mxu0
      %3710 = vdwg.mxu0
      %v3735 = vrot.slane %v3634, 1
      %v3736 = vrot.slane %v3636, 1
      %v3737 = vsel %vm778, %v3735, %v3736
      %v3738 = vrot.slane %v3639, 1
      %v3739 = vsel %vm778, %v3736, %v3738
      %v3740 = vrot.slane %v3643, 1
      %v3741 = vrot.slane %v3645, 1
      %v3742 = vsel %vm778, %v3740, %v3741
      %v3743 = vrot.slane %v3648, 1
      %v3744 = vsel %vm778, %v3741, %v3743
      %v3745 = vrot.slane %v3652, 1
      %v3746 = vrot.slane %v3654, 1
      %v3747 = vsel %vm778, %v3745, %v3746
      %v3748 = vrot.slane %v3657, 1
      %v3749 = vsel %vm778, %v3746, %v3748
      %v3750 = vrot.slane %v3661, 1
      %v3751 = vrot.slane %v3663, 1
      %v3752 = vsel %vm778, %v3750, %v3751
      %v3753 = vrot.slane %v3666, 1
      %v3754 = vsel %vm778, %v3751, %v3753
      %v3755 = vrot.slane %v3670, 1
      %v3756 = vrot.slane %v3672, 1
      %v3757 = vsel %vm778, %v3755, %v3756
      %v3758 = vrot.slane %v3675, 1
      %v3759 = vsel %vm778, %v3756, %v3758
      %v3760 = vrot.slane %v3679, 1
      %v3761 = vrot.slane %v3681, 1
      %v3762 = vsel %vm778, %v3760, %v3761
      %v3763 = vrot.slane %v3684, 1
      %v3764 = vsel %vm778, %v3761, %v3763
      %v3765 = vrot.slane %v3688, 1
      %v3766 = vrot.slane %v3690, 1
      %v3767 = vsel %vm778, %v3765, %v3766
      %v3768 = vrot.slane %v3693, 1
      %v3769 = vsel %vm778, %v3766, %v3768
      %v3770 = vrot.slane %v3697, 1
      %v3771 = vrot.slane %v3699, 1
      %v3772 = vsel %vm778, %v3770, %v3771
      %v3773 = vrot.slane %v3702, 1
      %v3774 = vsel %vm778, %v3771, %v3773
      %v3791 = vadd.f32 %v3597, %v3737
      %v3792 = vadd.f32 %v3598, %v3739
      %v3793 = vadd.f32 %v3599, %v3742
      %v3794 = vadd.f32 %v3600, %v3744
      %v3795 = vadd.f32 %v3601, %v3747
      %v3796 = vadd.f32 %v3602, %v3749
      %v3797 = vadd.f32 %v3603, %v3752
      %v3798 = vadd.f32 %v3604, %v3754
      %v3799 = vadd.f32 %v3605, %v3757
      %v3800 = vadd.f32 %v3606, %v3759
      %v3801 = vadd.f32 %v3607, %v3762
      %v3802 = vadd.f32 %v3608, %v3764
      %v3803 = vadd.f32 %v3609, %v3767
      %v3804 = vadd.f32 %v3610, %v3769
      %v3805 = vadd.f32 %v3611, %v3772
      %v3806 = vadd.f32 %v3612, %v3774
      %s3807 = scalar_lea.vmem %s3, 10
      %v3808 = vld [vmem:[%s3807] sm:$0x3]
      %v3810 = vsel %vm507, %v3808, 0
      %3812 = vmatpush.bf16.msra.mxu0 0
      %3813 = vmatpush.bf16.msra.mxu0 0
      %3814 = vmatpush.bf16.msra.mxu0 0
      %3815 = vmatpush.bf16.msra.mxu0 0
      %3816 = vmatpush.bf16.msra.mxu0 0
      %3817 = vmatpush.bf16.msra.mxu0 0
      %3818 = vmatpush.bf16.msra.mxu0 0
      %3819 = vmatpush.bf16.msra.mxu0 %v3810
      %3820 = vmatmul.bf16.gmra.mxu0 %v2956
      %v3821 = vpop.f32.mrf.mxu0
      %v3822 = vpop.f32.mrf.mxu0
      %3823 = vmatmul.bf16.gmra.mxu0 %v2959
      %v3824 = vpop.f32.mrf.mxu0
      %v3825 = vpop.f32.mrf.mxu0
      %3826 = vmatmul.bf16.gmra.mxu0 %v2962
      %v3827 = vpop.f32.mrf.mxu0
      %v3828 = vadd.f32 0.0, %v3827
      %v3829 = vpop.f32.mrf.mxu0
      %v3830 = vadd.f32 0.0, %v3829
      %3831 = vmatmul.bf16.gmra.mxu0 %v2965
      %v3832 = vpop.f32.mrf.mxu0
      %v3833 = vadd.f32 0.0, %v3832
      %v3834 = vpop.f32.mrf.mxu0
      %3835 = vmatmul.bf16.gmra.mxu0 %v2968
      %v3836 = vpop.f32.mrf.mxu0
      %v3837 = vadd.f32 0.0, %v3836
      %v3838 = vpop.f32.mrf.mxu0
      %v3839 = vadd.f32 0.0, %v3838
      %3840 = vmatmul.bf16.gmra.mxu0 %v2971
      %v3841 = vpop.f32.mrf.mxu0
      %v3842 = vadd.f32 0.0, %v3841
      %v3843 = vpop.f32.mrf.mxu0
      %3844 = vmatmul.bf16.gmra.mxu0 %v2974
      %v3845 = vpop.f32.mrf.mxu0
      %v3846 = vadd.f32 0.0, %v3845
      %v3847 = vpop.f32.mrf.mxu0
      %v3848 = vadd.f32 0.0, %v3847
      %3849 = vmatmul.bf16.gmra.mxu0 %v2977
      %v3850 = vpop.f32.mrf.mxu0
      %v3851 = vadd.f32 0.0, %v3850
      %v3852 = vpop.f32.mrf.mxu0
      %3853 = vmatmul.bf16.gmra.mxu0 %v2980
      %v3854 = vpop.f32.mrf.mxu0
      %v3855 = vadd.f32 0.0, %v3854
      %v3856 = vpop.f32.mrf.mxu0
      %v3857 = vadd.f32 0.0, %v3856
      %3858 = vmatmul.bf16.gmra.mxu0 %v2983
      %v3859 = vpop.f32.mrf.mxu0
      %v3860 = vadd.f32 0.0, %v3859
      %v3861 = vpop.f32.mrf.mxu0
      %3862 = vmatmul.bf16.gmra.mxu0 %v2986
      %v3863 = vpop.f32.mrf.mxu0
      %v3864 = vadd.f32 0.0, %v3863
      %v3865 = vpop.f32.mrf.mxu0
      %v3866 = vadd.f32 0.0, %v3865
      %3867 = vmatmul.bf16.gmra.mxu0 %v2989
      %v3868 = vpop.f32.mrf.mxu0
      %v3869 = vadd.f32 0.0, %v3868
      %v3870 = vpop.f32.mrf.mxu0
      %3871 = vmatmul.bf16.gmra.mxu0 %v2992
      %v3872 = vpop.f32.mrf.mxu0
      %v3873 = vadd.f32 0.0, %v3872
      %v3874 = vpop.f32.mrf.mxu0
      %v3875 = vadd.f32 0.0, %v3874
      %3876 = vmatmul.bf16.gmra.mxu0 %v2995
      %v3877 = vpop.f32.mrf.mxu0
      %v3878 = vadd.f32 0.0, %v3877
      %v3879 = vpop.f32.mrf.mxu0
      %3880 = vmatmul.bf16.gmra.mxu0 %v2998
      %v3881 = vpop.f32.mrf.mxu0
      %v3882 = vadd.f32 0.0, %v3881
      %v3883 = vpop.f32.mrf.mxu0
      %v3884 = vadd.f32 0.0, %v3883
      %3885 = vmatmul.bf16.gmra.mxu0 %v3001
      %v3886 = vpop.f32.mrf.mxu0
      %v3887 = vadd.f32 0.0, %v3886
      %v3888 = vpop.f32.mrf.mxu0
      %3889 = vmatmul.bf16.gmra.mxu0 %v3004
      %v3890 = vpop.f32.mrf.mxu0
      %v3891 = vadd.f32 0.0, %v3890
      %v3892 = vpop.f32.mrf.mxu0
      %v3893 = vadd.f32 0.0, %v3892
      %3894 = vmatmul.bf16.gmra.mxu0 %v3007
      %v3895 = vpop.f32.mrf.mxu0
      %v3896 = vadd.f32 0.0, %v3895
      %v3897 = vpop.f32.mrf.mxu0
      %3898 = vmatmul.bf16.gmra.mxu0 %v3010
      %v3899 = vpop.f32.mrf.mxu0
      %v3900 = vpop.f32.mrf.mxu0
      %3901 = vmatmul.bf16.gmra.mxu0 %v3013
      %v3902 = vpop.f32.mrf.mxu0
      %v3903 = vpop.f32.mrf.mxu0
      %3904 = vdwg.mxu0
      %v3929 = vrot.slane %v3828, 2
      %v3930 = vrot.slane %v3830, 2
      %v3931 = vsel %vm1015, %v3929, %v3930
      %v3932 = vrot.slane %v3833, 2
      %v3933 = vsel %vm1015, %v3930, %v3932
      %v3934 = vrot.slane %v3837, 2
      %v3935 = vrot.slane %v3839, 2
      %v3936 = vsel %vm1015, %v3934, %v3935
      %v3937 = vrot.slane %v3842, 2
      %v3938 = vsel %vm1015, %v3935, %v3937
      %v3939 = vrot.slane %v3846, 2
      %v3940 = vrot.slane %v3848, 2
      %v3941 = vsel %vm1015, %v3939, %v3940
      %v3942 = vrot.slane %v3851, 2
      %v3943 = vsel %vm1015, %v3940, %v3942
      %v3944 = vrot.slane %v3855, 2
      %v3945 = vrot.slane %v3857, 2
      %v3946 = vsel %vm1015, %v3944, %v3945
      %v3947 = vrot.slane %v3860, 2
      %v3948 = vsel %vm1015, %v3945, %v3947
      %v3949 = vrot.slane %v3864, 2
      %v3950 = vrot.slane %v3866, 2
      %v3951 = vsel %vm1015, %v3949, %v3950
      %v3952 = vrot.slane %v3869, 2
      %v3953 = vsel %vm1015, %v3950, %v3952
      %v3954 = vrot.slane %v3873, 2
      %v3955 = vrot.slane %v3875, 2
      %v3956 = vsel %vm1015, %v3954, %v3955
      %v3957 = vrot.slane %v3878, 2
      %v3958 = vsel %vm1015, %v3955, %v3957
      %v3959 = vrot.slane %v3882, 2
      %v3960 = vrot.slane %v3884, 2
      %v3961 = vsel %vm1015, %v3959, %v3960
      %v3962 = vrot.slane %v3887, 2
      %v3963 = vsel %vm1015, %v3960, %v3962
      %v3964 = vrot.slane %v3891, 2
      %v3965 = vrot.slane %v3893, 2
      %v3966 = vsel %vm1015, %v3964, %v3965
      %v3967 = vrot.slane %v3896, 2
      %v3968 = vsel %vm1015, %v3965, %v3967
      %v3985 = vadd.f32 %v3791, %v3931
      %v3986 = vadd.f32 %v3792, %v3933
      %v3987 = vadd.f32 %v3793, %v3936
      %v3988 = vadd.f32 %v3794, %v3938
      %v3989 = vadd.f32 %v3795, %v3941
      %v3990 = vadd.f32 %v3796, %v3943
      %v3991 = vadd.f32 %v3797, %v3946
      %v3992 = vadd.f32 %v3798, %v3948
      %v3993 = vadd.f32 %v3799, %v3951
      %v3994 = vadd.f32 %v3800, %v3953
      %v3995 = vadd.f32 %v3801, %v3956
      %v3996 = vadd.f32 %v3802, %v3958
      %v3997 = vadd.f32 %v3803, %v3961
      %v3998 = vadd.f32 %v3804, %v3963
      %v3999 = vadd.f32 %v3805, %v3966
      %v4000 = vadd.f32 %v3806, %v3968
      %s4001 = scalar_lea.vmem %s3, 12
      %v4002 = vld [vmem:[%s4001] sm:$0x3]
      %v4004 = vsel %vm507, %v4002, 0
      %4006 = vmatpush.bf16.msra.mxu0 0
      %4007 = vmatpush.bf16.msra.mxu0 0
      %4008 = vmatpush.bf16.msra.mxu0 0
      %4009 = vmatpush.bf16.msra.mxu0 0
      %4010 = vmatpush.bf16.msra.mxu0 0
      %4011 = vmatpush.bf16.msra.mxu0 0
      %4012 = vmatpush.bf16.msra.mxu0 0
      %4013 = vmatpush.bf16.msra.mxu0 %v4004
      %4014 = vmatmul.bf16.gmra.mxu0 %v2956
      %v4015 = vpop.f32.mrf.mxu0
      %v4016 = vpop.f32.mrf.mxu0
      %4017 = vmatmul.bf16.gmra.mxu0 %v2959
      %v4018 = vpop.f32.mrf.mxu0
      %v4019 = vpop.f32.mrf.mxu0
      %4020 = vmatmul.bf16.gmra.mxu0 %v2962
      %v4021 = vpop.f32.mrf.mxu0
      %v4022 = vpop.f32.mrf.mxu0
      %4023 = vmatmul.bf16.gmra.mxu0 %v2965
      %v4024 = vpop.f32.mrf.mxu0
      %v4025 = vpop.f32.mrf.mxu0
      %4026 = vmatmul.bf16.gmra.mxu0 %v2968
      %v4027 = vpop.f32.mrf.mxu0
      %v4028 = vadd.f32 0.0, %v4027
      %v4029 = vpop.f32.mrf.mxu0
      %v4030 = vadd.f32 0.0, %v4029
      %4031 = vmatmul.bf16.gmra.mxu0 %v2971
      %v4032 = vpop.f32.mrf.mxu0
      %v4033 = vpop.f32.mrf.mxu0
      %4034 = vmatmul.bf16.gmra.mxu0 %v2974
      %v4035 = vpop.f32.mrf.mxu0
      %v4036 = vadd.f32 0.0, %v4035
      %v4037 = vpop.f32.mrf.mxu0
      %v4038 = vadd.f32 0.0, %v4037
      %4039 = vmatmul.bf16.gmra.mxu0 %v2977
      %v4040 = vpop.f32.mrf.mxu0
      %v4041 = vpop.f32.mrf.mxu0
      %4042 = vmatmul.bf16.gmra.mxu0 %v2980
      %v4043 = vpop.f32.mrf.mxu0
      %v4044 = vadd.f32 0.0, %v4043
      %v4045 = vpop.f32.mrf.mxu0
      %v4046 = vadd.f32 0.0, %v4045
      %4047 = vmatmul.bf16.gmra.mxu0 %v2983
      %v4048 = vpop.f32.mrf.mxu0
      %v4049 = vpop.f32.mrf.mxu0
      %4050 = vmatmul.bf16.gmra.mxu0 %v2986
      %v4051 = vpop.f32.mrf.mxu0
      %v4052 = vadd.f32 0.0, %v4051
      %v4053 = vpop.f32.mrf.mxu0
      %v4054 = vadd.f32 0.0, %v4053
      %4055 = vmatmul.bf16.gmra.mxu0 %v2989
      %v4056 = vpop.f32.mrf.mxu0
      %v4057 = vpop.f32.mrf.mxu0
      %4058 = vmatmul.bf16.gmra.mxu0 %v2992
      %v4059 = vpop.f32.mrf.mxu0
      %v4060 = vadd.f32 0.0, %v4059
      %v4061 = vpop.f32.mrf.mxu0
      %v4062 = vadd.f32 0.0, %v4061
      %4063 = vmatmul.bf16.gmra.mxu0 %v2995
      %v4064 = vpop.f32.mrf.mxu0
      %v4065 = vpop.f32.mrf.mxu0
      %4066 = vmatmul.bf16.gmra.mxu0 %v2998
      %v4067 = vpop.f32.mrf.mxu0
      %v4068 = vadd.f32 0.0, %v4067
      %v4069 = vpop.f32.mrf.mxu0
      %v4070 = vadd.f32 0.0, %v4069
      %4071 = vmatmul.bf16.gmra.mxu0 %v3001
      %v4072 = vpop.f32.mrf.mxu0
      %v4073 = vpop.f32.mrf.mxu0
      %4074 = vmatmul.bf16.gmra.mxu0 %v3004
      %v4075 = vpop.f32.mrf.mxu0
      %v4076 = vadd.f32 0.0, %v4075
      %v4077 = vpop.f32.mrf.mxu0
      %v4078 = vadd.f32 0.0, %v4077
      %4079 = vmatmul.bf16.gmra.mxu0 %v3007
      %v4080 = vpop.f32.mrf.mxu0
      %v4081 = vpop.f32.mrf.mxu0
      %4082 = vmatmul.bf16.gmra.mxu0 %v3010
      %v4083 = vpop.f32.mrf.mxu0
      %v4084 = vadd.f32 0.0, %v4083
      %v4085 = vpop.f32.mrf.mxu0
      %v4086 = vadd.f32 0.0, %v4085
      %4087 = vmatmul.bf16.gmra.mxu0 %v3013
      %v4088 = vpop.f32.mrf.mxu0
      %v4089 = vpop.f32.mrf.mxu0
      %4090 = vdwg.mxu0
      %v4091 = vadd.f32 %v3985, %v4028
      %v4092 = vadd.f32 %v3986, %v4030
      %v4093 = vadd.f32 %v3987, %v4036
      %v4094 = vadd.f32 %v3988, %v4038
      %v4095 = vadd.f32 %v3989, %v4044
      %v4096 = vadd.f32 %v3990, %v4046
      %v4097 = vadd.f32 %v3991, %v4052
      %v4098 = vadd.f32 %v3992, %v4054
      %v4099 = vadd.f32 %v3993, %v4060
      %v4100 = vadd.f32 %v3994, %v4062
      %v4101 = vadd.f32 %v3995, %v4068
      %v4102 = vadd.f32 %v3996, %v4070
      %v4103 = vadd.f32 %v3997, %v4076
      %v4104 = vadd.f32 %v3998, %v4078
      %v4105 = vadd.f32 %v3999, %v4084
      %v4106 = vadd.f32 %v4000, %v4086
      %s4107 = scalar_lea.vmem %s3, 14
      %v4108 = vld [vmem:[%s4107] sm:$0x3]
      %v4110 = vsel %vm507, %v4108, 0
      %4112 = vmatpush.bf16.msra.mxu0 0
      %4113 = vmatpush.bf16.msra.mxu0 0
      %4114 = vmatpush.bf16.msra.mxu0 0
      %4115 = vmatpush.bf16.msra.mxu0 0
      %4116 = vmatpush.bf16.msra.mxu0 0
      %4117 = vmatpush.bf16.msra.mxu0 0
      %4118 = vmatpush.bf16.msra.mxu0 0
      %4119 = vmatpush.bf16.msra.mxu0 %v4110
      %4120 = vmatmul.bf16.gmra.mxu0 %v2956
      %v4121 = vpop.f32.mrf.mxu0
      %v4122 = vpop.f32.mrf.mxu0
      %4123 = vmatmul.bf16.gmra.mxu0 %v2959
      %v4124 = vpop.f32.mrf.mxu0
      %v4125 = vpop.f32.mrf.mxu0
      %4126 = vmatmul.bf16.gmra.mxu0 %v2962
      %v4127 = vpop.f32.mrf.mxu0
      %v4128 = vpop.f32.mrf.mxu0
      %4129 = vmatmul.bf16.gmra.mxu0 %v2965
      %v4130 = vpop.f32.mrf.mxu0
      %v4131 = vpop.f32.mrf.mxu0
      %4132 = vmatmul.bf16.gmra.mxu0 %v2968
      %v4133 = vpop.f32.mrf.mxu0
      %v4134 = vadd.f32 0.0, %v4133
      %v4135 = vpop.f32.mrf.mxu0
      %v4136 = vadd.f32 0.0, %v4135
      %4137 = vmatmul.bf16.gmra.mxu0 %v2971
      %v4138 = vpop.f32.mrf.mxu0
      %v4139 = vadd.f32 0.0, %v4138
      %v4140 = vpop.f32.mrf.mxu0
      %4141 = vmatmul.bf16.gmra.mxu0 %v2974
      %v4142 = vpop.f32.mrf.mxu0
      %v4143 = vadd.f32 0.0, %v4142
      %v4144 = vpop.f32.mrf.mxu0
      %v4145 = vadd.f32 0.0, %v4144
      %4146 = vmatmul.bf16.gmra.mxu0 %v2977
      %v4147 = vpop.f32.mrf.mxu0
      %v4148 = vadd.f32 0.0, %v4147
      %v4149 = vpop.f32.mrf.mxu0
      %4150 = vmatmul.bf16.gmra.mxu0 %v2980
      %v4151 = vpop.f32.mrf.mxu0
      %v4152 = vadd.f32 0.0, %v4151
      %v4153 = vpop.f32.mrf.mxu0
      %v4154 = vadd.f32 0.0, %v4153
      %4155 = vmatmul.bf16.gmra.mxu0 %v2983
      %v4156 = vpop.f32.mrf.mxu0
      %v4157 = vadd.f32 0.0, %v4156
      %v4158 = vpop.f32.mrf.mxu0
      %4159 = vmatmul.bf16.gmra.mxu0 %v2986
      %v4160 = vpop.f32.mrf.mxu0
      %v4161 = vadd.f32 0.0, %v4160
      %v4162 = vpop.f32.mrf.mxu0
      %v4163 = vadd.f32 0.0, %v4162
      %4164 = vmatmul.bf16.gmra.mxu0 %v2989
      %v4165 = vpop.f32.mrf.mxu0
      %v4166 = vadd.f32 0.0, %v4165
      %v4167 = vpop.f32.mrf.mxu0
      %4168 = vmatmul.bf16.gmra.mxu0 %v2992
      %v4169 = vpop.f32.mrf.mxu0
      %v4170 = vadd.f32 0.0, %v4169
      %v4171 = vpop.f32.mrf.mxu0
      %v4172 = vadd.f32 0.0, %v4171
      %4173 = vmatmul.bf16.gmra.mxu0 %v2995
      %v4174 = vpop.f32.mrf.mxu0
      %v4175 = vadd.f32 0.0, %v4174
      %v4176 = vpop.f32.mrf.mxu0
      %4177 = vmatmul.bf16.gmra.mxu0 %v2998
      %v4178 = vpop.f32.mrf.mxu0
      %v4179 = vadd.f32 0.0, %v4178
      %v4180 = vpop.f32.mrf.mxu0
      %v4181 = vadd.f32 0.0, %v4180
      %4182 = vmatmul.bf16.gmra.mxu0 %v3001
      %v4183 = vpop.f32.mrf.mxu0
      %v4184 = vadd.f32 0.0, %v4183
      %v4185 = vpop.f32.mrf.mxu0
      %4186 = vmatmul.bf16.gmra.mxu0 %v3004
      %v4187 = vpop.f32.mrf.mxu0
      %v4188 = vadd.f32 0.0, %v4187
      %v4189 = vpop.f32.mrf.mxu0
      %v4190 = vadd.f32 0.0, %v4189
      %4191 = vmatmul.bf16.gmra.mxu0 %v3007
      %v4192 = vpop.f32.mrf.mxu0
      %v4193 = vadd.f32 0.0, %v4192
      %v4194 = vpop.f32.mrf.mxu0
      %4195 = vmatmul.bf16.gmra.mxu0 %v3010
      %v4196 = vpop.f32.mrf.mxu0
      %v4197 = vadd.f32 0.0, %v4196
      %v4198 = vpop.f32.mrf.mxu0
      %v4199 = vadd.f32 0.0, %v4198
      %4200 = vmatmul.bf16.gmra.mxu0 %v3013
      %v4201 = vpop.f32.mrf.mxu0
      %v4202 = vadd.f32 0.0, %v4201
      %v4203 = vpop.f32.mrf.mxu0
      %4204 = vdwg.mxu0
      %v4229 = vrot.slane %v4134, 1
      %v4230 = vrot.slane %v4136, 1
      %v4231 = vsel %vm778, %v4229, %v4230
      %v4232 = vrot.slane %v4139, 1
      %v4233 = vsel %vm778, %v4230, %v4232
      %v4234 = vrot.slane %v4143, 1
      %v4235 = vrot.slane %v4145, 1
      %v4236 = vsel %vm778, %v4234, %v4235
      %v4237 = vrot.slane %v4148, 1
      %v4238 = vsel %vm778, %v4235, %v4237
      %v4239 = vrot.slane %v4152, 1
      %v4240 = vrot.slane %v4154, 1
      %v4241 = vsel %vm778, %v4239, %v4240
      %v4242 = vrot.slane %v4157, 1
      %v4243 = vsel %vm778, %v4240, %v4242
      %v4244 = vrot.slane %v4161, 1
      %v4245 = vrot.slane %v4163, 1
      %v4246 = vsel %vm778, %v4244, %v4245
      %v4247 = vrot.slane %v4166, 1
      %v4248 = vsel %vm778, %v4245, %v4247
      %v4249 = vrot.slane %v4170, 1
      %v4250 = vrot.slane %v4172, 1
      %v4251 = vsel %vm778, %v4249, %v4250
      %v4252 = vrot.slane %v4175, 1
      %v4253 = vsel %vm778, %v4250, %v4252
      %v4254 = vrot.slane %v4179, 1
      %v4255 = vrot.slane %v4181, 1
      %v4256 = vsel %vm778, %v4254, %v4255
      %v4257 = vrot.slane %v4184, 1
      %v4258 = vsel %vm778, %v4255, %v4257
      %v4259 = vrot.slane %v4188, 1
      %v4260 = vrot.slane %v4190, 1
      %v4261 = vsel %vm778, %v4259, %v4260
      %v4262 = vrot.slane %v4193, 1
      %v4263 = vsel %vm778, %v4260, %v4262
      %v4264 = vrot.slane %v4197, 1
      %v4265 = vrot.slane %v4199, 1
      %v4266 = vsel %vm778, %v4264, %v4265
      %v4267 = vrot.slane %v4202, 1
      %v4268 = vsel %vm778, %v4265, %v4267
      %v4285 = vadd.f32 %v4091, %v4231
      %v4286 = vadd.f32 %v4092, %v4233
      %v4287 = vadd.f32 %v4093, %v4236
      %v4288 = vadd.f32 %v4094, %v4238
      %v4289 = vadd.f32 %v4095, %v4241
      %v4290 = vadd.f32 %v4096, %v4243
      %v4291 = vadd.f32 %v4097, %v4246
      %v4292 = vadd.f32 %v4098, %v4248
      %v4293 = vadd.f32 %v4099, %v4251
      %v4294 = vadd.f32 %v4100, %v4253
      %v4295 = vadd.f32 %v4101, %v4256
      %v4296 = vadd.f32 %v4102, %v4258
      %v4297 = vadd.f32 %v4103, %v4261
      %v4298 = vadd.f32 %v4104, %v4263
      %v4299 = vadd.f32 %v4105, %v4266
      %v4300 = vadd.f32 %v4106, %v4268
      %s4301 = scalar_lea.vmem %s3, 16
      %v4302 = vld [vmem:[%s4301] sm:$0x3]
      %v4304 = vsel %vm507, %v4302, 0
      %4306 = vmatpush.bf16.msra.mxu0 0
      %4307 = vmatpush.bf16.msra.mxu0 0
      %4308 = vmatpush.bf16.msra.mxu0 0
      %4309 = vmatpush.bf16.msra.mxu0 0
      %4310 = vmatpush.bf16.msra.mxu0 0
      %4311 = vmatpush.bf16.msra.mxu0 0
      %4312 = vmatpush.bf16.msra.mxu0 0
      %4313 = vmatpush.bf16.msra.mxu0 %v4304
      %4314 = vmatmul.bf16.gmra.mxu0 %v2956
      %v4315 = vpop.f32.mrf.mxu0
      %v4316 = vpop.f32.mrf.mxu0
      %4317 = vmatmul.bf16.gmra.mxu0 %v2959
      %v4318 = vpop.f32.mrf.mxu0
      %v4319 = vpop.f32.mrf.mxu0
      %4320 = vmatmul.bf16.gmra.mxu0 %v2962
      %v4321 = vpop.f32.mrf.mxu0
      %v4322 = vpop.f32.mrf.mxu0
      %4323 = vmatmul.bf16.gmra.mxu0 %v2965
      %v4324 = vpop.f32.mrf.mxu0
      %v4325 = vpop.f32.mrf.mxu0
      %4326 = vmatmul.bf16.gmra.mxu0 %v2968
      %v4327 = vpop.f32.mrf.mxu0
      %v4328 = vadd.f32 0.0, %v4327
      %v4329 = vpop.f32.mrf.mxu0
      %v4330 = vadd.f32 0.0, %v4329
      %4331 = vmatmul.bf16.gmra.mxu0 %v2971
      %v4332 = vpop.f32.mrf.mxu0
      %v4333 = vadd.f32 0.0, %v4332
      %v4334 = vpop.f32.mrf.mxu0
      %4335 = vmatmul.bf16.gmra.mxu0 %v2974
      %v4336 = vpop.f32.mrf.mxu0
      %v4337 = vadd.f32 0.0, %v4336
      %v4338 = vpop.f32.mrf.mxu0
      %v4339 = vadd.f32 0.0, %v4338
      %4340 = vmatmul.bf16.gmra.mxu0 %v2977
      %v4341 = vpop.f32.mrf.mxu0
      %v4342 = vadd.f32 0.0, %v4341
      %v4343 = vpop.f32.mrf.mxu0
      %4344 = vmatmul.bf16.gmra.mxu0 %v2980
      %v4345 = vpop.f32.mrf.mxu0
      %v4346 = vadd.f32 0.0, %v4345
      %v4347 = vpop.f32.mrf.mxu0
      %v4348 = vadd.f32 0.0, %v4347
      %4349 = vmatmul.bf16.gmra.mxu0 %v2983
      %v4350 = vpop.f32.mrf.mxu0
      %v4351 = vadd.f32 0.0, %v4350
      %v4352 = vpop.f32.mrf.mxu0
      %4353 = vmatmul.bf16.gmra.mxu0 %v2986
      %v4354 = vpop.f32.mrf.mxu0
      %v4355 = vadd.f32 0.0, %v4354
      %v4356 = vpop.f32.mrf.mxu0
      %v4357 = vadd.f32 0.0, %v4356
      %4358 = vmatmul.bf16.gmra.mxu0 %v2989
      %v4359 = vpop.f32.mrf.mxu0
      %v4360 = vadd.f32 0.0, %v4359
      %v4361 = vpop.f32.mrf.mxu0
      %4362 = vmatmul.bf16.gmra.mxu0 %v2992
      %v4363 = vpop.f32.mrf.mxu0
      %v4364 = vadd.f32 0.0, %v4363
      %v4365 = vpop.f32.mrf.mxu0
      %v4366 = vadd.f32 0.0, %v4365
      %4367 = vmatmul.bf16.gmra.mxu0 %v2995
      %v4368 = vpop.f32.mrf.mxu0
      %v4369 = vadd.f32 0.0, %v4368
      %v4370 = vpop.f32.mrf.mxu0
      %4371 = vmatmul.bf16.gmra.mxu0 %v2998
      %v4372 = vpop.f32.mrf.mxu0
      %v4373 = vadd.f32 0.0, %v4372
      %v4374 = vpop.f32.mrf.mxu0
      %v4375 = vadd.f32 0.0, %v4374
      %4376 = vmatmul.bf16.gmra.mxu0 %v3001
      %v4377 = vpop.f32.mrf.mxu0
      %v4378 = vadd.f32 0.0, %v4377
      %v4379 = vpop.f32.mrf.mxu0
      %4380 = vmatmul.bf16.gmra.mxu0 %v3004
      %v4381 = vpop.f32.mrf.mxu0
      %v4382 = vadd.f32 0.0, %v4381
      %v4383 = vpop.f32.mrf.mxu0
      %v4384 = vadd.f32 0.0, %v4383
      %4385 = vmatmul.bf16.gmra.mxu0 %v3007
      %v4386 = vpop.f32.mrf.mxu0
      %v4387 = vadd.f32 0.0, %v4386
      %v4388 = vpop.f32.mrf.mxu0
      %4389 = vmatmul.bf16.gmra.mxu0 %v3010
      %v4390 = vpop.f32.mrf.mxu0
      %v4391 = vadd.f32 0.0, %v4390
      %v4392 = vpop.f32.mrf.mxu0
      %v4393 = vadd.f32 0.0, %v4392
      %4394 = vmatmul.bf16.gmra.mxu0 %v3013
      %v4395 = vpop.f32.mrf.mxu0
      %v4396 = vadd.f32 0.0, %v4395
      %v4397 = vpop.f32.mrf.mxu0
      %4398 = vdwg.mxu0
      %v4423 = vrot.slane %v4328, 2
      %v4424 = vrot.slane %v4330, 2
      %v4425 = vsel %vm1015, %v4423, %v4424
      %v4426 = vrot.slane %v4333, 2
      %v4427 = vsel %vm1015, %v4424, %v4426
      %v4428 = vrot.slane %v4337, 2
      %v4429 = vrot.slane %v4339, 2
      %v4430 = vsel %vm1015, %v4428, %v4429
      %v4431 = vrot.slane %v4342, 2
      %v4432 = vsel %vm1015, %v4429, %v4431
      %v4433 = vrot.slane %v4346, 2
      %v4434 = vrot.slane %v4348, 2
      %v4435 = vsel %vm1015, %v4433, %v4434
      %v4436 = vrot.slane %v4351, 2
      %v4437 = vsel %vm1015, %v4434, %v4436
      %v4438 = vrot.slane %v4355, 2
      %v4439 = vrot.slane %v4357, 2
      %v4440 = vsel %vm1015, %v4438, %v4439
      %v4441 = vrot.slane %v4360, 2
      %v4442 = vsel %vm1015, %v4439, %v4441
      %v4443 = vrot.slane %v4364, 2
      %v4444 = vrot.slane %v4366, 2
      %v4445 = vsel %vm1015, %v4443, %v4444
      %v4446 = vrot.slane %v4369, 2
      %v4447 = vsel %vm1015, %v4444, %v4446
      %v4448 = vrot.slane %v4373, 2
      %v4449 = vrot.slane %v4375, 2
      %v4450 = vsel %vm1015, %v4448, %v4449
      %v4451 = vrot.slane %v4378, 2
      %v4452 = vsel %vm1015, %v4449, %v4451
      %v4453 = vrot.slane %v4382, 2
      %v4454 = vrot.slane %v4384, 2
      %v4455 = vsel %vm1015, %v4453, %v4454
      %v4456 = vrot.slane %v4387, 2
      %v4457 = vsel %vm1015, %v4454, %v4456
      %v4458 = vrot.slane %v4391, 2
      %v4459 = vrot.slane %v4393, 2
      %v4460 = vsel %vm1015, %v4458, %v4459
      %v4461 = vrot.slane %v4396, 2
      %v4462 = vsel %vm1015, %v4459, %v4461
      %v4479 = vadd.f32 %v4285, %v4425
      %v4480 = vadd.f32 %v4286, %v4427
      %v4481 = vadd.f32 %v4287, %v4430
      %v4482 = vadd.f32 %v4288, %v4432
      %v4483 = vadd.f32 %v4289, %v4435
      %v4484 = vadd.f32 %v4290, %v4437
      %v4485 = vadd.f32 %v4291, %v4440
      %v4486 = vadd.f32 %v4292, %v4442
      %v4487 = vadd.f32 %v4293, %v4445
      %v4488 = vadd.f32 %v4294, %v4447
      %v4489 = vadd.f32 %v4295, %v4450
      %v4490 = vadd.f32 %v4296, %v4452
      %v4491 = vadd.f32 %v4297, %v4455
      %v4492 = vadd.f32 %v4298, %v4457
      %v4493 = vadd.f32 %v4299, %v4460
      %v4494 = vadd.f32 %v4300, %v4462
      %v4495 = vunpack.c.l.bf16 %v273
      %v4496 = vunpack.c.l.bf16 %v274
      %v4497 = vunpack.c.l.bf16 %v275
      %v4498 = vunpack.c.l.bf16 %v277
      %v4499 = vunpack.c.l.bf16 %v278
      %v4500 = vunpack.c.l.bf16 %v279
      %v4501 = vunpack.c.l.bf16 %v281
      %v4502 = vunpack.c.l.bf16 %v282
      %v4503 = vunpack.c.l.bf16 %v283
      %v4504 = vunpack.c.l.bf16 %v285
      %v4505 = vunpack.c.l.bf16 %v286
      %v4506 = vunpack.c.l.bf16 %v287
      %v4507 = vunpack.c.l.bf16 %v289
      %v4508 = vunpack.c.l.bf16 %v290
      %v4509 = vunpack.c.l.bf16 %v291
      %v4510 = vunpack.c.l.bf16 %v293
      %v4511 = vunpack.c.l.bf16 %v294
      %v4512 = vunpack.c.l.bf16 %v295
      %v4513 = vunpack.c.l.bf16 %v297
      %v4514 = vunpack.c.l.bf16 %v298
      %v4515 = vunpack.c.l.bf16 %v299
      %v4516 = vunpack.c.l.bf16 %v301
      %v4517 = vunpack.c.l.bf16 %v302
      %v4518 = vunpack.c.l.bf16 %v303
      %v4519 = vld [vmem:[%s4] sm:$0x1]
      %v4521 = vperm.slane %v4519, 0
      %v4523 = vadd.f32 %v4479, %v4521
      %v4524 = vadd.f32 %v4480, %v4521
      %v4525 = vadd.f32 %v4481, %v4521
      %v4526 = vadd.f32 %v4482, %v4521
      %v4527 = vadd.f32 %v4483, %v4521
      %v4528 = vadd.f32 %v4484, %v4521
      %v4529 = vadd.f32 %v4485, %v4521
      %v4530 = vadd.f32 %v4486, %v4521
      %v4531 = vadd.f32 %v4487, %v4521
      %v4532 = vadd.f32 %v4488, %v4521
      %v4533 = vadd.f32 %v4489, %v4521
      %v4534 = vadd.f32 %v4490, %v4521
      %v4535 = vadd.f32 %v4491, %v4521
      %v4536 = vadd.f32 %v4492, %v4521
      %v4537 = vadd.f32 %v4493, %v4521
      %v4538 = vadd.f32 %v4494, %v4521
      %v4563 = vrot.slane %v4495, 1
      %v4564 = vrot.slane %v4496, 1
      %v4565 = vsel %vm778, %v4563, %v4564
      %v4566 = vrot.slane %v4497, 1
      %v4567 = vsel %vm778, %v4564, %v4566
      %v4568 = vrot.slane %v4498, 1
      %v4569 = vrot.slane %v4499, 1
      %v4570 = vsel %vm778, %v4568, %v4569
      %v4571 = vrot.slane %v4500, 1
      %v4572 = vsel %vm778, %v4569, %v4571
      %v4573 = vrot.slane %v4501, 1
      %v4574 = vrot.slane %v4502, 1
      %v4575 = vsel %vm778, %v4573, %v4574
      %v4576 = vrot.slane %v4503, 1
      %v4577 = vsel %vm778, %v4574, %v4576
      %v4578 = vrot.slane %v4504, 1
      %v4579 = vrot.slane %v4505, 1
      %v4580 = vsel %vm778, %v4578, %v4579
      %v4581 = vrot.slane %v4506, 1
      %v4582 = vsel %vm778, %v4579, %v4581
      %v4583 = vrot.slane %v4507, 1
      %v4584 = vrot.slane %v4508, 1
      %v4585 = vsel %vm778, %v4583, %v4584
      %v4586 = vrot.slane %v4509, 1
      %v4587 = vsel %vm778, %v4584, %v4586
      %v4588 = vrot.slane %v4510, 1
      %v4589 = vrot.slane %v4511, 1
      %v4590 = vsel %vm778, %v4588, %v4589
      %v4591 = vrot.slane %v4512, 1
      %v4592 = vsel %vm778, %v4589, %v4591
      %v4593 = vrot.slane %v4513, 1
      %v4594 = vrot.slane %v4514, 1
      %v4595 = vsel %vm778, %v4593, %v4594
      %v4596 = vrot.slane %v4515, 1
      %v4597 = vsel %vm778, %v4594, %v4596
      %v4598 = vrot.slane %v4516, 1
      %v4599 = vrot.slane %v4517, 1
      %v4600 = vsel %vm778, %v4598, %v4599
      %v4601 = vrot.slane %v4518, 1
      %v4602 = vsel %vm778, %v4599, %v4601
      %v4619 = vadd.f32 %v4523, %v4565
      %v4620 = vadd.f32 %v4524, %v4567
      %v4621 = vadd.f32 %v4525, %v4570
      %v4622 = vadd.f32 %v4526, %v4572
      %v4623 = vadd.f32 %v4527, %v4575
      %v4624 = vadd.f32 %v4528, %v4577
      %v4625 = vadd.f32 %v4529, %v4580
      %v4626 = vadd.f32 %v4530, %v4582
      %v4627 = vadd.f32 %v4531, %v4585
      %v4628 = vadd.f32 %v4532, %v4587
      %v4629 = vadd.f32 %v4533, %v4590
      %v4630 = vadd.f32 %v4534, %v4592
      %v4631 = vadd.f32 %v4535, %v4595
      %v4632 = vadd.f32 %v4536, %v4597
      %v4633 = vadd.f32 %v4537, %v4600
      %v4634 = vadd.f32 %v4538, %v4602
      %4635 = vst.msk [vmem:[%s262] sm:$0xff] %vm434, %v4619
      %4636 = vst.msk [vmem:[%s262 + $0x8] sm:$0xff] %vm434, %v4620
      %4637 = vst.msk [vmem:[%s262 + $0x10] sm:$0xff] %vm434, %v4621
      %4638 = vst.msk [vmem:[%s262 + $0x18] sm:$0xff] %vm434, %v4622
      %4639 = vst.msk [vmem:[%s262 + $0x20] sm:$0xff] %vm434, %v4623
      %4640 = vst.msk [vmem:[%s262 + $0x28] sm:$0xff] %vm434, %v4624
      %4641 = vst.msk [vmem:[%s262 + $0x30] sm:$0xff] %vm434, %v4625
      %4642 = vst.msk [vmem:[%s262 + $0x38] sm:$0xff] %vm434, %v4626
      %4643 = vst.msk [vmem:[%s262 + $0x40] sm:$0xff] %vm434, %v4627
      %4644 = vst.msk [vmem:[%s262 + $0x48] sm:$0xff] %vm434, %v4628
      %4645 = vst.msk [vmem:[%s262 + $0x50] sm:$0xff] %vm434, %v4629
      %4646 = vst.msk [vmem:[%s262 + $0x58] sm:$0xff] %vm434, %v4630
      %4647 = vst.msk [vmem:[%s262 + $0x60] sm:$0xff] %vm434, %v4631
      %4648 = vst.msk [vmem:[%s262 + $0x68] sm:$0xff] %vm434, %v4632
      %4649 = vst.msk [vmem:[%s262 + $0x70] sm:$0xff] %vm434, %v4633
      %4650 = vst.msk [vmem:[%s262 + $0x78] sm:$0xff] %vm434, %v4634
      %s4651 = smul.u32 8, %s21
      %p4652 = scmp.lt.s32.totalorder %s20, 1
      %s4653 = scalar_select %p4652, %s20, 1
      %p4654 = scmp.lt.s32.totalorder %s4651, 15
      %s4655 = scalar_select %p4654, %s4651, 15
      %s4656 = smul.addr %s4655, 2
      %s4657 = smul.addr %s4653, 32
      %s4658 = sadd.s32 %s4656, %s4657
      %s4659 = smul.addr %s4658, 8
      %s4660 = scalar_lea.vmem %s5, %s4659
      // Predicated region
      $region49: #{resnet_block_forward.1} parent=39 // pred_check
        %p4661 = pneg %p160
      $region50: #{resnet_block_forward.1} parent=39 // pred_check_branch
        %4663 = sbr.rel (%p4661) target = $region52
      $region51: #{resnet_block_forward.1} parent=39 // pred_region
        %s4664 = smul.u32 8, %s21
      $region52: #{resnet_block_forward.1} parent=39 // pred_fallthru
        _
    $region40: #{resnet_block_forward.1} parent=5 // pred_fallthru
      _
    %p4665 = scmp.le.s32.totalorder 2, %s11
    // Predicated region
    $region53: #{resnet_block_forward.1} parent=5 // pred_check
      %p4666 = pneg %p4665
    $region54: #{resnet_block_forward.1} parent=5 // pred_check_branch
      %4668 = sbr.rel (%p4666) target = $region56
    $region55: #{resnet_block_forward.1} parent=5 // pred_region
      %s4669 = ssub.s32 %s11, 2
      // Predicated region
      $region57: #{resnet_block_forward.1} parent=55 // pred_check
        %p4670 = pneg %p166
      $region58: #{resnet_block_forward.1} parent=55 // pred_check_branch
        %4672 = sbr.rel (%p4670) target = $region60
      $region59: #{resnet_block_forward.1} parent=55 // pred_region
        %s4673 = smul.u32 8, %s23
        %p4674 = scmp.lt.s32.totalorder %s22, 1
        %s4675 = scalar_select %p4674, %s22, 1
        %p4676 = scmp.lt.s32.totalorder %s4673, 15
        %s4677 = scalar_select %p4676, %s4673, 15
        %s4678 = smul.addr %s4677, 2
        %s4679 = smul.addr %s4675, 32
        %s4680 = sadd.s32 %s4678, %s4679
        %s4681 = smul.addr %s4680, 8
        %s4682 = scalar_lea.vmem %s5, %s4681
      $region60: #{resnet_block_forward.1} parent=55 // pred_fallthru
        _
    $region56: #{resnet_block_forward.1} parent=5 // pred_fallthru
      _
  $region6: #{resnet_block_forward.1} parent=0 // loop_footer
    %s15 = sadd.s32 1, %s11
  $region7: #{resnet_block_forward.1} parent=0 // loop_footer_branch
    %10 = sbr.rel target = $region3
  $region8: #{resnet_block_forward.1} parent=0 // loop_exit
    _

</llo_original>
